<compile_context>
chip_gen: v5e
topology: v5e:2x2
jax: 0.10.0
libtpu: 0.0.40
codegen_flags: <defaults>
</compile_context>

<pallas_src>
import functools

import jax
import jax.numpy as jnp
from jax import lax
from jax.experimental import pallas as pl
from jax.experimental.pallas import tpu as pltpu

_SQRT_HALF = 0.7071067811865476
_VMEM_LIMIT = 32 * 1024 * 1024  # stays within v7x's default scoped-VMEM budget


def _gelu_exact(x):
    # exact (erf-based) GELU, matching torch.nn.GELU() default
    return 0.5 * x * (1.0 + lax.erf(x * _SQRT_HALF))


# ---------------------------------------------------------------------------
# Fused per-batch AC-SA kernel: QKV proj + channel attention + dwconv+BN+GELU
# + both interaction branches + sigmoid gating + output projection.
# ---------------------------------------------------------------------------
def _acsa_kernel(x_ref,
                 wq_ref, wk_ref, wv_ref, temp_ref, hmask_ref,
                 wdw_ref, bdw_ref, dws_ref, dwt_ref,
                 mskl_ref, mskr_ref,
                 w1s_ref, b1s_ref, ss_ref, ts_ref, w2s_ref, b2s_ref,
                 w1c_ref, b1c_ref, cs_ref, ct_ref, w2c_ref, b2c_ref,
                 wp_ref, bp_ref,
                 o_ref, *, H, W, C):
    N = H * W
    bf16 = jnp.bfloat16
    f32 = jnp.float32

    # ---- fused QKV projection (bf16 MXU operands, f32 accumulate) ----------
    xb = x_ref[0].astype(bf16)                                    # (N, C)
    q = jnp.dot(xb, wq_ref[...], preferred_element_type=f32)      # (N, C) f32
    k = jnp.dot(xb, wk_ref[...], preferred_element_type=f32)
    v = jnp.dot(xb, wv_ref[...], preferred_element_type=f32)

    # ---- channel self-attention, all heads at once --------------------------
    # F.normalize(dim=-1) in the reference normalizes along N (axis 0 here).
    # rsqrt runs on the EUP; temperature is folded into q before the gram.
    qn = q * (lax.rsqrt(jnp.maximum(jnp.sum(q * q, axis=0, keepdims=True), 1e-24))
              * temp_ref[...])
    kn = k * lax.rsqrt(jnp.maximum(jnp.sum(k * k, axis=0, keepdims=True), 1e-24))
    gram = lax.dot_general(qn.astype(bf16), kn.astype(bf16),
                           (((0,), (0,)), ((), ())),
                           preferred_element_type=f32)             # (C, C) = q^T k over N
    gram = gram + hmask_ref[...]                                   # block-diag head mask
    gram = gram - jnp.max(gram, axis=-1, keepdims=True)
    e = jnp.exp(gram)
    attn = e * pl.reciprocal(jnp.sum(e, axis=-1, keepdims=True), approx=True)
    # attened_x directly in token layout: att[n, r] = sum_c v[n, c] * attn[r, c]
    att = lax.dot_general(v.astype(bf16), attn.astype(bf16),
                          (((1,), (1,)), ((), ())),
                          preferred_element_type=f32)               # (N, C)

    # ---- depthwise 3x3 conv + folded BN + GELU on v (flat (N, C) layout) ----
    # W-direction (+/-1) neighbours: XLU roll + precomputed border masks.
    # H-direction (+/-1) neighbours: row-group concats at offsets multiple of W.
    wdw = wdw_ref[...]                                              # (3, 3, C)
    col_m = pltpu.roll(v, shift=1, axis=0) * mskl_ref[...]          # v at (h, w-1)
    col_p = pltpu.roll(v, shift=N - 1, axis=0) * mskr_ref[...]      # v at (h, w+1)
    part = [col_m * wdw[i, 0].reshape(1, C)
            + v * wdw[i, 1].reshape(1, C)
            + col_p * wdw[i, 2].reshape(1, C)
            for i in range(3)]
    zrow = jnp.zeros((W, C), f32)
    acc = (part[1]
           + jnp.concatenate([zrow, part[0][:N - W]], axis=0)       # rows from h-1
           + jnp.concatenate([part[2][W:], zrow], axis=0))          # rows from h+1
    acc = (acc + bdw_ref[...]) * dws_ref[...] + dwt_ref[...]        # conv bias + folded BN
    conv = _gelu_exact(acc)                                         # conv branch (N, C)

    # ---- spatial interaction (conv branch) -> (N, 1) gate -------------------
    t = jnp.dot(conv.astype(bf16), w1s_ref[...],
                preferred_element_type=f32) + b1s_ref[...]
    t = _gelu_exact(t * ss_ref[...] + ts_ref[...])
    smap = jnp.sum(t * w2s_ref[...], axis=-1, keepdims=True) + b2s_ref[...]

    # ---- channel interaction (attention branch) -> (1, C) gate --------------
    pooled = jnp.mean(att, axis=0, keepdims=True)                   # AdaptiveAvgPool2d(1)
    z = jnp.dot(pooled, w1c_ref[...], preferred_element_type=f32) + b1c_ref[...]
    z = _gelu_exact(z * cs_ref[...] + ct_ref[...])
    cmap = jnp.dot(z, w2c_ref[...], preferred_element_type=f32) + b2c_ref[...]

    # ---- sigmoid gating + sum + output projection ---------------------------
    y = att * jax.nn.sigmoid(smap) + conv * jax.nn.sigmoid(cmap)
    o_ref[0] = (jnp.dot(y.astype(bf16), wp_ref[...], preferred_element_type=f32)
                + bp_ref[...])


# ---------------------------------------------------------------------------
# Wrapper
# ---------------------------------------------------------------------------
def adaptive_channel_attention(x, H, W, params, num_heads):
    B, N, C = x.shape
    assert N == H * W
    hd = C // num_heads
    bf16 = jnp.bfloat16

    # bf16-resident MXU weights (halves their DMA size, no in-kernel cast pass)
    wq, wk, wv = [w.astype(bf16) for w in jnp.split(params['w_qkv'], 3, axis=1)]
    wp = params['w_proj'].astype(bf16)
    w1s = params['w1s'].astype(bf16)

    # per-channel temperature row (temperature[head] repeated over head_dim)
    temp_row = jnp.repeat(params['temperature'].astype(jnp.float32), hd).reshape(1, C)
    # hoisted additive block-diagonal head mask (0 in-head / -1e30 cross-head)
    head_of = jnp.arange(C, dtype=jnp.int32) // hd
    hmask = jnp.where(head_of[:, None] == head_of[None, :], 0.0, -1e30).astype(jnp.float32)
    # hoisted W-direction border masks for the depthwise-conv shifts
    wpos = jnp.arange(N, dtype=jnp.int32) % W
    mask_l = (wpos > 0).astype(jnp.float32).reshape(N, 1)
    mask_r = (wpos < W - 1).astype(jnp.float32).reshape(N, 1)

    small = [wq, wk, wv, temp_row, hmask,
             params['w_dw'], params['b_dw'], params['dw_bn_scale'], params['dw_bn_shift'],
             mask_l, mask_r,
             w1s, params['b1s'], params['s_scale'], params['s_shift'],
             params['w2s'], params['b2s'],
             params['w1c'], params['b1c'], params['c_scale'], params['c_shift'],
             params['w2c'], params['b2c'],
             wp, params['b_proj']]

    def pinned(a):
        zeros = (0,) * a.ndim
        return pl.BlockSpec(a.shape, lambda b, _z=zeros: _z)

    kernel = functools.partial(_acsa_kernel, H=H, W=W, C=C)
    return pl.pallas_call(
        kernel,
        out_shape=jax.ShapeDtypeStruct((B, N, C), jnp.float32),
        grid=(B,),
        in_specs=[pl.BlockSpec((1, N, C), lambda b: (b, 0, 0))]
                 + [pinned(a) for a in small],
        out_specs=pl.BlockSpec((1, N, C), lambda b: (b, 0, 0)),
        compiler_params=pltpu.CompilerParams(
            dimension_semantics=("parallel",),
            vmem_limit_bytes=_VMEM_LIMIT),
    )(x, *small)


# ---------------------------------------------------------------------------
# Parameter construction (deterministic; BN folded to inference-mode scale/shift)
# ---------------------------------------------------------------------------
def init_params(key, dim, num_heads):
    c8, c16 = dim // 8, dim // 16
    ks = jax.random.split(key, 26)
    eps = 1e-5

    def bn_fold(kg, kb, km, kv, n):
        g = 1.0 + 0.1 * jax.random.normal(kg, (n,))
        b = 0.02 * jax.random.normal(kb, (n,))
        rm = 0.02 * jax.random.normal(km, (n,))
        rv = 1.0 + 0.1 * jnp.abs(jax.random.normal(kv, (n,)))
        s = g / jnp.sqrt(rv + eps)
        return s.reshape(1, n), (b - rm * s).reshape(1, n)

    p = {}
    p['temperature'] = 0.5 + jnp.abs(jax.random.normal(ks[0], (num_heads,)))
    p['w_qkv'] = 0.05 * jax.random.normal(ks[1], (dim, 3 * dim))
    p['w_proj'] = 0.05 * jax.random.normal(ks[2], (dim, dim))
    p['b_proj'] = 0.02 * jax.random.normal(ks[3], (1, dim))
    # depthwise conv + BN
    p['w_dw'] = 0.1 * jax.random.normal(ks[4], (3, 3, dim))
    p['b_dw'] = 0.02 * jax.random.normal(ks[5], (1, dim))
    p['dw_bn_scale'], p['dw_bn_shift'] = bn_fold(ks[6], ks[7], ks[8], ks[9], dim)
    # channel interaction: C -> C/8 -> C
    p['w1c'] = 0.05 * jax.random.normal(ks[10], (dim, c8))
    p['b1c'] = 0.02 * jax.random.normal(ks[11], (1, c8))
    p['c_scale'], p['c_shift'] = bn_fold(ks[12], ks[13], ks[14], ks[15], c8)
    p['w2c'] = 0.05 * jax.random.normal(ks[16], (c8, dim))
    p['b2c'] = 0.02 * jax.random.normal(ks[17], (1, dim))
    # spatial interaction: C -> C/16 -> 1
    p['w1s'] = 0.05 * jax.random.normal(ks[18], (dim, c16))
    p['b1s'] = 0.02 * jax.random.normal(ks[19], (1, c16))
    p['s_scale'], p['s_shift'] = bn_fold(ks[20], ks[21], ks[22], ks[23], c16)
    p['w2s'] = 0.05 * jax.random.normal(ks[24], (1, c16))  # row form for broadcast-reduce
    p['b2s'] = 0.02 * jax.random.normal(ks[25], (1, 1))
    return p


if __name__ == "__main__":
    B, H, W, C, heads = 2, 8, 8, 32, 8
    N = H * W
    key = jax.random.PRNGKey(0)
    kx, kp = jax.random.split(key)
    x = jax.random.normal(kx, (B, N, C), jnp.float32)
    params = init_params(kp, C, heads)
    fwd = jax.jit(adaptive_channel_attention, static_argnums=(1, 2, 4))
    out = jax.block_until_ready(fwd(x, H, W, params, heads))
    assert out.shape == (B, N, C) and out.dtype == jnp.float32
    assert bool(jnp.all(jnp.isfinite(out)))
    print("KERNEL_OK")
</pallas_src>

<mosaic_0001>
module attributes {stable_mosaic.version = 11 : i64} {
  func.func @_acsa_kernel(%arg0: i32, %arg1: memref<1x64x32xf32, #tpu.memory_space<vmem>>, %arg2: memref<32x32xbf16, #tpu.memory_space<vmem>>, %arg3: memref<32x32xbf16, #tpu.memory_space<vmem>>, %arg4: memref<32x32xbf16, #tpu.memory_space<vmem>>, %arg5: memref<1x32xf32, #tpu.memory_space<vmem>>, %arg6: memref<32x32xf32, #tpu.memory_space<vmem>>, %arg7: memref<3x3x32xf32, #tpu.memory_space<vmem>>, %arg8: memref<1x32xf32, #tpu.memory_space<vmem>>, %arg9: memref<1x32xf32, #tpu.memory_space<vmem>>, %arg10: memref<1x32xf32, #tpu.memory_space<vmem>>, %arg11: memref<64x1xf32, #tpu.memory_space<vmem>>, %arg12: memref<64x1xf32, #tpu.memory_space<vmem>>, %arg13: memref<32x2xbf16, #tpu.memory_space<vmem>>, %arg14: memref<1x2xf32, #tpu.memory_space<vmem>>, %arg15: memref<1x2xf32, #tpu.memory_space<vmem>>, %arg16: memref<1x2xf32, #tpu.memory_space<vmem>>, %arg17: memref<1x2xf32, #tpu.memory_space<vmem>>, %arg18: memref<1x1xf32, #tpu.memory_space<vmem>>, %arg19: memref<32x4xf32, #tpu.memory_space<vmem>>, %arg20: memref<1x4xf32, #tpu.memory_space<vmem>>, %arg21: memref<1x4xf32, #tpu.memory_space<vmem>>, %arg22: memref<1x4xf32, #tpu.memory_space<vmem>>, %arg23: memref<4x32xf32, #tpu.memory_space<vmem>>, %arg24: memref<1x32xf32, #tpu.memory_space<vmem>>, %arg25: memref<32x32xbf16, #tpu.memory_space<vmem>>, %arg26: memref<1x32xf32, #tpu.memory_space<vmem>>, %arg27: memref<1x64x32xf32, #tpu.memory_space<vmem>>) attributes {dimension_semantics = [#tpu.dimension_semantics<parallel>], iteration_bounds = array<i64: 2>, scalar_prefetch = 0 : i64, scratch_operands = 0 : i64, tpu.core_type = #tpu.core_type<tc>, window_params = [{transform_indices = @transform_0, window_bounds = array<i64: 1, 64, 32>}, {pipeline_mode = #tpu.pipeline_mode<synchronous>, transform_indices = @transform_1, window_bounds = array<i64: 32, 32>}, {pipeline_mode = #tpu.pipeline_mode<synchronous>, transform_indices = @transform_2, window_bounds = array<i64: 32, 32>}, {pipeline_mode = #tpu.pipeline_mode<synchronous>, transform_indices = @transform_3, window_bounds = array<i64: 32, 32>}, {pipeline_mode = #tpu.pipeline_mode<synchronous>, transform_indices = @transform_4, window_bounds = array<i64: 1, 32>}, {pipeline_mode = #tpu.pipeline_mode<synchronous>, transform_indices = @transform_5, window_bounds = array<i64: 32, 32>}, {pipeline_mode = #tpu.pipeline_mode<synchronous>, transform_indices = @transform_6, window_bounds = array<i64: 3, 3, 32>}, {pipeline_mode = #tpu.pipeline_mode<synchronous>, transform_indices = @transform_7, window_bounds = array<i64: 1, 32>}, {pipeline_mode = #tpu.pipeline_mode<synchronous>, transform_indices = @transform_8, window_bounds = array<i64: 1, 32>}, {pipeline_mode = #tpu.pipeline_mode<synchronous>, transform_indices = @transform_9, window_bounds = array<i64: 1, 32>}, {pipeline_mode = #tpu.pipeline_mode<synchronous>, transform_indices = @transform_10, window_bounds = array<i64: 64, 1>}, {pipeline_mode = #tpu.pipeline_mode<synchronous>, transform_indices = @transform_11, window_bounds = array<i64: 64, 1>}, {pipeline_mode = #tpu.pipeline_mode<synchronous>, transform_indices = @transform_12, window_bounds = array<i64: 32, 2>}, {pipeline_mode = #tpu.pipeline_mode<synchronous>, transform_indices = @transform_13, window_bounds = array<i64: 1, 2>}, {pipeline_mode = #tpu.pipeline_mode<synchronous>, transform_indices = @transform_14, window_bounds = array<i64: 1, 2>}, {pipeline_mode = #tpu.pipeline_mode<synchronous>, transform_indices = @transform_15, window_bounds = array<i64: 1, 2>}, {pipeline_mode = #tpu.pipeline_mode<synchronous>, transform_indices = @transform_16, window_bounds = array<i64: 1, 2>}, {pipeline_mode = #tpu.pipeline_mode<synchronous>, transform_indices = @transform_17, window_bounds = array<i64: 1, 1>}, {pipeline_mode = #tpu.pipeline_mode<synchronous>, transform_indices = @transform_18, window_bounds = array<i64: 32, 4>}, {pipeline_mode = #tpu.pipeline_mode<synchronous>, transform_indices = @transform_19, window_bounds = array<i64: 1, 4>}, {pipeline_mode = #tpu.pipeline_mode<synchronous>, transform_indices = @transform_20, window_bounds = array<i64: 1, 4>}, {pipeline_mode = #tpu.pipeline_mode<synchronous>, transform_indices = @transform_21, window_bounds = array<i64: 1, 4>}, {pipeline_mode = #tpu.pipeline_mode<synchronous>, transform_indices = @transform_22, window_bounds = array<i64: 4, 32>}, {pipeline_mode = #tpu.pipeline_mode<synchronous>, transform_indices = @transform_23, window_bounds = array<i64: 1, 32>}, {pipeline_mode = #tpu.pipeline_mode<synchronous>, transform_indices = @transform_24, window_bounds = array<i64: 32, 32>}, {pipeline_mode = #tpu.pipeline_mode<synchronous>, transform_indices = @transform_25, window_bounds = array<i64: 1, 32>}, {transform_indices = @transform_26, window_bounds = array<i64: 1, 64, 32>}]} {
    %c0 = arith.constant 0 : index
    %c0_0 = arith.constant 0 : index
    %c0_1 = arith.constant 0 : index
    %0 = vector.load %arg1[%c0, %c0_0, %c0_1] : memref<1x64x32xf32, #tpu.memory_space<vmem>>, vector<1x64x32xf32>
    %1 = vector.shape_cast %0 : vector<1x64x32xf32> to vector<64x32xf32>
    %2 = arith.truncf %1 : vector<64x32xf32> to vector<64x32xbf16>
    %c0_2 = arith.constant 0 : index
    %c0_3 = arith.constant 0 : index
    %3 = vector.load %arg2[%c0_2, %c0_3] : memref<32x32xbf16, #tpu.memory_space<vmem>>, vector<32x32xbf16>
    %cst = arith.constant dense<0.000000e+00> : vector<64x32xf32>
    %4 = tpu.matmul %2, %3, %cst {dimension_numbers = #tpu.dot_dimension_numbers<[1], [0], [0], [1], [0, 0, 1, 1], [], []>} : vector<64x32xbf16>, vector<32x32xbf16>, vector<64x32xf32> -> vector<64x32xf32>
    %c0_4 = arith.constant 0 : index
    %c0_5 = arith.constant 0 : index
    %5 = vector.load %arg3[%c0_4, %c0_5] : memref<32x32xbf16, #tpu.memory_space<vmem>>, vector<32x32xbf16>
    %cst_6 = arith.constant dense<0.000000e+00> : vector<64x32xf32>
    %6 = tpu.matmul %2, %5, %cst_6 {dimension_numbers = #tpu.dot_dimension_numbers<[1], [0], [0], [1], [0, 0, 1, 1], [], []>} : vector<64x32xbf16>, vector<32x32xbf16>, vector<64x32xf32> -> vector<64x32xf32>
    %c0_7 = arith.constant 0 : index
    %c0_8 = arith.constant 0 : index
    %7 = vector.load %arg4[%c0_7, %c0_8] : memref<32x32xbf16, #tpu.memory_space<vmem>>, vector<32x32xbf16>
    %cst_9 = arith.constant dense<0.000000e+00> : vector<64x32xf32>
    %8 = tpu.matmul %2, %7, %cst_9 {dimension_numbers = #tpu.dot_dimension_numbers<[1], [0], [0], [1], [0, 0, 1, 1], [], []>} : vector<64x32xbf16>, vector<32x32xbf16>, vector<64x32xf32> -> vector<64x32xf32>
    %9 = arith.mulf %4, %4 : vector<64x32xf32>
    %cst_10 = arith.constant dense<0.000000e+00> : vector<32xf32>
    %10 = vector.multi_reduction <add>, %9, %cst_10 [0] : vector<64x32xf32> to vector<32xf32>
    %11 = vector.shape_cast %10 : vector<32xf32> to vector<1x32xf32>
    %cst_11 = arith.constant 1.000000e-24 : f32
    %12 = vector.broadcast %cst_11 : f32 to vector<1x32xf32>
    %13 = arith.maximumf %11, %12 : vector<1x32xf32>
    %14 = math.rsqrt %13 : vector<1x32xf32>
    %c0_12 = arith.constant 0 : index
    %c0_13 = arith.constant 0 : index
    %15 = vector.load %arg5[%c0_12, %c0_13] : memref<1x32xf32, #tpu.memory_space<vmem>>, vector<1x32xf32>
    %16 = arith.mulf %14, %15 : vector<1x32xf32>
    %17 = vector.broadcast %16 : vector<1x32xf32> to vector<64x32xf32>
    %18 = arith.mulf %4, %17 : vector<64x32xf32>
    %19 = arith.mulf %6, %6 : vector<64x32xf32>
    %cst_14 = arith.constant dense<0.000000e+00> : vector<32xf32>
    %20 = vector.multi_reduction <add>, %19, %cst_14 [0] : vector<64x32xf32> to vector<32xf32>
    %21 = vector.shape_cast %20 : vector<32xf32> to vector<1x32xf32>
    %cst_15 = arith.constant 1.000000e-24 : f32
    %22 = vector.broadcast %cst_15 : f32 to vector<1x32xf32>
    %23 = arith.maximumf %21, %22 : vector<1x32xf32>
    %24 = math.rsqrt %23 : vector<1x32xf32>
    %25 = vector.broadcast %24 : vector<1x32xf32> to vector<64x32xf32>
    %26 = arith.mulf %6, %25 : vector<64x32xf32>
    %27 = arith.truncf %18 : vector<64x32xf32> to vector<64x32xbf16>
    %28 = arith.truncf %26 : vector<64x32xf32> to vector<64x32xbf16>
    %cst_16 = arith.constant dense<0.000000e+00> : vector<32x32xf32>
    %29 = tpu.matmul %27, %28, %cst_16 {dimension_numbers = #tpu.dot_dimension_numbers<[0], [0], [1], [1], [0, 1, 1, 1], [], []>} : vector<64x32xbf16>, vector<64x32xbf16>, vector<32x32xf32> -> vector<32x32xf32>
    %c0_17 = arith.constant 0 : index
    %c0_18 = arith.constant 0 : index
    %30 = vector.load %arg6[%c0_17, %c0_18] : memref<32x32xf32, #tpu.memory_space<vmem>>, vector<32x32xf32>
    %31 = arith.addf %29, %30 : vector<32x32xf32>
    %cst_19 = arith.constant dense<0xFF800000> : vector<32xf32>
    %32 = vector.multi_reduction <maximumf>, %31, %cst_19 [1] : vector<32x32xf32> to vector<32xf32>
    %33 = vector.shape_cast %32 : vector<32xf32> to vector<32x1xf32>
    %34 = vector.broadcast %33 : vector<32x1xf32> to vector<32x32xf32>
    %35 = arith.subf %31, %34 : vector<32x32xf32>
    %36 = math.exp %35 : vector<32x32xf32>
    %cst_20 = arith.constant dense<0.000000e+00> : vector<32xf32>
    %37 = vector.multi_reduction <add>, %36, %cst_20 [1] : vector<32x32xf32> to vector<32xf32>
    %38 = vector.shape_cast %37 : vector<32xf32> to vector<32x1xf32>
    %39 = tpu.reciprocal %38 {approx = true} : vector<32x1xf32> -> vector<32x1xf32>
    %40 = vector.broadcast %39 : vector<32x1xf32> to vector<32x32xf32>
    %41 = arith.mulf %36, %40 : vector<32x32xf32>
    %42 = arith.truncf %8 : vector<64x32xf32> to vector<64x32xbf16>
    %43 = arith.truncf %41 : vector<32x32xf32> to vector<32x32xbf16>
    %cst_21 = arith.constant dense<0.000000e+00> : vector<64x32xf32>
    %44 = tpu.matmul %42, %43, %cst_21 {dimension_numbers = #tpu.dot_dimension_numbers<[1], [1], [0], [0], [0, 0, 1, 0], [], []>} : vector<64x32xbf16>, vector<32x32xbf16>, vector<64x32xf32> -> vector<64x32xf32>
    %c0_22 = arith.constant 0 : index
    %c0_23 = arith.constant 0 : index
    %c0_24 = arith.constant 0 : index
    %45 = vector.load %arg7[%c0_22, %c0_23, %c0_24] : memref<3x3x32xf32, #tpu.memory_space<vmem>>, vector<3x3x32xf32>
    %c1_i32 = arith.constant 1 : i32
    %46 = tpu.dynamic_rotate %8 by %c1_i32 dim 0 : vector<64x32xf32>, i32 -> vector<64x32xf32>
    %c0_25 = arith.constant 0 : index
    %c0_26 = arith.constant 0 : index
    %47 = vector.load %arg11[%c0_25, %c0_26] : memref<64x1xf32, #tpu.memory_space<vmem>>, vector<64x1xf32>
    %48 = vector.broadcast %47 : vector<64x1xf32> to vector<64x32xf32>
    %49 = arith.mulf %46, %48 : vector<64x32xf32>
    %c63_i32 = arith.constant 63 : i32
    %50 = tpu.dynamic_rotate %8 by %c63_i32 dim 0 : vector<64x32xf32>, i32 -> vector<64x32xf32>
    %c0_27 = arith.constant 0 : index
    %c0_28 = arith.constant 0 : index
    %51 = vector.load %arg12[%c0_27, %c0_28] : memref<64x1xf32, #tpu.memory_space<vmem>>, vector<64x1xf32>
    %52 = vector.broadcast %51 : vector<64x1xf32> to vector<64x32xf32>
    %53 = arith.mulf %50, %52 : vector<64x32xf32>
    %54 = vector.extract_strided_slice %45 {offsets = [0, 0, 0], sizes = [1, 1, 32], strides = [1, 1, 1]} : vector<3x3x32xf32> to vector<1x1x32xf32>
    %55 = vector.shape_cast %54 : vector<1x1x32xf32> to vector<32xf32>
    %56 = vector.shape_cast %55 : vector<32xf32> to vector<1x32xf32>
    %57 = vector.broadcast %56 : vector<1x32xf32> to vector<64x32xf32>
    %58 = arith.mulf %49, %57 : vector<64x32xf32>
    %59 = vector.extract_strided_slice %45 {offsets = [0, 1, 0], sizes = [1, 1, 32], strides = [1, 1, 1]} : vector<3x3x32xf32> to vector<1x1x32xf32>
    %60 = vector.shape_cast %59 : vector<1x1x32xf32> to vector<32xf32>
    %61 = vector.shape_cast %60 : vector<32xf32> to vector<1x32xf32>
    %62 = vector.broadcast %61 : vector<1x32xf32> to vector<64x32xf32>
    %63 = arith.mulf %8, %62 : vector<64x32xf32>
    %64 = arith.addf %58, %63 : vector<64x32xf32>
    %65 = vector.extract_strided_slice %45 {offsets = [0, 2, 0], sizes = [1, 1, 32], strides = [1, 1, 1]} : vector<3x3x32xf32> to vector<1x1x32xf32>
    %66 = vector.shape_cast %65 : vector<1x1x32xf32> to vector<32xf32>
    %67 = vector.shape_cast %66 : vector<32xf32> to vector<1x32xf32>
    %68 = vector.broadcast %67 : vector<1x32xf32> to vector<64x32xf32>
    %69 = arith.mulf %53, %68 : vector<64x32xf32>
    %70 = arith.addf %64, %69 : vector<64x32xf32>
    %71 = vector.extract_strided_slice %45 {offsets = [1, 0, 0], sizes = [1, 1, 32], strides = [1, 1, 1]} : vector<3x3x32xf32> to vector<1x1x32xf32>
    %72 = vector.shape_cast %71 : vector<1x1x32xf32> to vector<32xf32>
    %73 = vector.shape_cast %72 : vector<32xf32> to vector<1x32xf32>
    %74 = vector.broadcast %73 : vector<1x32xf32> to vector<64x32xf32>
    %75 = arith.mulf %49, %74 : vector<64x32xf32>
    %76 = vector.extract_strided_slice %45 {offsets = [1, 1, 0], sizes = [1, 1, 32], strides = [1, 1, 1]} : vector<3x3x32xf32> to vector<1x1x32xf32>
    %77 = vector.shape_cast %76 : vector<1x1x32xf32> to vector<32xf32>
    %78 = vector.shape_cast %77 : vector<32xf32> to vector<1x32xf32>
    %79 = vector.broadcast %78 : vector<1x32xf32> to vector<64x32xf32>
    %80 = arith.mulf %8, %79 : vector<64x32xf32>
    %81 = arith.addf %75, %80 : vector<64x32xf32>
    %82 = vector.extract_strided_slice %45 {offsets = [1, 2, 0], sizes = [1, 1, 32], strides = [1, 1, 1]} : vector<3x3x32xf32> to vector<1x1x32xf32>
    %83 = vector.shape_cast %82 : vector<1x1x32xf32> to vector<32xf32>
    %84 = vector.shape_cast %83 : vector<32xf32> to vector<1x32xf32>
    %85 = vector.broadcast %84 : vector<1x32xf32> to vector<64x32xf32>
    %86 = arith.mulf %53, %85 : vector<64x32xf32>
    %87 = arith.addf %81, %86 : vector<64x32xf32>
    %88 = vector.extract_strided_slice %45 {offsets = [2, 0, 0], sizes = [1, 1, 32], strides = [1, 1, 1]} : vector<3x3x32xf32> to vector<1x1x32xf32>
    %89 = vector.shape_cast %88 : vector<1x1x32xf32> to vector<32xf32>
    %90 = vector.shape_cast %89 : vector<32xf32> to vector<1x32xf32>
    %91 = vector.broadcast %90 : vector<1x32xf32> to vector<64x32xf32>
    %92 = arith.mulf %49, %91 : vector<64x32xf32>
    %93 = vector.extract_strided_slice %45 {offsets = [2, 1, 0], sizes = [1, 1, 32], strides = [1, 1, 1]} : vector<3x3x32xf32> to vector<1x1x32xf32>
    %94 = vector.shape_cast %93 : vector<1x1x32xf32> to vector<32xf32>
    %95 = vector.shape_cast %94 : vector<32xf32> to vector<1x32xf32>
    %96 = vector.broadcast %95 : vector<1x32xf32> to vector<64x32xf32>
    %97 = arith.mulf %8, %96 : vector<64x32xf32>
    %98 = arith.addf %92, %97 : vector<64x32xf32>
    %99 = vector.extract_strided_slice %45 {offsets = [2, 2, 0], sizes = [1, 1, 32], strides = [1, 1, 1]} : vector<3x3x32xf32> to vector<1x1x32xf32>
    %100 = vector.shape_cast %99 : vector<1x1x32xf32> to vector<32xf32>
    %101 = vector.shape_cast %100 : vector<32xf32> to vector<1x32xf32>
    %102 = vector.broadcast %101 : vector<1x32xf32> to vector<64x32xf32>
    %103 = arith.mulf %53, %102 : vector<64x32xf32>
    %104 = arith.addf %98, %103 : vector<64x32xf32>
    %cst_29 = arith.constant 0.000000e+00 : f32
    %105 = vector.broadcast %cst_29 : f32 to vector<8x32xf32>
    %106 = vector.extract_strided_slice %70 {offsets = [0, 0], sizes = [56, 32], strides = [1, 1]} : vector<64x32xf32> to vector<56x32xf32>
    %107 = tpu.concatenate %105, %106 in 0 : vector<8x32xf32>, vector<56x32xf32> -> vector<64x32xf32>
    %108 = arith.addf %87, %107 : vector<64x32xf32>
    %109 = vector.extract_strided_slice %104 {offsets = [8, 0], sizes = [56, 32], strides = [1, 1]} : vector<64x32xf32> to vector<56x32xf32>
    %110 = tpu.concatenate %109, %105 in 0 : vector<56x32xf32>, vector<8x32xf32> -> vector<64x32xf32>
    %111 = arith.addf %108, %110 : vector<64x32xf32>
    %c0_30 = arith.constant 0 : index
    %c0_31 = arith.constant 0 : index
    %112 = vector.load %arg8[%c0_30, %c0_31] : memref<1x32xf32, #tpu.memory_space<vmem>>, vector<1x32xf32>
    %113 = vector.broadcast %112 : vector<1x32xf32> to vector<64x32xf32>
    %114 = arith.addf %111, %113 : vector<64x32xf32>
    %c0_32 = arith.constant 0 : index
    %c0_33 = arith.constant 0 : index
    %115 = vector.load %arg9[%c0_32, %c0_33] : memref<1x32xf32, #tpu.memory_space<vmem>>, vector<1x32xf32>
    %116 = vector.broadcast %115 : vector<1x32xf32> to vector<64x32xf32>
    %117 = arith.mulf %114, %116 : vector<64x32xf32>
    %c0_34 = arith.constant 0 : index
    %c0_35 = arith.constant 0 : index
    %118 = vector.load %arg10[%c0_34, %c0_35] : memref<1x32xf32, #tpu.memory_space<vmem>>, vector<1x32xf32>
    %119 = vector.broadcast %118 : vector<1x32xf32> to vector<64x32xf32>
    %120 = arith.addf %117, %119 : vector<64x32xf32>
    %cst_36 = arith.constant 5.000000e-01 : f32
    %121 = vector.broadcast %cst_36 : f32 to vector<64x32xf32>
    %122 = arith.mulf %121, %120 : vector<64x32xf32>
    %cst_37 = arith.constant 0.707106769 : f32
    %123 = vector.broadcast %cst_37 : f32 to vector<64x32xf32>
    %124 = arith.mulf %120, %123 : vector<64x32xf32>
    %125 = math.erf %124 : vector<64x32xf32>
    %cst_38 = arith.constant 1.000000e+00 : f32
    %126 = vector.broadcast %cst_38 : f32 to vector<64x32xf32>
    %127 = arith.addf %126, %125 : vector<64x32xf32>
    %128 = arith.mulf %122, %127 : vector<64x32xf32>
    %129 = arith.truncf %128 : vector<64x32xf32> to vector<64x32xbf16>
    %c0_39 = arith.constant 0 : index
    %c0_40 = arith.constant 0 : index
    %130 = vector.load %arg13[%c0_39, %c0_40] : memref<32x2xbf16, #tpu.memory_space<vmem>>, vector<32x2xbf16>
    %cst_41 = arith.constant dense<0.000000e+00> : vector<64x2xf32>
    %131 = tpu.matmul %129, %130, %cst_41 {dimension_numbers = #tpu.dot_dimension_numbers<[1], [0], [0], [1], [0, 0, 1, 1], [], []>} : vector<64x32xbf16>, vector<32x2xbf16>, vector<64x2xf32> -> vector<64x2xf32>
    %c0_42 = arith.constant 0 : index
    %c0_43 = arith.constant 0 : index
    %132 = vector.load %arg14[%c0_42, %c0_43] : memref<1x2xf32, #tpu.memory_space<vmem>>, vector<1x2xf32>
    %133 = vector.broadcast %132 : vector<1x2xf32> to vector<64x2xf32>
    %134 = arith.addf %131, %133 : vector<64x2xf32>
    %c0_44 = arith.constant 0 : index
    %c0_45 = arith.constant 0 : index
    %135 = vector.load %arg15[%c0_44, %c0_45] : memref<1x2xf32, #tpu.memory_space<vmem>>, vector<1x2xf32>
    %136 = vector.broadcast %135 : vector<1x2xf32> to vector<64x2xf32>
    %137 = arith.mulf %134, %136 : vector<64x2xf32>
    %c0_46 = arith.constant 0 : index
    %c0_47 = arith.constant 0 : index
    %138 = vector.load %arg16[%c0_46, %c0_47] : memref<1x2xf32, #tpu.memory_space<vmem>>, vector<1x2xf32>
    %139 = vector.broadcast %138 : vector<1x2xf32> to vector<64x2xf32>
    %140 = arith.addf %137, %139 : vector<64x2xf32>
    %cst_48 = arith.constant 5.000000e-01 : f32
    %141 = vector.broadcast %cst_48 : f32 to vector<64x2xf32>
    %142 = arith.mulf %141, %140 : vector<64x2xf32>
    %cst_49 = arith.constant 0.707106769 : f32
    %143 = vector.broadcast %cst_49 : f32 to vector<64x2xf32>
    %144 = arith.mulf %140, %143 : vector<64x2xf32>
    %145 = math.erf %144 : vector<64x2xf32>
    %cst_50 = arith.constant 1.000000e+00 : f32
    %146 = vector.broadcast %cst_50 : f32 to vector<64x2xf32>
    %147 = arith.addf %146, %145 : vector<64x2xf32>
    %148 = arith.mulf %142, %147 : vector<64x2xf32>
    %c0_51 = arith.constant 0 : index
    %c0_52 = arith.constant 0 : index
    %149 = vector.load %arg17[%c0_51, %c0_52] : memref<1x2xf32, #tpu.memory_space<vmem>>, vector<1x2xf32>
    %150 = vector.broadcast %149 : vector<1x2xf32> to vector<64x2xf32>
    %151 = arith.mulf %148, %150 : vector<64x2xf32>
    %cst_53 = arith.constant dense<0.000000e+00> : vector<64xf32>
    %152 = vector.multi_reduction <add>, %151, %cst_53 [1] : vector<64x2xf32> to vector<64xf32>
    %153 = vector.shape_cast %152 : vector<64xf32> to vector<64x1xf32>
    %c0_54 = arith.constant 0 : index
    %c0_55 = arith.constant 0 : index
    %154 = vector.load %arg18[%c0_54, %c0_55] : memref<1x1xf32, #tpu.memory_space<vmem>>, vector<1x1xf32>
    %155 = vector.broadcast %154 : vector<1x1xf32> to vector<64x1xf32>
    %156 = arith.addf %153, %155 : vector<64x1xf32>
    %cst_56 = arith.constant dense<0.000000e+00> : vector<32xf32>
    %157 = vector.multi_reduction <add>, %44, %cst_56 [0] : vector<64x32xf32> to vector<32xf32>
    %158 = vector.shape_cast %157 : vector<32xf32> to vector<1x32xf32>
    %cst_57 = arith.constant 6.400000e+01 : f32
    %159 = vector.broadcast %cst_57 : f32 to vector<1x32xf32>
    %160 = arith.divf %158, %159 : vector<1x32xf32>
    %c0_58 = arith.constant 0 : index
    %c0_59 = arith.constant 0 : index
    %161 = vector.load %arg19[%c0_58, %c0_59] : memref<32x4xf32, #tpu.memory_space<vmem>>, vector<32x4xf32>
    %cst_60 = arith.constant dense<0.000000e+00> : vector<1x4xf32>
    %162 = tpu.matmul %160, %161, %cst_60 {dimension_numbers = #tpu.dot_dimension_numbers<[1], [0], [0], [1], [0, 0, 1, 1], [], []>} : vector<1x32xf32>, vector<32x4xf32>, vector<1x4xf32> -> vector<1x4xf32>
    %c0_61 = arith.constant 0 : index
    %c0_62 = arith.constant 0 : index
    %163 = vector.load %arg20[%c0_61, %c0_62] : memref<1x4xf32, #tpu.memory_space<vmem>>, vector<1x4xf32>
    %164 = arith.addf %162, %163 : vector<1x4xf32>
    %c0_63 = arith.constant 0 : index
    %c0_64 = arith.constant 0 : index
    %165 = vector.load %arg21[%c0_63, %c0_64] : memref<1x4xf32, #tpu.memory_space<vmem>>, vector<1x4xf32>
    %166 = arith.mulf %164, %165 : vector<1x4xf32>
    %c0_65 = arith.constant 0 : index
    %c0_66 = arith.constant 0 : index
    %167 = vector.load %arg22[%c0_65, %c0_66] : memref<1x4xf32, #tpu.memory_space<vmem>>, vector<1x4xf32>
    %168 = arith.addf %166, %167 : vector<1x4xf32>
    %cst_67 = arith.constant 5.000000e-01 : f32
    %169 = vector.broadcast %cst_67 : f32 to vector<1x4xf32>
    %170 = arith.mulf %169, %168 : vector<1x4xf32>
    %cst_68 = arith.constant 0.707106769 : f32
    %171 = vector.broadcast %cst_68 : f32 to vector<1x4xf32>
    %172 = arith.mulf %168, %171 : vector<1x4xf32>
    %173 = math.erf %172 : vector<1x4xf32>
    %cst_69 = arith.constant 1.000000e+00 : f32
    %174 = vector.broadcast %cst_69 : f32 to vector<1x4xf32>
    %175 = arith.addf %174, %173 : vector<1x4xf32>
    %176 = arith.mulf %170, %175 : vector<1x4xf32>
    %c0_70 = arith.constant 0 : index
    %c0_71 = arith.constant 0 : index
    %177 = vector.load %arg23[%c0_70, %c0_71] : memref<4x32xf32, #tpu.memory_space<vmem>>, vector<4x32xf32>
    %cst_72 = arith.constant dense<0.000000e+00> : vector<1x32xf32>
    %178 = tpu.matmul %176, %177, %cst_72 {dimension_numbers = #tpu.dot_dimension_numbers<[1], [0], [0], [1], [0, 0, 1, 1], [], []>} : vector<1x4xf32>, vector<4x32xf32>, vector<1x32xf32> -> vector<1x32xf32>
    %c0_73 = arith.constant 0 : index
    %c0_74 = arith.constant 0 : index
    %179 = vector.load %arg24[%c0_73, %c0_74] : memref<1x32xf32, #tpu.memory_space<vmem>>, vector<1x32xf32>
    %180 = arith.addf %178, %179 : vector<1x32xf32>
    %181 = arith.negf %156 : vector<64x1xf32>
    %182 = math.exp %181 : vector<64x1xf32>
    %cst_75 = arith.constant 1.000000e+00 : f32
    %183 = vector.broadcast %cst_75 : f32 to vector<64x1xf32>
    %184 = arith.addf %183, %182 : vector<64x1xf32>
    %185 = arith.divf %183, %184 : vector<64x1xf32>
    %186 = vector.broadcast %185 : vector<64x1xf32> to vector<64x32xf32>
    %187 = arith.mulf %44, %186 : vector<64x32xf32>
    %188 = arith.negf %180 : vector<1x32xf32>
    %189 = math.exp %188 : vector<1x32xf32>
    %cst_76 = arith.constant 1.000000e+00 : f32
    %190 = vector.broadcast %cst_76 : f32 to vector<1x32xf32>
    %191 = arith.addf %190, %189 : vector<1x32xf32>
    %192 = arith.divf %190, %191 : vector<1x32xf32>
    %193 = vector.broadcast %192 : vector<1x32xf32> to vector<64x32xf32>
    %194 = arith.mulf %128, %193 : vector<64x32xf32>
    %195 = arith.addf %187, %194 : vector<64x32xf32>
    %196 = arith.truncf %195 : vector<64x32xf32> to vector<64x32xbf16>
    %c0_77 = arith.constant 0 : index
    %c0_78 = arith.constant 0 : index
    %197 = vector.load %arg25[%c0_77, %c0_78] : memref<32x32xbf16, #tpu.memory_space<vmem>>, vector<32x32xbf16>
    %cst_79 = arith.constant dense<0.000000e+00> : vector<64x32xf32>
    %198 = tpu.matmul %196, %197, %cst_79 {dimension_numbers = #tpu.dot_dimension_numbers<[1], [0], [0], [1], [0, 0, 1, 1], [], []>} : vector<64x32xbf16>, vector<32x32xbf16>, vector<64x32xf32> -> vector<64x32xf32>
    %c0_80 = arith.constant 0 : index
    %c0_81 = arith.constant 0 : index
    %199 = vector.load %arg26[%c0_80, %c0_81] : memref<1x32xf32, #tpu.memory_space<vmem>>, vector<1x32xf32>
    %200 = vector.broadcast %199 : vector<1x32xf32> to vector<64x32xf32>
    %201 = arith.addf %198, %200 : vector<64x32xf32>
    %c0_82 = arith.constant 0 : index
    %c0_83 = arith.constant 0 : index
    %c0_84 = arith.constant 0 : index
    %202 = vector.load %arg27[%c0_82, %c0_83, %c0_84] : memref<1x64x32xf32, #tpu.memory_space<vmem>>, vector<1x64x32xf32>
    %203 = vector.shape_cast %202 : vector<1x64x32xf32> to vector<64x32xf32>
    %204 = vector.shape_cast %201 : vector<64x32xf32> to vector<1x64x32xf32>
    tpu.vector_store %arg27[%c0_82, %c0_83, %c0_84], %204 {strides = array<i32>} : memref<1x64x32xf32, #tpu.memory_space<vmem>>, vector<1x64x32xf32>,
    return
  }
  func.func @transform_0(%arg0: i32) -> (i32, i32, i32) {
    %c0_i32 = arith.constant 0 : i32
    %c0_i32_0 = arith.constant 0 : i32
    %c0_i32_1 = arith.constant 0 : i32
    return %arg0, %c0_i32, %c0_i32_0 : i32, i32, i32
  }
  func.func @transform_1(%arg0: i32) -> (i32, i32) {
    %c0_i32 = arith.constant 0 : i32
    %c0_i32_0 = arith.constant 0 : i32
    %c0_i32_1 = arith.constant 0 : i32
    return %c0_i32, %c0_i32_0 : i32, i32
  }
  func.func @transform_2(%arg0: i32) -> (i32, i32) {
    %c0_i32 = arith.constant 0 : i32
    %c0_i32_0 = arith.constant 0 : i32
    %c0_i32_1 = arith.constant 0 : i32
    return %c0_i32, %c0_i32_0 : i32, i32
  }
  func.func @transform_3(%arg0: i32) -> (i32, i32) {
    %c0_i32 = arith.constant 0 : i32
    %c0_i32_0 = arith.constant 0 : i32
    %c0_i32_1 = arith.constant 0 : i32
    return %c0_i32, %c0_i32_0 : i32, i32
  }
  func.func @transform_4(%arg0: i32) -> (i32, i32) {
    %c0_i32 = arith.constant 0 : i32
    %c0_i32_0 = arith.constant 0 : i32
    %c0_i32_1 = arith.constant 0 : i32
    return %c0_i32, %c0_i32_0 : i32, i32
  }
  func.func @transform_5(%arg0: i32) -> (i32, i32) {
    %c0_i32 = arith.constant 0 : i32
    %c0_i32_0 = arith.constant 0 : i32
    %c0_i32_1 = arith.constant 0 : i32
    return %c0_i32, %c0_i32_0 : i32, i32
  }
  func.func @transform_6(%arg0: i32) -> (i32, i32, i32) {
    %c0_i32 = arith.constant 0 : i32
    %c0_i32_0 = arith.constant 0 : i32
    %c0_i32_1 = arith.constant 0 : i32
    %c0_i32_2 = arith.constant 0 : i32
    return %c0_i32, %c0_i32_0, %c0_i32_1 : i32, i32, i32
  }
  func.func @transform_7(%arg0: i32) -> (i32, i32) {
    %c0_i32 = arith.constant 0 : i32
    %c0_i32_0 = arith.constant 0 : i32
    %c0_i32_1 = arith.constant 0 : i32
    return %c0_i32, %c0_i32_0 : i32, i32
  }
  func.func @transform_8(%arg0: i32) -> (i32, i32) {
    %c0_i32 = arith.constant 0 : i32
    %c0_i32_0 = arith.constant 0 : i32
    %c0_i32_1 = arith.constant 0 : i32
    return %c0_i32, %c0_i32_0 : i32, i32
  }
  func.func @transform_9(%arg0: i32) -> (i32, i32) {
    %c0_i32 = arith.constant 0 : i32
    %c0_i32_0 = arith.constant 0 : i32
    %c0_i32_1 = arith.constant 0 : i32
    return %c0_i32, %c0_i32_0 : i32, i32
  }
  func.func @transform_10(%arg0: i32) -> (i32, i32) {
    %c0_i32 = arith.constant 0 : i32
    %c0_i32_0 = arith.constant 0 : i32
    %c0_i32_1 = arith.constant 0 : i32
    return %c0_i32, %c0_i32_0 : i32, i32
  }
  func.func @transform_11(%arg0: i32) -> (i32, i32) {
    %c0_i32 = arith.constant 0 : i32
    %c0_i32_0 = arith.constant 0 : i32
    %c0_i32_1 = arith.constant 0 : i32
    return %c0_i32, %c0_i32_0 : i32, i32
  }
  func.func @transform_12(%arg0: i32) -> (i32, i32) {
    %c0_i32 = arith.constant 0 : i32
    %c0_i32_0 = arith.constant 0 : i32
    %c0_i32_1 = arith.constant 0 : i32
    return %c0_i32, %c0_i32_0 : i32, i32
  }
  func.func @transform_13(%arg0: i32) -> (i32, i32) {
    %c0_i32 = arith.constant 0 : i32
    %c0_i32_0 = arith.constant 0 : i32
    %c0_i32_1 = arith.constant 0 : i32
    return %c0_i32, %c0_i32_0 : i32, i32
  }
  func.func @transform_14(%arg0: i32) -> (i32, i32) {
    %c0_i32 = arith.constant 0 : i32
    %c0_i32_0 = arith.constant 0 : i32
    %c0_i32_1 = arith.constant 0 : i32
    return %c0_i32, %c0_i32_0 : i32, i32
  }
  func.func @transform_15(%arg0: i32) -> (i32, i32) {
    %c0_i32 = arith.constant 0 : i32
    %c0_i32_0 = arith.constant 0 : i32
    %c0_i32_1 = arith.constant 0 : i32
    return %c0_i32, %c0_i32_0 : i32, i32
  }
  func.func @transform_16(%arg0: i32) -> (i32, i32) {
    %c0_i32 = arith.constant 0 : i32
    %c0_i32_0 = arith.constant 0 : i32
    %c0_i32_1 = arith.constant 0 : i32
    return %c0_i32, %c0_i32_0 : i32, i32
  }
  func.func @transform_17(%arg0: i32) -> (i32, i32) {
    %c0_i32 = arith.constant 0 : i32
    %c0_i32_0 = arith.constant 0 : i32
    %c0_i32_1 = arith.constant 0 : i32
    return %c0_i32, %c0_i32_0 : i32, i32
  }
  func.func @transform_18(%arg0: i32) -> (i32, i32) {
    %c0_i32 = arith.constant 0 : i32
    %c0_i32_0 = arith.constant 0 : i32
    %c0_i32_1 = arith.constant 0 : i32
    return %c0_i32, %c0_i32_0 : i32, i32
  }
  func.func @transform_19(%arg0: i32) -> (i32, i32) {
    %c0_i32 = arith.constant 0 : i32
    %c0_i32_0 = arith.constant 0 : i32
    %c0_i32_1 = arith.constant 0 : i32
    return %c0_i32, %c0_i32_0 : i32, i32
  }
  func.func @transform_20(%arg0: i32) -> (i32, i32) {
    %c0_i32 = arith.constant 0 : i32
    %c0_i32_0 = arith.constant 0 : i32
    %c0_i32_1 = arith.constant 0 : i32
    return %c0_i32, %c0_i32_0 : i32, i32
  }
  func.func @transform_21(%arg0: i32) -> (i32, i32) {
    %c0_i32 = arith.constant 0 : i32
    %c0_i32_0 = arith.constant 0 : i32
    %c0_i32_1 = arith.constant 0 : i32
    return %c0_i32, %c0_i32_0 : i32, i32
  }
  func.func @transform_22(%arg0: i32) -> (i32, i32) {
    %c0_i32 = arith.constant 0 : i32
    %c0_i32_0 = arith.constant 0 : i32
    %c0_i32_1 = arith.constant 0 : i32
    return %c0_i32, %c0_i32_0 : i32, i32
  }
  func.func @transform_23(%arg0: i32) -> (i32, i32) {
    %c0_i32 = arith.constant 0 : i32
    %c0_i32_0 = arith.constant 0 : i32
    %c0_i32_1 = arith.constant 0 : i32
    return %c0_i32, %c0_i32_0 : i32, i32
  }
  func.func @transform_24(%arg0: i32) -> (i32, i32) {
    %c0_i32 = arith.constant 0 : i32
    %c0_i32_0 = arith.constant 0 : i32
    %c0_i32_1 = arith.constant 0 : i32
    return %c0_i32, %c0_i32_0 : i32, i32
  }
  func.func @transform_25(%arg0: i32) -> (i32, i32) {
    %c0_i32 = arith.constant 0 : i32
    %c0_i32_0 = arith.constant 0 : i32
    %c0_i32_1 = arith.constant 0 : i32
    return %c0_i32, %c0_i32_0 : i32, i32
  }
  func.func @transform_26(%arg0: i32) -> (i32, i32, i32) {
    %c0_i32 = arith.constant 0 : i32
    %c0_i32_0 = arith.constant 0 : i32
    %c0_i32_1 = arith.constant 0 : i32
    return %arg0, %c0_i32, %c0_i32_0 : i32, i32, i32
  }
}

</mosaic_0001>

<llo_original>
// kernel: adaptive_channel_attention.1
$region0: #{adaptive_channel_attention.1}
  #allocation0 [shape = 'u32[]', space=smem, size = 0x4, offset = 0x4, fixed_abs, tag = 'smem constant byte address 0x4 - core index']
  #allocation1 [shape = 'u32[72,128]{1,0:T(1,128)}', space=vmem, size = 0x9000, scoped, tag = 'internal scratch']
  #allocation2 [shape = 'f32[1,1]{1,0:T(1,128)S(1)}', space=vmem, size = 0x200, scoped, tag = 'scoped memory for adaptive_channel_attention.1']
  %s0 = inlined_call_operand.vmem [shape: f32[2,64,32], index: 0, kind: input, shape index: {}]
  %s1 = inlined_call_operand.vmem [shape: bf16[32,32], index: 1, kind: input, shape index: {}]
  %s2 = inlined_call_operand.vmem [shape: bf16[32,32], index: 2, kind: input, shape index: {}]
  %s3 = inlined_call_operand.vmem [shape: bf16[32,32], index: 3, kind: input, shape index: {}]
  %s4 = inlined_call_operand.vmem [shape: f32[1,32], index: 4, kind: input, shape index: {}]
  %s5 = inlined_call_operand.vmem [shape: f32[32,32], index: 5, kind: input, shape index: {}]
  %s6 = inlined_call_operand.vmem [shape: f32[3,3,32], index: 6, kind: input, shape index: {}]
  %s7 = inlined_call_operand.vmem [shape: f32[1,32], index: 7, kind: input, shape index: {}]
  %s8 = inlined_call_operand.vmem [shape: f32[1,32], index: 8, kind: input, shape index: {}]
  %s9 = inlined_call_operand.vmem [shape: f32[1,32], index: 9, kind: input, shape index: {}]
  %s10 = inlined_call_operand.vmem [shape: f32[64,1], index: 10, kind: input, shape index: {}]
  %s11 = inlined_call_operand.vmem [shape: f32[64,1], index: 11, kind: input, shape index: {}]
  %s12 = inlined_call_operand.vmem [shape: bf16[32,2], index: 12, kind: input, shape index: {}]
  %s13 = inlined_call_operand.vmem [shape: f32[1,2], index: 13, kind: input, shape index: {}]
  %s14 = inlined_call_operand.vmem [shape: f32[1,2], index: 14, kind: input, shape index: {}]
  %s15 = inlined_call_operand.vmem [shape: f32[1,2], index: 15, kind: input, shape index: {}]
  %s16 = inlined_call_operand.vmem [shape: f32[1,2], index: 16, kind: input, shape index: {}]
  %s17 = inlined_call_operand.<no memory space> [shape: f32[1,1], index: 17, kind: input, shape index: {}]
  %s18 = inlined_call_operand.vmem [shape: f32[32,4], index: 18, kind: input, shape index: {}]
  %s19 = inlined_call_operand.vmem [shape: f32[1,4], index: 19, kind: input, shape index: {}]
  %s20 = inlined_call_operand.vmem [shape: f32[1,4], index: 20, kind: input, shape index: {}]
  %s21 = inlined_call_operand.vmem [shape: f32[1,4], index: 21, kind: input, shape index: {}]
  %s22 = inlined_call_operand.vmem [shape: f32[4,32], index: 22, kind: input, shape index: {}]
  %s23 = inlined_call_operand.vmem [shape: f32[1,32], index: 23, kind: input, shape index: {}]
  %s24 = inlined_call_operand.vmem [shape: bf16[32,32], index: 24, kind: input, shape index: {}]
  %s25 = inlined_call_operand.vmem [shape: f32[1,32], index: 25, kind: input, shape index: {}]
  %s26 = inlined_call_operand.vmem [shape: f32[2,64,32], index: 26, kind: output, shape index: {}]
  %s27 = sld [smem:[#allocation0]]
  $region137: #{adaptive_channel_attention.1} parent=0
    _
  %s29 = ssub.s32 1, %s27
  %s30 = scalar_select 0, %s29, %s27
  %v31 = vstv %s17
  %32 = vst [vmem:[#allocation2] sm:$0x1] %v31
  loop: start=0, step=1, limit=4
  $region2: #{adaptive_channel_attention.1} parent=0 // loop_pre_header
    _
  $region3: #{adaptive_channel_attention.1} parent=0 // loop_header
    %s34 = sphi 0, %s38
    %p35 = scmp.ge.s32.totalorder %s34, 4
    %s44 = sphi 0, %s46
    %s47 = sphi 0, %s44
    %s48 = sphi 0, %s47
    %s64 = sphi 0, %s48
    %s68 = sphi 0, %s68
    %s70 = sphi 0, %s68
    %s71 = sphi 0, %s70
    %s85 = sphi 0, %s71
    %s89 = sphi 0, %s89
    %s91 = sphi 0, %s89
    %s92 = sphi 0, %s91
    %s106 = sphi 0, %s92
    %s110 = sphi 0, %s110
    %s112 = sphi 0, %s110
    %s113 = sphi 0, %s112
    %s127 = sphi 0, %s113
    %s131 = sphi 0, %s131
    %s133 = sphi 0, %s131
    %s134 = sphi 0, %s133
    %s148 = sphi 0, %s134
    %s152 = sphi 0, %s152
    %s154 = sphi 0, %s152
    %s155 = sphi 0, %s154
    %s169 = sphi 0, %s155
    %s173 = sphi 0, %s173
    %s175 = sphi 0, %s173
    %s176 = sphi 0, %s175
    %s190 = sphi 0, %s176
    %s194 = sphi 0, %s194
    %s196 = sphi 0, %s194
    %s197 = sphi 0, %s196
    %s211 = sphi 0, %s197
    %s215 = sphi 0, %s215
    %s217 = sphi 0, %s215
    %s218 = sphi 0, %s217
    %s232 = sphi 0, %s218
    %s236 = sphi 0, %s236
    %s238 = sphi 0, %s236
    %s239 = sphi 0, %s238
    %s253 = sphi 0, %s239
    %s257 = sphi 0, %s257
    %s259 = sphi 0, %s257
    %s260 = sphi 0, %s259
    %s274 = sphi 0, %s260
    %s278 = sphi 0, %s278
    %s280 = sphi 0, %s278
    %s281 = sphi 0, %s280
    %s295 = sphi 0, %s281
    %s299 = sphi 0, %s299
    %s301 = sphi 0, %s299
    %s302 = sphi 0, %s301
    %s316 = sphi 0, %s302
    %s320 = sphi 0, %s320
    %s322 = sphi 0, %s320
    %s323 = sphi 0, %s322
    %s337 = sphi 0, %s323
    %s341 = sphi 0, %s341
    %s343 = sphi 0, %s341
    %s344 = sphi 0, %s343
    %s358 = sphi 0, %s344
    %s362 = sphi 0, %s362
    %s364 = sphi 0, %s362
    %s365 = sphi 0, %s364
    %s379 = sphi 0, %s365
    %s383 = sphi 0, %s383
    %s385 = sphi 0, %s383
    %s386 = sphi 0, %s385
    %s400 = sphi 0, %s386
    %s404 = sphi 0, %s404
    %s406 = sphi 0, %s404
    %s407 = sphi 0, %s406
    %s421 = sphi 0, %s407
    %s425 = sphi 0, %s425
    %s427 = sphi 0, %s425
    %s428 = sphi 0, %s427
    %s442 = sphi 0, %s428
    %s446 = sphi 0, %s446
    %s448 = sphi 0, %s446
    %s449 = sphi 0, %s448
    %s463 = sphi 0, %s449
    %s467 = sphi 0, %s467
    %s469 = sphi 0, %s467
    %s470 = sphi 0, %s469
    %s484 = sphi 0, %s470
    %s488 = sphi 0, %s488
    %s490 = sphi 0, %s488
    %s491 = sphi 0, %s490
    %s505 = sphi 0, %s491
    %s509 = sphi 0, %s509
    %s511 = sphi 0, %s509
    %s512 = sphi 0, %s511
    %s526 = sphi 0, %s512
    %s530 = sphi 0, %s530
    %s532 = sphi 0, %s530
    %s533 = sphi 0, %s532
    %s547 = sphi 0, %s533
    %s551 = sphi 0, %s551
    %s553 = sphi 0, %s551
    %s554 = sphi 0, %s553
    %s568 = sphi 0, %s554
    %s572 = sphi 0, %s572
    %s574 = sphi 0, %s572
    %s575 = sphi 0, %s574
    %s589 = sphi 0, %s575
    %s595 = sphi 0, %s597
    %s598 = sphi 0, %s595
    %s599 = sphi 0, %s598
    %s615 = sphi 0, %s599
  $region4: #{adaptive_channel_attention.1} parent=0 // loop_header_branch
    %37 = sbr.rel (%p35) target = $region8
  $region5: #{adaptive_channel_attention.1} parent=0 // loop_body
    %s39 = ssub.s32 %s34, 1
    %s40 = ssub.s32 %s34, 2
    %s41 = sadd.s32 %s34, 1
    %s42 = ssub.s32 %s34, %s41
    %p43 = scmp.eq.s32.totalorder %s42, 0
    %s45 = sadd.s32 %s44, 1
    %s46 = scalar_select %p43, %s44, %s45
    %p49 = pneg %p43
    %p50 = scmp.eq.s32.totalorder %s34, 1
    %p51 = por %p49, %p50
    %p52 = scmp.ne.s32.totalorder %s44, %s47
    %p53 = scmp.eq.s32.totalorder %s34, 0
    %p54 = por %p52, %p53
    %p55 = scmp.ne.s32.totalorder %s44, %s47
    %p56 = scmp.eq.s32.totalorder %s39, 1
    %p57 = por %p55, %p56
    %p58 = scmp.ne.s32.totalorder %s47, %s48
    %p59 = scmp.eq.s32.totalorder %s39, 0
    %p60 = por %p58, %p59
    %p61 = scmp.ne.s32.totalorder %s47, %s48
    %p62 = scmp.eq.s32.totalorder %s40, 1
    %p63 = por %p61, %p62
    %p65 = scmp.ne.s32.totalorder %s48, %s64
    %p66 = scmp.eq.s32.totalorder %s40, 0
    %p67 = por %p65, %p66
    %s69 = sadd.s32 %s68, 1
    %p72 = scmp.eq.s32.totalorder %s34, 1
    %p73 = scmp.ne.s32.totalorder %s68, %s70
    %p74 = scmp.eq.s32.totalorder %s34, 0
    %p75 = por %p73, %p74
    %p76 = scmp.ne.s32.totalorder %s68, %s70
    %p77 = scmp.eq.s32.totalorder %s39, 1
    %p78 = por %p76, %p77
    %p79 = scmp.ne.s32.totalorder %s70, %s71
    %p80 = scmp.eq.s32.totalorder %s39, 0
    %p81 = por %p79, %p80
    %p82 = scmp.ne.s32.totalorder %s70, %s71
    %p83 = scmp.eq.s32.totalorder %s40, 1
    %p84 = por %p82, %p83
    %p86 = scmp.ne.s32.totalorder %s71, %s85
    %p87 = scmp.eq.s32.totalorder %s40, 0
    %p88 = por %p86, %p87
    %s90 = sadd.s32 %s89, 1
    %p93 = scmp.eq.s32.totalorder %s34, 1
    %p94 = scmp.ne.s32.totalorder %s89, %s91
    %p95 = scmp.eq.s32.totalorder %s34, 0
    %p96 = por %p94, %p95
    %p97 = scmp.ne.s32.totalorder %s89, %s91
    %p98 = scmp.eq.s32.totalorder %s39, 1
    %p99 = por %p97, %p98
    %p100 = scmp.ne.s32.totalorder %s91, %s92
    %p101 = scmp.eq.s32.totalorder %s39, 0
    %p102 = por %p100, %p101
    %p103 = scmp.ne.s32.totalorder %s91, %s92
    %p104 = scmp.eq.s32.totalorder %s40, 1
    %p105 = por %p103, %p104
    %p107 = scmp.ne.s32.totalorder %s92, %s106
    %p108 = scmp.eq.s32.totalorder %s40, 0
    %p109 = por %p107, %p108
    %s111 = sadd.s32 %s110, 1
    %p114 = scmp.eq.s32.totalorder %s34, 1
    %p115 = scmp.ne.s32.totalorder %s110, %s112
    %p116 = scmp.eq.s32.totalorder %s34, 0
    %p117 = por %p115, %p116
    %p118 = scmp.ne.s32.totalorder %s110, %s112
    %p119 = scmp.eq.s32.totalorder %s39, 1
    %p120 = por %p118, %p119
    %p121 = scmp.ne.s32.totalorder %s112, %s113
    %p122 = scmp.eq.s32.totalorder %s39, 0
    %p123 = por %p121, %p122
    %p124 = scmp.ne.s32.totalorder %s112, %s113
    %p125 = scmp.eq.s32.totalorder %s40, 1
    %p126 = por %p124, %p125
    %p128 = scmp.ne.s32.totalorder %s113, %s127
    %p129 = scmp.eq.s32.totalorder %s40, 0
    %p130 = por %p128, %p129
    %s132 = sadd.s32 %s131, 1
    %p135 = scmp.eq.s32.totalorder %s34, 1
    %p136 = scmp.ne.s32.totalorder %s131, %s133
    %p137 = scmp.eq.s32.totalorder %s34, 0
    %p138 = por %p136, %p137
    %p139 = scmp.ne.s32.totalorder %s131, %s133
    %p140 = scmp.eq.s32.totalorder %s39, 1
    %p141 = por %p139, %p140
    %p142 = scmp.ne.s32.totalorder %s133, %s134
    %p143 = scmp.eq.s32.totalorder %s39, 0
    %p144 = por %p142, %p143
    %p145 = scmp.ne.s32.totalorder %s133, %s134
    %p146 = scmp.eq.s32.totalorder %s40, 1
    %p147 = por %p145, %p146
    %p149 = scmp.ne.s32.totalorder %s134, %s148
    %p150 = scmp.eq.s32.totalorder %s40, 0
    %p151 = por %p149, %p150
    %s153 = sadd.s32 %s152, 1
    %p156 = scmp.eq.s32.totalorder %s34, 1
    %p157 = scmp.ne.s32.totalorder %s152, %s154
    %p158 = scmp.eq.s32.totalorder %s34, 0
    %p159 = por %p157, %p158
    %p160 = scmp.ne.s32.totalorder %s152, %s154
    %p161 = scmp.eq.s32.totalorder %s39, 1
    %p162 = por %p160, %p161
    %p163 = scmp.ne.s32.totalorder %s154, %s155
    %p164 = scmp.eq.s32.totalorder %s39, 0
    %p165 = por %p163, %p164
    %p166 = scmp.ne.s32.totalorder %s154, %s155
    %p167 = scmp.eq.s32.totalorder %s40, 1
    %p168 = por %p166, %p167
    %p170 = scmp.ne.s32.totalorder %s155, %s169
    %p171 = scmp.eq.s32.totalorder %s40, 0
    %p172 = por %p170, %p171
    %s174 = sadd.s32 %s173, 1
    %p177 = scmp.eq.s32.totalorder %s34, 1
    %p178 = scmp.ne.s32.totalorder %s173, %s175
    %p179 = scmp.eq.s32.totalorder %s34, 0
    %p180 = por %p178, %p179
    %p181 = scmp.ne.s32.totalorder %s173, %s175
    %p182 = scmp.eq.s32.totalorder %s39, 1
    %p183 = por %p181, %p182
    %p184 = scmp.ne.s32.totalorder %s175, %s176
    %p185 = scmp.eq.s32.totalorder %s39, 0
    %p186 = por %p184, %p185
    %p187 = scmp.ne.s32.totalorder %s175, %s176
    %p188 = scmp.eq.s32.totalorder %s40, 1
    %p189 = por %p187, %p188
    %p191 = scmp.ne.s32.totalorder %s176, %s190
    %p192 = scmp.eq.s32.totalorder %s40, 0
    %p193 = por %p191, %p192
    %s195 = sadd.s32 %s194, 1
    %p198 = scmp.eq.s32.totalorder %s34, 1
    %p199 = scmp.ne.s32.totalorder %s194, %s196
    %p200 = scmp.eq.s32.totalorder %s34, 0
    %p201 = por %p199, %p200
    %p202 = scmp.ne.s32.totalorder %s194, %s196
    %p203 = scmp.eq.s32.totalorder %s39, 1
    %p204 = por %p202, %p203
    %p205 = scmp.ne.s32.totalorder %s196, %s197
    %p206 = scmp.eq.s32.totalorder %s39, 0
    %p207 = por %p205, %p206
    %p208 = scmp.ne.s32.totalorder %s196, %s197
    %p209 = scmp.eq.s32.totalorder %s40, 1
    %p210 = por %p208, %p209
    %p212 = scmp.ne.s32.totalorder %s197, %s211
    %p213 = scmp.eq.s32.totalorder %s40, 0
    %p214 = por %p212, %p213
    %s216 = sadd.s32 %s215, 1
    %p219 = scmp.eq.s32.totalorder %s34, 1
    %p220 = scmp.ne.s32.totalorder %s215, %s217
    %p221 = scmp.eq.s32.totalorder %s34, 0
    %p222 = por %p220, %p221
    %p223 = scmp.ne.s32.totalorder %s215, %s217
    %p224 = scmp.eq.s32.totalorder %s39, 1
    %p225 = por %p223, %p224
    %p226 = scmp.ne.s32.totalorder %s217, %s218
    %p227 = scmp.eq.s32.totalorder %s39, 0
    %p228 = por %p226, %p227
    %p229 = scmp.ne.s32.totalorder %s217, %s218
    %p230 = scmp.eq.s32.totalorder %s40, 1
    %p231 = por %p229, %p230
    %p233 = scmp.ne.s32.totalorder %s218, %s232
    %p234 = scmp.eq.s32.totalorder %s40, 0
    %p235 = por %p233, %p234
    %s237 = sadd.s32 %s236, 1
    %p240 = scmp.eq.s32.totalorder %s34, 1
    %p241 = scmp.ne.s32.totalorder %s236, %s238
    %p242 = scmp.eq.s32.totalorder %s34, 0
    %p243 = por %p241, %p242
    %p244 = scmp.ne.s32.totalorder %s236, %s238
    %p245 = scmp.eq.s32.totalorder %s39, 1
    %p246 = por %p244, %p245
    %p247 = scmp.ne.s32.totalorder %s238, %s239
    %p248 = scmp.eq.s32.totalorder %s39, 0
    %p249 = por %p247, %p248
    %p250 = scmp.ne.s32.totalorder %s238, %s239
    %p251 = scmp.eq.s32.totalorder %s40, 1
    %p252 = por %p250, %p251
    %p254 = scmp.ne.s32.totalorder %s239, %s253
    %p255 = scmp.eq.s32.totalorder %s40, 0
    %p256 = por %p254, %p255
    %s258 = sadd.s32 %s257, 1
    %p261 = scmp.eq.s32.totalorder %s34, 1
    %p262 = scmp.ne.s32.totalorder %s257, %s259
    %p263 = scmp.eq.s32.totalorder %s34, 0
    %p264 = por %p262, %p263
    %p265 = scmp.ne.s32.totalorder %s257, %s259
    %p266 = scmp.eq.s32.totalorder %s39, 1
    %p267 = por %p265, %p266
    %p268 = scmp.ne.s32.totalorder %s259, %s260
    %p269 = scmp.eq.s32.totalorder %s39, 0
    %p270 = por %p268, %p269
    %p271 = scmp.ne.s32.totalorder %s259, %s260
    %p272 = scmp.eq.s32.totalorder %s40, 1
    %p273 = por %p271, %p272
    %p275 = scmp.ne.s32.totalorder %s260, %s274
    %p276 = scmp.eq.s32.totalorder %s40, 0
    %p277 = por %p275, %p276
    %s279 = sadd.s32 %s278, 1
    %p282 = scmp.eq.s32.totalorder %s34, 1
    %p283 = scmp.ne.s32.totalorder %s278, %s280
    %p284 = scmp.eq.s32.totalorder %s34, 0
    %p285 = por %p283, %p284
    %p286 = scmp.ne.s32.totalorder %s278, %s280
    %p287 = scmp.eq.s32.totalorder %s39, 1
    %p288 = por %p286, %p287
    %p289 = scmp.ne.s32.totalorder %s280, %s281
    %p290 = scmp.eq.s32.totalorder %s39, 0
    %p291 = por %p289, %p290
    %p292 = scmp.ne.s32.totalorder %s280, %s281
    %p293 = scmp.eq.s32.totalorder %s40, 1
    %p294 = por %p292, %p293
    %p296 = scmp.ne.s32.totalorder %s281, %s295
    %p297 = scmp.eq.s32.totalorder %s40, 0
    %p298 = por %p296, %p297
    %s300 = sadd.s32 %s299, 1
    %p303 = scmp.eq.s32.totalorder %s34, 1
    %p304 = scmp.ne.s32.totalorder %s299, %s301
    %p305 = scmp.eq.s32.totalorder %s34, 0
    %p306 = por %p304, %p305
    %p307 = scmp.ne.s32.totalorder %s299, %s301
    %p308 = scmp.eq.s32.totalorder %s39, 1
    %p309 = por %p307, %p308
    %p310 = scmp.ne.s32.totalorder %s301, %s302
    %p311 = scmp.eq.s32.totalorder %s39, 0
    %p312 = por %p310, %p311
    %p313 = scmp.ne.s32.totalorder %s301, %s302
    %p314 = scmp.eq.s32.totalorder %s40, 1
    %p315 = por %p313, %p314
    %p317 = scmp.ne.s32.totalorder %s302, %s316
    %p318 = scmp.eq.s32.totalorder %s40, 0
    %p319 = por %p317, %p318
    %s321 = sadd.s32 %s320, 1
    %p324 = scmp.eq.s32.totalorder %s34, 1
    %p325 = scmp.ne.s32.totalorder %s320, %s322
    %p326 = scmp.eq.s32.totalorder %s34, 0
    %p327 = por %p325, %p326
    %p328 = scmp.ne.s32.totalorder %s320, %s322
    %p329 = scmp.eq.s32.totalorder %s39, 1
    %p330 = por %p328, %p329
    %p331 = scmp.ne.s32.totalorder %s322, %s323
    %p332 = scmp.eq.s32.totalorder %s39, 0
    %p333 = por %p331, %p332
    %p334 = scmp.ne.s32.totalorder %s322, %s323
    %p335 = scmp.eq.s32.totalorder %s40, 1
    %p336 = por %p334, %p335
    %p338 = scmp.ne.s32.totalorder %s323, %s337
    %p339 = scmp.eq.s32.totalorder %s40, 0
    %p340 = por %p338, %p339
    %s342 = sadd.s32 %s341, 1
    %p345 = scmp.eq.s32.totalorder %s34, 1
    %p346 = scmp.ne.s32.totalorder %s341, %s343
    %p347 = scmp.eq.s32.totalorder %s34, 0
    %p348 = por %p346, %p347
    %p349 = scmp.ne.s32.totalorder %s341, %s343
    %p350 = scmp.eq.s32.totalorder %s39, 1
    %p351 = por %p349, %p350
    %p352 = scmp.ne.s32.totalorder %s343, %s344
    %p353 = scmp.eq.s32.totalorder %s39, 0
    %p354 = por %p352, %p353
    %p355 = scmp.ne.s32.totalorder %s343, %s344
    %p356 = scmp.eq.s32.totalorder %s40, 1
    %p357 = por %p355, %p356
    %p359 = scmp.ne.s32.totalorder %s344, %s358
    %p360 = scmp.eq.s32.totalorder %s40, 0
    %p361 = por %p359, %p360
    %s363 = sadd.s32 %s362, 1
    %p366 = scmp.eq.s32.totalorder %s34, 1
    %p367 = scmp.ne.s32.totalorder %s362, %s364
    %p368 = scmp.eq.s32.totalorder %s34, 0
    %p369 = por %p367, %p368
    %p370 = scmp.ne.s32.totalorder %s362, %s364
    %p371 = scmp.eq.s32.totalorder %s39, 1
    %p372 = por %p370, %p371
    %p373 = scmp.ne.s32.totalorder %s364, %s365
    %p374 = scmp.eq.s32.totalorder %s39, 0
    %p375 = por %p373, %p374
    %p376 = scmp.ne.s32.totalorder %s364, %s365
    %p377 = scmp.eq.s32.totalorder %s40, 1
    %p378 = por %p376, %p377
    %p380 = scmp.ne.s32.totalorder %s365, %s379
    %p381 = scmp.eq.s32.totalorder %s40, 0
    %p382 = por %p380, %p381
    %s384 = sadd.s32 %s383, 1
    %p387 = scmp.eq.s32.totalorder %s34, 1
    %p388 = scmp.ne.s32.totalorder %s383, %s385
    %p389 = scmp.eq.s32.totalorder %s34, 0
    %p390 = por %p388, %p389
    %p391 = scmp.ne.s32.totalorder %s383, %s385
    %p392 = scmp.eq.s32.totalorder %s39, 1
    %p393 = por %p391, %p392
    %p394 = scmp.ne.s32.totalorder %s385, %s386
    %p395 = scmp.eq.s32.totalorder %s39, 0
    %p396 = por %p394, %p395
    %p397 = scmp.ne.s32.totalorder %s385, %s386
    %p398 = scmp.eq.s32.totalorder %s40, 1
    %p399 = por %p397, %p398
    %p401 = scmp.ne.s32.totalorder %s386, %s400
    %p402 = scmp.eq.s32.totalorder %s40, 0
    %p403 = por %p401, %p402
    %s405 = sadd.s32 %s404, 1
    %p408 = scmp.eq.s32.totalorder %s34, 1
    %p409 = scmp.ne.s32.totalorder %s404, %s406
    %p410 = scmp.eq.s32.totalorder %s34, 0
    %p411 = por %p409, %p410
    %p412 = scmp.ne.s32.totalorder %s404, %s406
    %p413 = scmp.eq.s32.totalorder %s39, 1
    %p414 = por %p412, %p413
    %p415 = scmp.ne.s32.totalorder %s406, %s407
    %p416 = scmp.eq.s32.totalorder %s39, 0
    %p417 = por %p415, %p416
    %p418 = scmp.ne.s32.totalorder %s406, %s407
    %p419 = scmp.eq.s32.totalorder %s40, 1
    %p420 = por %p418, %p419
    %p422 = scmp.ne.s32.totalorder %s407, %s421
    %p423 = scmp.eq.s32.totalorder %s40, 0
    %p424 = por %p422, %p423
    %s426 = sadd.s32 %s425, 1
    %p429 = scmp.eq.s32.totalorder %s34, 1
    %p430 = scmp.ne.s32.totalorder %s425, %s427
    %p431 = scmp.eq.s32.totalorder %s34, 0
    %p432 = por %p430, %p431
    %p433 = scmp.ne.s32.totalorder %s425, %s427
    %p434 = scmp.eq.s32.totalorder %s39, 1
    %p435 = por %p433, %p434
    %p436 = scmp.ne.s32.totalorder %s427, %s428
    %p437 = scmp.eq.s32.totalorder %s39, 0
    %p438 = por %p436, %p437
    %p439 = scmp.ne.s32.totalorder %s427, %s428
    %p440 = scmp.eq.s32.totalorder %s40, 1
    %p441 = por %p439, %p440
    %p443 = scmp.ne.s32.totalorder %s428, %s442
    %p444 = scmp.eq.s32.totalorder %s40, 0
    %p445 = por %p443, %p444
    %s447 = sadd.s32 %s446, 1
    %p450 = scmp.eq.s32.totalorder %s34, 1
    %p451 = scmp.ne.s32.totalorder %s446, %s448
    %p452 = scmp.eq.s32.totalorder %s34, 0
    %p453 = por %p451, %p452
    %p454 = scmp.ne.s32.totalorder %s446, %s448
    %p455 = scmp.eq.s32.totalorder %s39, 1
    %p456 = por %p454, %p455
    %p457 = scmp.ne.s32.totalorder %s448, %s449
    %p458 = scmp.eq.s32.totalorder %s39, 0
    %p459 = por %p457, %p458
    %p460 = scmp.ne.s32.totalorder %s448, %s449
    %p461 = scmp.eq.s32.totalorder %s40, 1
    %p462 = por %p460, %p461
    %p464 = scmp.ne.s32.totalorder %s449, %s463
    %p465 = scmp.eq.s32.totalorder %s40, 0
    %p466 = por %p464, %p465
    %s468 = sadd.s32 %s467, 1
    %p471 = scmp.eq.s32.totalorder %s34, 1
    %p472 = scmp.ne.s32.totalorder %s467, %s469
    %p473 = scmp.eq.s32.totalorder %s34, 0
    %p474 = por %p472, %p473
    %p475 = scmp.ne.s32.totalorder %s467, %s469
    %p476 = scmp.eq.s32.totalorder %s39, 1
    %p477 = por %p475, %p476
    %p478 = scmp.ne.s32.totalorder %s469, %s470
    %p479 = scmp.eq.s32.totalorder %s39, 0
    %p480 = por %p478, %p479
    %p481 = scmp.ne.s32.totalorder %s469, %s470
    %p482 = scmp.eq.s32.totalorder %s40, 1
    %p483 = por %p481, %p482
    %p485 = scmp.ne.s32.totalorder %s470, %s484
    %p486 = scmp.eq.s32.totalorder %s40, 0
    %p487 = por %p485, %p486
    %s489 = sadd.s32 %s488, 1
    %p492 = scmp.eq.s32.totalorder %s34, 1
    %p493 = scmp.ne.s32.totalorder %s488, %s490
    %p494 = scmp.eq.s32.totalorder %s34, 0
    %p495 = por %p493, %p494
    %p496 = scmp.ne.s32.totalorder %s488, %s490
    %p497 = scmp.eq.s32.totalorder %s39, 1
    %p498 = por %p496, %p497
    %p499 = scmp.ne.s32.totalorder %s490, %s491
    %p500 = scmp.eq.s32.totalorder %s39, 0
    %p501 = por %p499, %p500
    %p502 = scmp.ne.s32.totalorder %s490, %s491
    %p503 = scmp.eq.s32.totalorder %s40, 1
    %p504 = por %p502, %p503
    %p506 = scmp.ne.s32.totalorder %s491, %s505
    %p507 = scmp.eq.s32.totalorder %s40, 0
    %p508 = por %p506, %p507
    %s510 = sadd.s32 %s509, 1
    %p513 = scmp.eq.s32.totalorder %s34, 1
    %p514 = scmp.ne.s32.totalorder %s509, %s511
    %p515 = scmp.eq.s32.totalorder %s34, 0
    %p516 = por %p514, %p515
    %p517 = scmp.ne.s32.totalorder %s509, %s511
    %p518 = scmp.eq.s32.totalorder %s39, 1
    %p519 = por %p517, %p518
    %p520 = scmp.ne.s32.totalorder %s511, %s512
    %p521 = scmp.eq.s32.totalorder %s39, 0
    %p522 = por %p520, %p521
    %p523 = scmp.ne.s32.totalorder %s511, %s512
    %p524 = scmp.eq.s32.totalorder %s40, 1
    %p525 = por %p523, %p524
    %p527 = scmp.ne.s32.totalorder %s512, %s526
    %p528 = scmp.eq.s32.totalorder %s40, 0
    %p529 = por %p527, %p528
    %s531 = sadd.s32 %s530, 1
    %p534 = scmp.eq.s32.totalorder %s34, 1
    %p535 = scmp.ne.s32.totalorder %s530, %s532
    %p536 = scmp.eq.s32.totalorder %s34, 0
    %p537 = por %p535, %p536
    %p538 = scmp.ne.s32.totalorder %s530, %s532
    %p539 = scmp.eq.s32.totalorder %s39, 1
    %p540 = por %p538, %p539
    %p541 = scmp.ne.s32.totalorder %s532, %s533
    %p542 = scmp.eq.s32.totalorder %s39, 0
    %p543 = por %p541, %p542
    %p544 = scmp.ne.s32.totalorder %s532, %s533
    %p545 = scmp.eq.s32.totalorder %s40, 1
    %p546 = por %p544, %p545
    %p548 = scmp.ne.s32.totalorder %s533, %s547
    %p549 = scmp.eq.s32.totalorder %s40, 0
    %p550 = por %p548, %p549
    %s552 = sadd.s32 %s551, 1
    %p555 = scmp.eq.s32.totalorder %s34, 1
    %p556 = scmp.ne.s32.totalorder %s551, %s553
    %p557 = scmp.eq.s32.totalorder %s34, 0
    %p558 = por %p556, %p557
    %p559 = scmp.ne.s32.totalorder %s551, %s553
    %p560 = scmp.eq.s32.totalorder %s39, 1
    %p561 = por %p559, %p560
    %p562 = scmp.ne.s32.totalorder %s553, %s554
    %p563 = scmp.eq.s32.totalorder %s39, 0
    %p564 = por %p562, %p563
    %p565 = scmp.ne.s32.totalorder %s553, %s554
    %p566 = scmp.eq.s32.totalorder %s40, 1
    %p567 = por %p565, %p566
    %p569 = scmp.ne.s32.totalorder %s554, %s568
    %p570 = scmp.eq.s32.totalorder %s40, 0
    %p571 = por %p569, %p570
    %s573 = sadd.s32 %s572, 1
    %p576 = scmp.eq.s32.totalorder %s34, 1
    %p577 = scmp.ne.s32.totalorder %s572, %s574
    %p578 = scmp.eq.s32.totalorder %s34, 0
    %p579 = por %p577, %p578
    %p580 = scmp.ne.s32.totalorder %s572, %s574
    %p581 = scmp.eq.s32.totalorder %s39, 1
    %p582 = por %p580, %p581
    %p583 = scmp.ne.s32.totalorder %s574, %s575
    %p584 = scmp.eq.s32.totalorder %s39, 0
    %p585 = por %p583, %p584
    %p586 = scmp.ne.s32.totalorder %s574, %s575
    %p587 = scmp.eq.s32.totalorder %s40, 1
    %p588 = por %p586, %p587
    %p590 = scmp.ne.s32.totalorder %s575, %s589
    %p591 = scmp.eq.s32.totalorder %s40, 0
    %p592 = por %p590, %p591
    %s593 = ssub.s32 %s34, %s41
    %p594 = scmp.eq.s32.totalorder %s593, 0
    %s596 = sadd.s32 %s595, 1
    %s597 = scalar_select %p594, %s595, %s596
    %p600 = pneg %p594
    %p601 = scmp.eq.s32.totalorder %s34, 1
    %p602 = por %p600, %p601
    %p603 = scmp.ne.s32.totalorder %s595, %s598
    %p604 = scmp.eq.s32.totalorder %s34, 0
    %p605 = por %p603, %p604
    %p606 = scmp.ne.s32.totalorder %s595, %s598
    %p607 = scmp.eq.s32.totalorder %s39, 1
    %p608 = por %p606, %p607
    %p609 = scmp.ne.s32.totalorder %s598, %s599
    %p610 = scmp.eq.s32.totalorder %s39, 0
    %p611 = por %p609, %p610
    %p612 = scmp.ne.s32.totalorder %s598, %s599
    %p613 = scmp.eq.s32.totalorder %s40, 1
    %p614 = por %p612, %p613
    %p616 = scmp.ne.s32.totalorder %s599, %s615
    %p617 = scmp.eq.s32.totalorder %s40, 0
    %p618 = por %p616, %p617
    %p619 = scmp.le.s32.totalorder 1, %s34
    %p620 = scmp.lt.s32.totalorder %s34, 3
    %p621 = pnand %p619, %p620
    %p622 = pneg %p621
    // Predicated region
    $region9: #{adaptive_channel_attention.1} parent=5 // pred_check
      _
    $region10: #{adaptive_channel_attention.1} parent=5 // pred_check_branch
      %624 = sbr.rel (%p621) target = $region12
    $region11: #{adaptive_channel_attention.1} parent=5 // pred_region
      %s625 = ssub.s32 %s34, 1
      // Predicated region
      $region13: #{adaptive_channel_attention.1} parent=11 // pred_check
        %p626 = pneg %p81
      $region14: #{adaptive_channel_attention.1} parent=11 // pred_check_branch
        %628 = sbr.rel (%p626) target = $region16
      $region15: #{adaptive_channel_attention.1} parent=11 // pred_region
        _
      $region16: #{adaptive_channel_attention.1} parent=11 // pred_fallthru
        _
      // Predicated region
      $region17: #{adaptive_channel_attention.1} parent=11 // pred_check
        %p629 = pneg %p102
      $region18: #{adaptive_channel_attention.1} parent=11 // pred_check_branch
        %631 = sbr.rel (%p629) target = $region20
      $region19: #{adaptive_channel_attention.1} parent=11 // pred_region
        _
      $region20: #{adaptive_channel_attention.1} parent=11 // pred_fallthru
        _
      // Predicated region
      $region21: #{adaptive_channel_attention.1} parent=11 // pred_check
        %p632 = pneg %p123
      $region22: #{adaptive_channel_attention.1} parent=11 // pred_check_branch
        %634 = sbr.rel (%p632) target = $region24
      $region23: #{adaptive_channel_attention.1} parent=11 // pred_region
        _
      $region24: #{adaptive_channel_attention.1} parent=11 // pred_fallthru
        _
      // Predicated region
      $region25: #{adaptive_channel_attention.1} parent=11 // pred_check
        %p635 = pneg %p144
      $region26: #{adaptive_channel_attention.1} parent=11 // pred_check_branch
        %637 = sbr.rel (%p635) target = $region28
      $region27: #{adaptive_channel_attention.1} parent=11 // pred_region
        _
      $region28: #{adaptive_channel_attention.1} parent=11 // pred_fallthru
        _
      // Predicated region
      $region29: #{adaptive_channel_attention.1} parent=11 // pred_check
        %p638 = pneg %p165
      $region30: #{adaptive_channel_attention.1} parent=11 // pred_check_branch
        %640 = sbr.rel (%p638) target = $region32
      $region31: #{adaptive_channel_attention.1} parent=11 // pred_region
        _
      $region32: #{adaptive_channel_attention.1} parent=11 // pred_fallthru
        _
      // Predicated region
      $region33: #{adaptive_channel_attention.1} parent=11 // pred_check
        %p641 = pneg %p186
      $region34: #{adaptive_channel_attention.1} parent=11 // pred_check_branch
        %643 = sbr.rel (%p641) target = $region36
      $region35: #{adaptive_channel_attention.1} parent=11 // pred_region
        _
      $region36: #{adaptive_channel_attention.1} parent=11 // pred_fallthru
        _
      // Predicated region
      $region37: #{adaptive_channel_attention.1} parent=11 // pred_check
        %p644 = pneg %p207
      $region38: #{adaptive_channel_attention.1} parent=11 // pred_check_branch
        %646 = sbr.rel (%p644) target = $region40
      $region39: #{adaptive_channel_attention.1} parent=11 // pred_region
        _
      $region40: #{adaptive_channel_attention.1} parent=11 // pred_fallthru
        _
      // Predicated region
      $region41: #{adaptive_channel_attention.1} parent=11 // pred_check
        %p647 = pneg %p228
      $region42: #{adaptive_channel_attention.1} parent=11 // pred_check_branch
        %649 = sbr.rel (%p647) target = $region44
      $region43: #{adaptive_channel_attention.1} parent=11 // pred_region
        _
      $region44: #{adaptive_channel_attention.1} parent=11 // pred_fallthru
        _
      // Predicated region
      $region45: #{adaptive_channel_attention.1} parent=11 // pred_check
        %p650 = pneg %p249
      $region46: #{adaptive_channel_attention.1} parent=11 // pred_check_branch
        %652 = sbr.rel (%p650) target = $region48
      $region47: #{adaptive_channel_attention.1} parent=11 // pred_region
        _
      $region48: #{adaptive_channel_attention.1} parent=11 // pred_fallthru
        _
      // Predicated region
      $region49: #{adaptive_channel_attention.1} parent=11 // pred_check
        %p653 = pneg %p270
      $region50: #{adaptive_channel_attention.1} parent=11 // pred_check_branch
        %655 = sbr.rel (%p653) target = $region52
      $region51: #{adaptive_channel_attention.1} parent=11 // pred_region
        _
      $region52: #{adaptive_channel_attention.1} parent=11 // pred_fallthru
        _
      // Predicated region
      $region53: #{adaptive_channel_attention.1} parent=11 // pred_check
        %p656 = pneg %p291
      $region54: #{adaptive_channel_attention.1} parent=11 // pred_check_branch
        %658 = sbr.rel (%p656) target = $region56
      $region55: #{adaptive_channel_attention.1} parent=11 // pred_region
        _
      $region56: #{adaptive_channel_attention.1} parent=11 // pred_fallthru
        _
      // Predicated region
      $region57: #{adaptive_channel_attention.1} parent=11 // pred_check
        %p659 = pneg %p312
      $region58: #{adaptive_channel_attention.1} parent=11 // pred_check_branch
        %661 = sbr.rel (%p659) target = $region60
      $region59: #{adaptive_channel_attention.1} parent=11 // pred_region
        _
      $region60: #{adaptive_channel_attention.1} parent=11 // pred_fallthru
        _
      // Predicated region
      $region61: #{adaptive_channel_attention.1} parent=11 // pred_check
        %p662 = pneg %p333
      $region62: #{adaptive_channel_attention.1} parent=11 // pred_check_branch
        %664 = sbr.rel (%p662) target = $region64
      $region63: #{adaptive_channel_attention.1} parent=11 // pred_region
        _
      $region64: #{adaptive_channel_attention.1} parent=11 // pred_fallthru
        _
      // Predicated region
      $region65: #{adaptive_channel_attention.1} parent=11 // pred_check
        %p665 = pneg %p354
      $region66: #{adaptive_channel_attention.1} parent=11 // pred_check_branch
        %667 = sbr.rel (%p665) target = $region68
      $region67: #{adaptive_channel_attention.1} parent=11 // pred_region
        _
      $region68: #{adaptive_channel_attention.1} parent=11 // pred_fallthru
        _
      // Predicated region
      $region69: #{adaptive_channel_attention.1} parent=11 // pred_check
        %p668 = pneg %p375
      $region70: #{adaptive_channel_attention.1} parent=11 // pred_check_branch
        %670 = sbr.rel (%p668) target = $region72
      $region71: #{adaptive_channel_attention.1} parent=11 // pred_region
        _
      $region72: #{adaptive_channel_attention.1} parent=11 // pred_fallthru
        _
      // Predicated region
      $region73: #{adaptive_channel_attention.1} parent=11 // pred_check
        %p671 = pneg %p396
      $region74: #{adaptive_channel_attention.1} parent=11 // pred_check_branch
        %673 = sbr.rel (%p671) target = $region76
      $region75: #{adaptive_channel_attention.1} parent=11 // pred_region
        _
      $region76: #{adaptive_channel_attention.1} parent=11 // pred_fallthru
        _
      // Predicated region
      $region77: #{adaptive_channel_attention.1} parent=11 // pred_check
        %p674 = pneg %p417
      $region78: #{adaptive_channel_attention.1} parent=11 // pred_check_branch
        %676 = sbr.rel (%p674) target = $region80
      $region79: #{adaptive_channel_attention.1} parent=11 // pred_region
        _
      $region80: #{adaptive_channel_attention.1} parent=11 // pred_fallthru
        _
      // Predicated region
      $region81: #{adaptive_channel_attention.1} parent=11 // pred_check
        %p677 = pneg %p438
      $region82: #{adaptive_channel_attention.1} parent=11 // pred_check_branch
        %679 = sbr.rel (%p677) target = $region84
      $region83: #{adaptive_channel_attention.1} parent=11 // pred_region
        _
      $region84: #{adaptive_channel_attention.1} parent=11 // pred_fallthru
        _
      // Predicated region
      $region85: #{adaptive_channel_attention.1} parent=11 // pred_check
        %p680 = pneg %p459
      $region86: #{adaptive_channel_attention.1} parent=11 // pred_check_branch
        %682 = sbr.rel (%p680) target = $region88
      $region87: #{adaptive_channel_attention.1} parent=11 // pred_region
        _
      $region88: #{adaptive_channel_attention.1} parent=11 // pred_fallthru
        _
      // Predicated region
      $region89: #{adaptive_channel_attention.1} parent=11 // pred_check
        %p683 = pneg %p480
      $region90: #{adaptive_channel_attention.1} parent=11 // pred_check_branch
        %685 = sbr.rel (%p683) target = $region92
      $region91: #{adaptive_channel_attention.1} parent=11 // pred_region
        _
      $region92: #{adaptive_channel_attention.1} parent=11 // pred_fallthru
        _
      // Predicated region
      $region93: #{adaptive_channel_attention.1} parent=11 // pred_check
        %p686 = pneg %p501
      $region94: #{adaptive_channel_attention.1} parent=11 // pred_check_branch
        %688 = sbr.rel (%p686) target = $region96
      $region95: #{adaptive_channel_attention.1} parent=11 // pred_region
        _
      $region96: #{adaptive_channel_attention.1} parent=11 // pred_fallthru
        _
      // Predicated region
      $region97: #{adaptive_channel_attention.1} parent=11 // pred_check
        %p689 = pneg %p522
      $region98: #{adaptive_channel_attention.1} parent=11 // pred_check_branch
        %691 = sbr.rel (%p689) target = $region100
      $region99: #{adaptive_channel_attention.1} parent=11 // pred_region
        _
      $region100: #{adaptive_channel_attention.1} parent=11 // pred_fallthru
        _
      // Predicated region
      $region101: #{adaptive_channel_attention.1} parent=11 // pred_check
        %p692 = pneg %p543
      $region102: #{adaptive_channel_attention.1} parent=11 // pred_check_branch
        %694 = sbr.rel (%p692) target = $region104
      $region103: #{adaptive_channel_attention.1} parent=11 // pred_region
        _
      $region104: #{adaptive_channel_attention.1} parent=11 // pred_fallthru
        _
      // Predicated region
      $region105: #{adaptive_channel_attention.1} parent=11 // pred_check
        %p695 = pneg %p564
      $region106: #{adaptive_channel_attention.1} parent=11 // pred_check_branch
        %697 = sbr.rel (%p695) target = $region108
      $region107: #{adaptive_channel_attention.1} parent=11 // pred_region
        _
      $region108: #{adaptive_channel_attention.1} parent=11 // pred_fallthru
        _
      // Predicated region
      $region109: #{adaptive_channel_attention.1} parent=11 // pred_check
        %p698 = pneg %p585
      $region110: #{adaptive_channel_attention.1} parent=11 // pred_check_branch
        %700 = sbr.rel (%p698) target = $region112
      $region111: #{adaptive_channel_attention.1} parent=11 // pred_region
        _
      $region112: #{adaptive_channel_attention.1} parent=11 // pred_fallthru
        _
    $region12: #{adaptive_channel_attention.1} parent=5 // pred_fallthru
      _
    %p701 = scmp.lt.s32.totalorder %s34, 2
    // Predicated region
    $region113: #{adaptive_channel_attention.1} parent=5 // pred_check
      %p702 = pneg %p701
    $region114: #{adaptive_channel_attention.1} parent=5 // pred_check_branch
      %704 = sbr.rel (%p702) target = $region116
    $region115: #{adaptive_channel_attention.1} parent=5 // pred_region
      // Predicated region
      $region117: #{adaptive_channel_attention.1} parent=115 // pred_check
        %p705 = pneg %p54
      $region118: #{adaptive_channel_attention.1} parent=115 // pred_check_branch
        %707 = sbr.rel (%p705) target = $region120
      $region119: #{adaptive_channel_attention.1} parent=115 // pred_region
        %p708 = scmp.lt.s32.totalorder %s34, 1
        %s709 = scalar_select %p708, %s34, 1
        %s710 = smul.addr %s709, 8
        %s711 = smul.addr %s710, 8
        %s712 = scalar_lea.vmem %s0, %s711
      $region120: #{adaptive_channel_attention.1} parent=115 // pred_fallthru
        _
    $region116: #{adaptive_channel_attention.1} parent=5 // pred_fallthru
      _
    %p713 = scmp.le.s32.totalorder 1, %s34
    %p714 = scmp.lt.s32.totalorder %s34, 3
    %p715 = pnand %p713, %p714
    %p716 = pneg %p715
    // Predicated region
    $region121: #{adaptive_channel_attention.1} parent=5 // pred_check
      _
    $region122: #{adaptive_channel_attention.1} parent=5 // pred_check_branch
      %718 = sbr.rel (%p715) target = $region124
    $region123: #{adaptive_channel_attention.1} parent=5 // pred_region
      %s719 = ssub.s32 %s34, 1
      %p720 = scmp.lt.s32.totalorder %s39, 1
      %s721 = scalar_select %p720, %s39, 1
      %s722 = smul.addr %s721, 8
      %s723 = smul.addr %s722, 8
      %s724 = scalar_lea.vmem %s0, %s723
      %p725 = pneg %p60
      %p726 = pneg %p57
      %p727 = pneg %p81
      %p728 = pneg %p78
      %p729 = pneg %p102
      %p730 = pneg %p99
      %p731 = pneg %p123
      %p732 = pneg %p120
      %p733 = pneg %p144
      %p734 = pneg %p141
      %p735 = pneg %p165
      %p736 = pneg %p162
      %p737 = pneg %p186
      %p738 = pneg %p183
      %p739 = pneg %p207
      %p740 = pneg %p204
      %p741 = pneg %p228
      %p742 = pneg %p225
      %p743 = pneg %p249
      %p744 = pneg %p246
      %p745 = pneg %p270
      %p746 = pneg %p267
      %p747 = pneg %p291
      %p748 = pneg %p288
      %p749 = pneg %p312
      %p750 = pneg %p309
      %p751 = pneg %p333
      %p752 = pneg %p330
      %p753 = pneg %p354
      %p754 = pneg %p351
      %p755 = pneg %p375
      %p756 = pneg %p372
      %p757 = pneg %p396
      %p758 = pneg %p393
      %p759 = pneg %p417
      %p760 = pneg %p414
      %p761 = pneg %p438
      %p762 = pneg %p435
      %p763 = pneg %p459
      %p764 = pneg %p456
      %p765 = pneg %p480
      %p766 = pneg %p477
      %p767 = pneg %p501
      %p768 = pneg %p498
      %p769 = pneg %p522
      %p770 = pneg %p519
      %p771 = pneg %p543
      %p772 = pneg %p540
      %p773 = pneg %p564
      %p774 = pneg %p561
      %p775 = pneg %p585
      %p776 = pneg %p582
      %p777 = pneg %p611
      %p778 = pneg %p608
      %p779 = scmp.lt.s32.totalorder %s39, 1
      %s780 = scalar_select %p779, %s39, 1
      %s781 = smul.addr %s780, 8
      %s782 = smul.addr %s781, 8
      %s783 = scalar_lea.vmem %s26, %s782
      %p784 = scmp.lt.s32.totalorder %s39, 1
      %s785 = scalar_select %p784, %s39, 1
      %s786 = smul.addr %s785, 8
      %s787 = smul.addr %s786, 8
      %s788 = scalar_lea.vmem %s0, %s787
      %p789 = scmp.lt.s32.totalorder %s39, 1
      %s790 = scalar_select %p789, %s39, 1
      %s791 = smul.addr %s790, 8
      %s792 = smul.addr %s791, 8
      %s793 = scalar_lea.vmem %s26, %s792
      %v795 = vld [vmem:[%s788] sm:$0xff]
      %v796 = vld [vmem:[%s788 + $0x8] sm:$0xff]
      %v797 = vld [vmem:[%s788 + $0x10] sm:$0xff]
      %v798 = vld [vmem:[%s788 + $0x18] sm:$0xff]
      %v799 = vld [vmem:[%s788 + $0x20] sm:$0xff]
      %v800 = vld [vmem:[%s788 + $0x28] sm:$0xff]
      %v801 = vld [vmem:[%s788 + $0x30] sm:$0xff]
      %v802 = vld [vmem:[%s788 + $0x38] sm:$0xff]
      %v803 = vpack.c.bf16 %v796, %v795
      %v804 = vpack.c.bf16 %v798, %v797
      %v805 = vpack.c.bf16 %v800, %v799
      %v806 = vpack.c.bf16 %v802, %v801
      %v807 = vld [vmem:[%s1] sm:$0xf]
      %v808 = vld [vmem:[%s1 + $0x4] sm:$0xf]
      %v809 = vld [vmem:[%s1 + $0x8] sm:$0xf]
      %v810 = vld [vmem:[%s1 + $0xc] sm:$0xf]
      %v815 = vunpack.c.l.b16 %v807
      %v816 = vunpack.c.l.b16 %v808
      %v817 = vunpack.c.l.b16 %v809
      %v818 = vunpack.c.l.b16 %v810
      %v819 = vpack.c.b16 %v816, %v815
      %v820 = vpack.c.b16 %v818, %v817
      %vm823 = vcmask 261120
      %v825 = vsel %vm823, %v803, 0
      %v828 = vsel %vm823, %v804, 0
      %v831 = vsel %vm823, %v805, 0
      %v834 = vsel %vm823, %v806, 0
      %836 = vmatpush.bf16.msra.mxu0 0
      %837 = vmatpush.bf16.msra.mxu0 0
      %838 = vmatpush.bf16.msra.mxu0 0
      %839 = vmatpush.bf16.msra.mxu0 0
      %840 = vmatpush.bf16.msra.mxu0 0
      %841 = vmatpush.bf16.msra.mxu0 0
      %842 = vmatpush.bf16.msra.mxu0 %v820
      %843 = vmatpush.bf16.msra.mxu0 %v819
      %844 = vmatmul.bf16.gmra.mxu0 %v825
      %v845 = vpop.f32.mrf.mxu0
      %v846 = vadd.f32 0.0, %v845
      %v847 = vpop.f32.mrf.mxu0
      %v848 = vadd.f32 0.0, %v847
      %849 = vmatmul.bf16.gmra.mxu0 %v828
      %v850 = vpop.f32.mrf.mxu0
      %v851 = vadd.f32 0.0, %v850
      %v852 = vpop.f32.mrf.mxu0
      %v853 = vadd.f32 0.0, %v852
      %854 = vmatmul.bf16.gmra.mxu0 %v831
      %v855 = vpop.f32.mrf.mxu0
      %v856 = vadd.f32 0.0, %v855
      %v857 = vpop.f32.mrf.mxu0
      %v858 = vadd.f32 0.0, %v857
      %859 = vmatmul.bf16.gmra.mxu0 %v834
      %v860 = vpop.f32.mrf.mxu0
      %v861 = vadd.f32 0.0, %v860
      %v862 = vpop.f32.mrf.mxu0
      %v863 = vadd.f32 0.0, %v862
      %864 = vdwg.mxu0
      %v865 = vld [vmem:[%s2] sm:$0xf]
      %v866 = vld [vmem:[%s2 + $0x4] sm:$0xf]
      %v867 = vld [vmem:[%s2 + $0x8] sm:$0xf]
      %v868 = vld [vmem:[%s2 + $0xc] sm:$0xf]
      %v873 = vunpack.c.l.b16 %v865
      %v874 = vunpack.c.l.b16 %v866
      %v875 = vunpack.c.l.b16 %v867
      %v876 = vunpack.c.l.b16 %v868
      %v877 = vpack.c.b16 %v874, %v873
      %v878 = vpack.c.b16 %v876, %v875
      %881 = vmatpush.bf16.msra.mxu0 0
      %882 = vmatpush.bf16.msra.mxu0 0
      %883 = vmatpush.bf16.msra.mxu0 0
      %884 = vmatpush.bf16.msra.mxu0 0
      %885 = vmatpush.bf16.msra.mxu0 0
      %886 = vmatpush.bf16.msra.mxu0 0
      %887 = vmatpush.bf16.msra.mxu0 %v878
      %888 = vmatpush.bf16.msra.mxu0 %v877
      %889 = vmatmul.bf16.gmra.mxu0 %v825
      %v890 = vpop.f32.mrf.mxu0
      %v891 = vadd.f32 0.0, %v890
      %v892 = vpop.f32.mrf.mxu0
      %v893 = vadd.f32 0.0, %v892
      %894 = vmatmul.bf16.gmra.mxu0 %v828
      %v895 = vpop.f32.mrf.mxu0
      %v896 = vadd.f32 0.0, %v895
      %v897 = vpop.f32.mrf.mxu0
      %v898 = vadd.f32 0.0, %v897
      %899 = vmatmul.bf16.gmra.mxu0 %v831
      %v900 = vpop.f32.mrf.mxu0
      %v901 = vadd.f32 0.0, %v900
      %v902 = vpop.f32.mrf.mxu0
      %v903 = vadd.f32 0.0, %v902
      %904 = vmatmul.bf16.gmra.mxu0 %v834
      %v905 = vpop.f32.mrf.mxu0
      %v906 = vadd.f32 0.0, %v905
      %v907 = vpop.f32.mrf.mxu0
      %v908 = vadd.f32 0.0, %v907
      %909 = vdwg.mxu0
      %v910 = vld [vmem:[%s3] sm:$0xf]
      %v911 = vld [vmem:[%s3 + $0x4] sm:$0xf]
      %v912 = vld [vmem:[%s3 + $0x8] sm:$0xf]
      %v913 = vld [vmem:[%s3 + $0xc] sm:$0xf]
      %v918 = vunpack.c.l.b16 %v910
      %v919 = vunpack.c.l.b16 %v911
      %v920 = vunpack.c.l.b16 %v912
      %v921 = vunpack.c.l.b16 %v913
      %v922 = vpack.c.b16 %v919, %v918
      %v923 = vpack.c.b16 %v921, %v920
      %926 = vmatpush.bf16.msra.mxu0 0
      %927 = vmatpush.bf16.msra.mxu0 0
      %928 = vmatpush.bf16.msra.mxu0 0
      %929 = vmatpush.bf16.msra.mxu0 0
      %930 = vmatpush.bf16.msra.mxu0 0
      %931 = vmatpush.bf16.msra.mxu0 0
      %932 = vmatpush.bf16.msra.mxu0 %v923
      %933 = vmatpush.bf16.msra.mxu0 %v922
      %934 = vmatmul.bf16.gmra.mxu0 %v825
      %v935 = vpop.f32.mrf.mxu0
      %v936 = vadd.f32 0.0, %v935
      %v937 = vpop.f32.mrf.mxu0
      %v938 = vadd.f32 0.0, %v937
      %939 = vmatmul.bf16.gmra.mxu0 %v828
      %v940 = vpop.f32.mrf.mxu0
      %v941 = vadd.f32 0.0, %v940
      %v942 = vpop.f32.mrf.mxu0
      %v943 = vadd.f32 0.0, %v942
      %944 = vmatmul.bf16.gmra.mxu0 %v831
      %v945 = vpop.f32.mrf.mxu0
      %v946 = vadd.f32 0.0, %v945
      %v947 = vpop.f32.mrf.mxu0
      %v948 = vadd.f32 0.0, %v947
      %949 = vmatmul.bf16.gmra.mxu0 %v834
      %v950 = vpop.f32.mrf.mxu0
      %v951 = vadd.f32 0.0, %v950
      %v952 = vpop.f32.mrf.mxu0
      %v953 = vadd.f32 0.0, %v952
      %954 = vdwg.mxu0
      %v955 = vmul.f32 %v846, %v846
      %v956 = vmul.f32 %v848, %v848
      %v957 = vmul.f32 %v851, %v851
      %v958 = vmul.f32 %v853, %v853
      %v959 = vmul.f32 %v856, %v856
      %v960 = vmul.f32 %v858, %v858
      %v961 = vmul.f32 %v861, %v861
      %v962 = vmul.f32 %v863, %v863
      %v963 = vsel %vm823, %v955, 0.0
      %v964 = vsel %vm823, %v956, 0.0
      %v965 = vadd.f32 %v963, %v964
      %v966 = vsel %vm823, %v957, 0.0
      %v967 = vadd.f32 %v965, %v966
      %v968 = vsel %vm823, %v958, 0.0
      %v969 = vadd.f32 %v967, %v968
      %v970 = vsel %vm823, %v959, 0.0
      %v971 = vadd.f32 %v969, %v970
      %v972 = vsel %vm823, %v960, 0.0
      %v973 = vadd.f32 %v971, %v972
      %v974 = vsel %vm823, %v961, 0.0
      %v975 = vadd.f32 %v973, %v974
      %v976 = vsel %vm823, %v962, 0.0
      %v977 = vadd.f32 %v975, %v976
      %v978 = vrot.slane %v977, 4
      %v979 = vadd.f32 %v977, %v978
      %v980 = vrot.slane %v979, 2
      %v981 = vadd.f32 %v979, %v980
      %v982 = vrot.slane %v981, 1
      %v983 = vadd.f32 %v981, %v982
      %v984 = vmax.f32 %v983, 1e-24
      %v985 = vrsqrt.pop %v984
      %v986 = vmul.f32 %v985, %v984
      %v987 = vmul.f32 %v986, %v985
      %v988 = vmul.f32 0.5, %v987
      %v989 = vsub.f32 1.5, %v988
      %v990 = vmul.f32 %v985, %v989
      %vm991 = vweird.f32 %v984
      %vm992 = vweird.f32 %v985
      %vm993 = vmor %vm991, %vm992
      %v994 = vsel %vm993, %v985, %v990
      %v995 = vld [vmem:[%s4] sm:$0x1]
      %v996 = vmul.f32 %v994, %v995
      %v997 = vperm.slane %v996, 0
      %v998 = vmul.f32 %v846, %v997
      %v999 = vmul.f32 %v848, %v997
      %v1000 = vmul.f32 %v851, %v997
      %v1001 = vmul.f32 %v853, %v997
      %v1002 = vmul.f32 %v856, %v997
      %v1003 = vmul.f32 %v858, %v997
      %v1004 = vmul.f32 %v861, %v997
      %v1005 = vmul.f32 %v863, %v997
      %v1006 = vmul.f32 %v891, %v891
      %v1007 = vmul.f32 %v893, %v893
      %v1008 = vmul.f32 %v896, %v896
      %v1009 = vmul.f32 %v898, %v898
      %v1010 = vmul.f32 %v901, %v901
      %v1011 = vmul.f32 %v903, %v903
      %v1012 = vmul.f32 %v906, %v906
      %v1013 = vmul.f32 %v908, %v908
      %v1014 = vsel %vm823, %v1006, 0.0
      %v1015 = vsel %vm823, %v1007, 0.0
      %v1016 = vadd.f32 %v1014, %v1015
      %v1017 = vsel %vm823, %v1008, 0.0
      %v1018 = vadd.f32 %v1016, %v1017
      %v1019 = vsel %vm823, %v1009, 0.0
      %v1020 = vadd.f32 %v1018, %v1019
      %v1021 = vsel %vm823, %v1010, 0.0
      %v1022 = vadd.f32 %v1020, %v1021
      %v1023 = vsel %vm823, %v1011, 0.0
      %v1024 = vadd.f32 %v1022, %v1023
      %v1025 = vsel %vm823, %v1012, 0.0
      %v1026 = vadd.f32 %v1024, %v1025
      %v1027 = vsel %vm823, %v1013, 0.0
      %v1028 = vadd.f32 %v1026, %v1027
      %v1029 = vrot.slane %v1028, 4
      %v1030 = vadd.f32 %v1028, %v1029
      %v1031 = vrot.slane %v1030, 2
      %v1032 = vadd.f32 %v1030, %v1031
      %v1033 = vrot.slane %v1032, 1
      %v1034 = vadd.f32 %v1032, %v1033
      %v1035 = vmax.f32 %v1034, 1e-24
      %v1036 = vrsqrt.pop %v1035
      %v1037 = vmul.f32 %v1036, %v1035
      %v1038 = vmul.f32 %v1037, %v1036
      %v1039 = vmul.f32 0.5, %v1038
      %v1040 = vsub.f32 1.5, %v1039
      %v1041 = vmul.f32 %v1036, %v1040
      %vm1042 = vweird.f32 %v1035
      %vm1043 = vweird.f32 %v1036
      %vm1044 = vmor %vm1042, %vm1043
      %v1045 = vsel %vm1044, %v1036, %v1041
      %v1046 = vmul.f32 %v891, %v1045
      %v1047 = vmul.f32 %v893, %v1045
      %v1048 = vmul.f32 %v896, %v1045
      %v1049 = vmul.f32 %v898, %v1045
      %v1050 = vmul.f32 %v901, %v1045
      %v1051 = vmul.f32 %v903, %v1045
      %v1052 = vmul.f32 %v906, %v1045
      %v1053 = vmul.f32 %v908, %v1045
      %v1054 = vpack.c.bf16 %v999, %v998
      %v1055 = vpack.c.bf16 %v1001, %v1000
      %v1056 = vpack.c.bf16 %v1003, %v1002
      %v1057 = vpack.c.bf16 %v1005, %v1004
      %v1058 = vpack.c.bf16 %v1047, %v1046
      %v1059 = vpack.c.bf16 %v1049, %v1048
      %v1060 = vpack.c.bf16 %v1051, %v1050
      %v1061 = vpack.c.bf16 %v1053, %v1052
      %v1062 = vld [vmem:[%s5] sm:$0xff]
      %v1063 = vld [vmem:[%s5 + $0x8] sm:$0xff]
      %v1064 = vld [vmem:[%s5 + $0x10] sm:$0xff]
      %v1065 = vld [vmem:[%s5 + $0x18] sm:$0xff]
      %1066 = vxpose.xlu0.c.b16.start [1/8] %v1054, 128
      %1067 = vxpose.xlu0.c.b16.cont [2/8] %v1055, 128
      %1068 = vxpose.xlu0.c.b16.cont [3/8] %v1056, 128
      %1069 = vxpose.xlu0.c.b16.cont [4/8] %v1057, 128
      %1070 = vxpose.xlu0.c.b16.cont [5/8] 0, 128
      %1071 = vxpose.xlu0.c.b16.cont [6/8] 0, 128
      %1072 = vxpose.xlu0.c.b16.cont [7/8] 0, 128
      %1073 = vxpose.xlu0.c.b16.end [8/8] 0, 128
      %v1074 = vpop.trf.xlu0
      %v1075 = vpop.trf.xlu0
      %v1076 = vpop.trf.xlu0
      %v1077 = vpop.trf.xlu0
      %v1078 = vpop.trf.xlu0
      %v1079 = vpop.trf.xlu0
      %v1080 = vpop.trf.xlu0
      %v1081 = vpop.trf.xlu0
      %vm1082 = vcmask 523264
      %v1084 = vsel %vm1082, %v1074, 0
      %v1087 = vsel %vm1082, %v1075, 0
      %1089 = vmatpush.bf16.msra.mxu0 0
      %1090 = vmatpush.bf16.msra.mxu0 0
      %1091 = vmatpush.bf16.msra.mxu0 0
      %1092 = vmatpush.bf16.msra.mxu0 0
      %1093 = vmatpush.bf16.msra.mxu0 %v1061
      %1094 = vmatpush.bf16.msra.mxu0 %v1060
      %1095 = vmatpush.bf16.msra.mxu0 %v1059
      %1096 = vmatpush.bf16.msra.mxu0 %v1058
      %1097 = vmatmul.bf16.gmra.mxu0 %v1084
      %v1098 = vpop.f32.mrf.mxu0
      %v1099 = vadd.f32 %v1062, %v1098
      %v1100 = vpop.f32.mrf.mxu0
      %v1101 = vadd.f32 %v1063, %v1100
      %1102 = vmatmul.bf16.gmra.mxu0 %v1087
      %v1103 = vpop.f32.mrf.mxu0
      %v1104 = vadd.f32 %v1064, %v1103
      %v1105 = vpop.f32.mrf.mxu0
      %v1106 = vadd.f32 %v1065, %v1105
      %1107 = vdwg.mxu0
      %v1108 = vsel %vm823, %v1099, -inf
      %1109 = vmax.xlane.f32.xlu0 %v1108
      %v1110 = vpop.xlane.xlu0 %1109
      %v1111 = vsel %vm823, %v1101, -inf
      %1112 = vmax.xlane.f32.xlu0 %v1111
      %v1113 = vpop.xlane.xlu0 %1112
      %v1114 = vsel %vm823, %v1104, -inf
      %1115 = vmax.xlane.f32.xlu0 %v1114
      %v1116 = vpop.xlane.xlu0 %1115
      %v1117 = vsel %vm823, %v1106, -inf
      %1118 = vmax.xlane.f32.xlu0 %v1117
      %v1119 = vpop.xlane.xlu0 %1118
      %v1120 = vsub.f32 %v1099, %v1110
      %v1121 = vsub.f32 %v1101, %v1113
      %v1122 = vsub.f32 %v1104, %v1116
      %v1123 = vsub.f32 %v1106, %v1119
      %v1124 = vmul.f32 %v1120, 1.442695
      %v1125 = vpow.pop %v1124
      %v1126 = vmul.f32 %v1121, 1.442695
      %v1127 = vpow.pop %v1126
      %v1128 = vmul.f32 %v1122, 1.442695
      %v1129 = vpow.pop %v1128
      %v1130 = vmul.f32 %v1123, 1.442695
      %v1131 = vpow.pop %v1130
      %v1132 = vsel %vm823, %v1125, 0.0
      %1133 = vadd.xlane.f32.xlu0 %v1132
      %v1134 = vpop.xlane.xlu0 %1133
      %v1135 = vsel %vm823, %v1127, 0.0
      %1136 = vadd.xlane.f32.xlu0 %v1135
      %v1137 = vpop.xlane.xlu0 %1136
      %v1138 = vsel %vm823, %v1129, 0.0
      %1139 = vadd.xlane.f32.xlu0 %v1138
      %v1140 = vpop.xlane.xlu0 %1139
      %v1141 = vsel %vm823, %v1131, 0.0
      %1142 = vadd.xlane.f32.xlu0 %v1141
      %v1143 = vpop.xlane.xlu0 %1142
      %v1144 = vrcp.pop %v1134
      %v1145 = vrcp.pop %v1137
      %v1146 = vrcp.pop %v1140
      %v1147 = vrcp.pop %v1143
      %v1148 = vmul.f32 %v1125, %v1144
      %v1149 = vmul.f32 %v1127, %v1145
      %v1150 = vmul.f32 %v1129, %v1146
      %v1151 = vmul.f32 %v1131, %v1147
      %v1152 = vpack.c.bf16 %v938, %v936
      %v1153 = vpack.c.bf16 %v943, %v941
      %v1154 = vpack.c.bf16 %v948, %v946
      %v1155 = vpack.c.bf16 %v953, %v951
      %v1156 = vpack.c.bf16 %v1149, %v1148
      %v1157 = vpack.c.bf16 %v1151, %v1150
      %v1159 = vsel %vm823, %v1152, 0
      %v1162 = vsel %vm823, %v1153, 0
      %v1165 = vsel %vm823, %v1154, 0
      %v1168 = vsel %vm823, %v1155, 0
      %v1171 = vsel %vm823, %v1156, 0
      %v1174 = vsel %vm823, %v1157, 0
      %1176 = vmatpush.bf16.xpose.msra.mxu0 0
      %1177 = vmatpush.bf16.xpose.msra.mxu0 0
      %1178 = vmatpush.bf16.xpose.msra.mxu0 0
      %1179 = vmatpush.bf16.xpose.msra.mxu0 0
      %1180 = vmatpush.bf16.xpose.msra.mxu0 0
      %1181 = vmatpush.bf16.xpose.msra.mxu0 0
      %1182 = vmatpush.bf16.xpose.msra.mxu0 %v1174
      %1183 = vmatpush.bf16.xpose.msra.mxu0 %v1171
      %1184 = vmatmul.bf16.gmra.mxu0 %v1159
      %v1185 = vpop.f32.mrf.mxu0
      %v1186 = vadd.f32 0.0, %v1185
      %v1187 = vpop.f32.mrf.mxu0
      %v1188 = vadd.f32 0.0, %v1187
      %1189 = vmatmul.bf16.gmra.mxu0 %v1162
      %v1190 = vpop.f32.mrf.mxu0
      %v1191 = vadd.f32 0.0, %v1190
      %v1192 = vpop.f32.mrf.mxu0
      %v1193 = vadd.f32 0.0, %v1192
      %1194 = vmatmul.bf16.gmra.mxu0 %v1165
      %v1195 = vpop.f32.mrf.mxu0
      %v1196 = vadd.f32 0.0, %v1195
      %v1197 = vpop.f32.mrf.mxu0
      %v1198 = vadd.f32 0.0, %v1197
      %1199 = vmatmul.bf16.gmra.mxu0 %v1168
      %v1200 = vpop.f32.mrf.mxu0
      %v1201 = vadd.f32 0.0, %v1200
      %v1202 = vpop.f32.mrf.mxu0
      %v1203 = vadd.f32 0.0, %v1202
      %1204 = vdwg.mxu0
      %v1205 = vld [vmem:[%s6] sm:$0x7]
      %v1206 = vld [vmem:[%s6 + $0x4] sm:$0x7]
      %v1207 = vld [vmem:[%s6 + $0x8] sm:$0x7]
      %v1208 = vrot.slane %v936, 7
      %v1209 = vrot.slane %v938, 7
      %v1210 = vrot.slane %v941, 7
      %v1211 = vrot.slane %v943, 7
      %v1212 = vrot.slane %v946, 7
      %v1213 = vrot.slane %v948, 7
      %v1214 = vrot.slane %v951, 7
      %v1215 = vrot.slane %v953, 7
      %v1216 = vlaneseq
      %v1217 = vshrl.u32 %v1216, 7
      %vm1218 = vcmp.lt.s32.totalorder %v1217, 1
      %v1219 = vsel %vm1218, %v1214, %v1215
      %v1220 = vsel %vm1218, %v1213, %v1214
      %v1221 = vsel %vm1218, %v1212, %v1213
      %v1222 = vsel %vm1218, %v1211, %v1212
      %v1223 = vsel %vm1218, %v1210, %v1211
      %v1224 = vsel %vm1218, %v1209, %v1210
      %v1225 = vsel %vm1218, %v1208, %v1209
      %v1226 = vsel %vm1218, %v1215, %v1208
      %v1227 = vld [vmem:[%s10] sm:$0xff]
      %v1228 = vld [vmem:[%s10 + $0x8] sm:$0xff]
      %v1229 = vld [vmem:[%s10 + $0x10] sm:$0xff]
      %v1230 = vld [vmem:[%s10 + $0x18] sm:$0xff]
      %v1231 = vld [vmem:[%s10 + $0x20] sm:$0xff]
      %v1232 = vld [vmem:[%s10 + $0x28] sm:$0xff]
      %v1233 = vld [vmem:[%s10 + $0x30] sm:$0xff]
      %v1234 = vld [vmem:[%s10 + $0x38] sm:$0xff]
      %1236 = vset.pattern.permute.xlu0 0
      %1237 = vperm.xlu0 %1236, %v1227
      %v1238 = vpop.permute.xlu0 %1237
      %1241 = vset.pattern.permute.xlu0 0
      %1242 = vperm.xlu0 %1241, %v1228
      %v1243 = vpop.permute.xlu0 %1242
      %1246 = vset.pattern.permute.xlu0 0
      %1247 = vperm.xlu0 %1246, %v1229
      %v1248 = vpop.permute.xlu0 %1247
      %1251 = vset.pattern.permute.xlu0 0
      %1252 = vperm.xlu0 %1251, %v1230
      %v1253 = vpop.permute.xlu0 %1252
      %1256 = vset.pattern.permute.xlu0 0
      %1257 = vperm.xlu0 %1256, %v1231
      %v1258 = vpop.permute.xlu0 %1257
      %1261 = vset.pattern.permute.xlu0 0
      %1262 = vperm.xlu0 %1261, %v1232
      %v1263 = vpop.permute.xlu0 %1262
      %1266 = vset.pattern.permute.xlu0 0
      %1267 = vperm.xlu0 %1266, %v1233
      %v1268 = vpop.permute.xlu0 %1267
      %1271 = vset.pattern.permute.xlu0 0
      %1272 = vperm.xlu0 %1271, %v1234
      %v1273 = vpop.permute.xlu0 %1272
      %v1275 = vmul.f32 %v1226, %v1238
      %v1276 = vmul.f32 %v1225, %v1243
      %v1277 = vmul.f32 %v1224, %v1248
      %v1278 = vmul.f32 %v1223, %v1253
      %v1279 = vmul.f32 %v1222, %v1258
      %v1280 = vmul.f32 %v1221, %v1263
      %v1281 = vmul.f32 %v1220, %v1268
      %v1282 = vmul.f32 %v1219, %v1273
      %v1283 = vrot.slane %v936, 1
      %v1284 = vrot.slane %v938, 1
      %v1285 = vrot.slane %v941, 1
      %v1286 = vrot.slane %v943, 1
      %v1287 = vrot.slane %v946, 1
      %v1288 = vrot.slane %v948, 1
      %v1289 = vrot.slane %v951, 1
      %v1290 = vrot.slane %v953, 1
      %vm1291 = vcmp.lt.s32.totalorder %v1217, 7
      %v1292 = vsel %vm1291, %v1289, %v1290
      %v1293 = vsel %vm1291, %v1288, %v1289
      %v1294 = vsel %vm1291, %v1287, %v1288
      %v1295 = vsel %vm1291, %v1286, %v1287
      %v1296 = vsel %vm1291, %v1285, %v1286
      %v1297 = vsel %vm1291, %v1284, %v1285
      %v1298 = vsel %vm1291, %v1283, %v1284
      %v1299 = vsel %vm1291, %v1290, %v1283
      %v1300 = vld [vmem:[%s11] sm:$0xff]
      %v1301 = vld [vmem:[%s11 + $0x8] sm:$0xff]
      %v1302 = vld [vmem:[%s11 + $0x10] sm:$0xff]
      %v1303 = vld [vmem:[%s11 + $0x18] sm:$0xff]
      %v1304 = vld [vmem:[%s11 + $0x20] sm:$0xff]
      %v1305 = vld [vmem:[%s11 + $0x28] sm:$0xff]
      %v1306 = vld [vmem:[%s11 + $0x30] sm:$0xff]
      %v1307 = vld [vmem:[%s11 + $0x38] sm:$0xff]
      %1309 = vset.pattern.permute.xlu0 0
      %1310 = vperm.xlu0 %1309, %v1300
      %v1311 = vpop.permute.xlu0 %1310
      %1314 = vset.pattern.permute.xlu0 0
      %1315 = vperm.xlu0 %1314, %v1301
      %v1316 = vpop.permute.xlu0 %1315
      %1319 = vset.pattern.permute.xlu0 0
      %1320 = vperm.xlu0 %1319, %v1302
      %v1321 = vpop.permute.xlu0 %1320
      %1324 = vset.pattern.permute.xlu0 0
      %1325 = vperm.xlu0 %1324, %v1303
      %v1326 = vpop.permute.xlu0 %1325
      %1329 = vset.pattern.permute.xlu0 0
      %1330 = vperm.xlu0 %1329, %v1304
      %v1331 = vpop.permute.xlu0 %1330
      %1334 = vset.pattern.permute.xlu0 0
      %1335 = vperm.xlu0 %1334, %v1305
      %v1336 = vpop.permute.xlu0 %1335
      %1339 = vset.pattern.permute.xlu0 0
      %1340 = vperm.xlu0 %1339, %v1306
      %v1341 = vpop.permute.xlu0 %1340
      %1344 = vset.pattern.permute.xlu0 0
      %1345 = vperm.xlu0 %1344, %v1307
      %v1346 = vpop.permute.xlu0 %1345
      %v1348 = vmul.f32 %v1298, %v1311
      %v1349 = vmul.f32 %v1297, %v1316
      %v1350 = vmul.f32 %v1296, %v1321
      %v1351 = vmul.f32 %v1295, %v1326
      %v1352 = vmul.f32 %v1294, %v1331
      %v1353 = vmul.f32 %v1293, %v1336
      %v1354 = vmul.f32 %v1292, %v1341
      %v1355 = vmul.f32 %v1299, %v1346
      %v1356 = vperm.slane %v1205, 0
      %v1357 = vmul.f32 %v1275, %v1356
      %v1358 = vmul.f32 %v1276, %v1356
      %v1359 = vmul.f32 %v1277, %v1356
      %v1360 = vmul.f32 %v1278, %v1356
      %v1361 = vmul.f32 %v1279, %v1356
      %v1362 = vmul.f32 %v1280, %v1356
      %v1363 = vmul.f32 %v1281, %v1356
      %v1364 = vperm.slane %v1205, 1
      %v1365 = vmul.f32 %v936, %v1364
      %v1366 = vmul.f32 %v938, %v1364
      %v1367 = vmul.f32 %v941, %v1364
      %v1368 = vmul.f32 %v943, %v1364
      %v1369 = vmul.f32 %v946, %v1364
      %v1370 = vmul.f32 %v948, %v1364
      %v1371 = vmul.f32 %v951, %v1364
      %v1372 = vadd.f32 %v1357, %v1365
      %v1373 = vadd.f32 %v1358, %v1366
      %v1374 = vadd.f32 %v1359, %v1367
      %v1375 = vadd.f32 %v1360, %v1368
      %v1376 = vadd.f32 %v1361, %v1369
      %v1377 = vadd.f32 %v1362, %v1370
      %v1378 = vadd.f32 %v1363, %v1371
      %v1379 = vperm.slane %v1205, 2
      %v1380 = vmul.f32 %v1348, %v1379
      %v1381 = vmul.f32 %v1349, %v1379
      %v1382 = vmul.f32 %v1350, %v1379
      %v1383 = vmul.f32 %v1351, %v1379
      %v1384 = vmul.f32 %v1352, %v1379
      %v1385 = vmul.f32 %v1353, %v1379
      %v1386 = vmul.f32 %v1354, %v1379
      %v1387 = vadd.f32 %v1372, %v1380
      %v1388 = vadd.f32 %v1373, %v1381
      %v1389 = vadd.f32 %v1374, %v1382
      %v1390 = vadd.f32 %v1375, %v1383
      %v1391 = vadd.f32 %v1376, %v1384
      %v1392 = vadd.f32 %v1377, %v1385
      %v1393 = vadd.f32 %v1378, %v1386
      %v1394 = vperm.slane %v1206, 0
      %v1395 = vmul.f32 %v1275, %v1394
      %v1396 = vmul.f32 %v1276, %v1394
      %v1397 = vmul.f32 %v1277, %v1394
      %v1398 = vmul.f32 %v1278, %v1394
      %v1399 = vmul.f32 %v1279, %v1394
      %v1400 = vmul.f32 %v1280, %v1394
      %v1401 = vmul.f32 %v1281, %v1394
      %v1402 = vmul.f32 %v1282, %v1394
      %v1403 = vperm.slane %v1206, 1
      %v1404 = vmul.f32 %v936, %v1403
      %v1405 = vmul.f32 %v938, %v1403
      %v1406 = vmul.f32 %v941, %v1403
      %v1407 = vmul.f32 %v943, %v1403
      %v1408 = vmul.f32 %v946, %v1403
      %v1409 = vmul.f32 %v948, %v1403
      %v1410 = vmul.f32 %v951, %v1403
      %v1411 = vmul.f32 %v953, %v1403
      %v1412 = vadd.f32 %v1395, %v1404
      %v1413 = vadd.f32 %v1396, %v1405
      %v1414 = vadd.f32 %v1397, %v1406
      %v1415 = vadd.f32 %v1398, %v1407
      %v1416 = vadd.f32 %v1399, %v1408
      %v1417 = vadd.f32 %v1400, %v1409
      %v1418 = vadd.f32 %v1401, %v1410
      %v1419 = vadd.f32 %v1402, %v1411
      %v1420 = vperm.slane %v1206, 2
      %v1421 = vmul.f32 %v1348, %v1420
      %v1422 = vmul.f32 %v1349, %v1420
      %v1423 = vmul.f32 %v1350, %v1420
      %v1424 = vmul.f32 %v1351, %v1420
      %v1425 = vmul.f32 %v1352, %v1420
      %v1426 = vmul.f32 %v1353, %v1420
      %v1427 = vmul.f32 %v1354, %v1420
      %v1428 = vmul.f32 %v1355, %v1420
      %v1429 = vadd.f32 %v1412, %v1421
      %v1430 = vadd.f32 %v1413, %v1422
      %v1431 = vadd.f32 %v1414, %v1423
      %v1432 = vadd.f32 %v1415, %v1424
      %v1433 = vadd.f32 %v1416, %v1425
      %v1434 = vadd.f32 %v1417, %v1426
      %v1435 = vadd.f32 %v1418, %v1427
      %v1436 = vadd.f32 %v1419, %v1428
      %v1437 = vperm.slane %v1207, 0
      %v1438 = vmul.f32 %v1276, %v1437
      %v1439 = vmul.f32 %v1277, %v1437
      %v1440 = vmul.f32 %v1278, %v1437
      %v1441 = vmul.f32 %v1279, %v1437
      %v1442 = vmul.f32 %v1280, %v1437
      %v1443 = vmul.f32 %v1281, %v1437
      %v1444 = vmul.f32 %v1282, %v1437
      %v1445 = vperm.slane %v1207, 1
      %v1446 = vmul.f32 %v938, %v1445
      %v1447 = vmul.f32 %v941, %v1445
      %v1448 = vmul.f32 %v943, %v1445
      %v1449 = vmul.f32 %v946, %v1445
      %v1450 = vmul.f32 %v948, %v1445
      %v1451 = vmul.f32 %v951, %v1445
      %v1452 = vmul.f32 %v953, %v1445
      %v1453 = vadd.f32 %v1438, %v1446
      %v1454 = vadd.f32 %v1439, %v1447
      %v1455 = vadd.f32 %v1440, %v1448
      %v1456 = vadd.f32 %v1441, %v1449
      %v1457 = vadd.f32 %v1442, %v1450
      %v1458 = vadd.f32 %v1443, %v1451
      %v1459 = vadd.f32 %v1444, %v1452
      %v1460 = vperm.slane %v1207, 2
      %v1461 = vmul.f32 %v1349, %v1460
      %v1462 = vmul.f32 %v1350, %v1460
      %v1463 = vmul.f32 %v1351, %v1460
      %v1464 = vmul.f32 %v1352, %v1460
      %v1465 = vmul.f32 %v1353, %v1460
      %v1466 = vmul.f32 %v1354, %v1460
      %v1467 = vmul.f32 %v1355, %v1460
      %v1468 = vadd.f32 %v1453, %v1461
      %v1469 = vadd.f32 %v1454, %v1462
      %v1470 = vadd.f32 %v1455, %v1463
      %v1471 = vadd.f32 %v1456, %v1464
      %v1472 = vadd.f32 %v1457, %v1465
      %v1473 = vadd.f32 %v1458, %v1466
      %v1474 = vadd.f32 %v1459, %v1467
      %v1475 = vadd.f32 %v1429, 0.0
      %v1476 = vadd.f32 %v1430, %v1387
      %v1477 = vadd.f32 %v1431, %v1388
      %v1478 = vadd.f32 %v1432, %v1389
      %v1479 = vadd.f32 %v1433, %v1390
      %v1480 = vadd.f32 %v1434, %v1391
      %v1481 = vadd.f32 %v1435, %v1392
      %v1482 = vadd.f32 %v1436, %v1393
      %v1483 = vadd.f32 %v1475, %v1468
      %v1484 = vadd.f32 %v1476, %v1469
      %v1485 = vadd.f32 %v1477, %v1470
      %v1486 = vadd.f32 %v1478, %v1471
      %v1487 = vadd.f32 %v1479, %v1472
      %v1488 = vadd.f32 %v1480, %v1473
      %v1489 = vadd.f32 %v1481, %v1474
      %v1490 = vadd.f32 %v1482, 0.0
      %v1491 = vld [vmem:[%s7] sm:$0x1]
      %v1493 = vperm.slane %v1491, 0
      %v1495 = vadd.f32 %v1483, %v1493
      %v1496 = vadd.f32 %v1484, %v1493
      %v1497 = vadd.f32 %v1485, %v1493
      %v1498 = vadd.f32 %v1486, %v1493
      %v1499 = vadd.f32 %v1487, %v1493
      %v1500 = vadd.f32 %v1488, %v1493
      %v1501 = vadd.f32 %v1489, %v1493
      %v1502 = vadd.f32 %v1490, %v1493
      %v1503 = vld [vmem:[%s8] sm:$0x1]
      %v1505 = vperm.slane %v1503, 0
      %v1507 = vmul.f32 %v1495, %v1505
      %v1508 = vmul.f32 %v1496, %v1505
      %v1509 = vmul.f32 %v1497, %v1505
      %v1510 = vmul.f32 %v1498, %v1505
      %v1511 = vmul.f32 %v1499, %v1505
      %v1512 = vmul.f32 %v1500, %v1505
      %v1513 = vmul.f32 %v1501, %v1505
      %v1514 = vmul.f32 %v1502, %v1505
      %v1515 = vld [vmem:[%s9] sm:$0x1]
      %v1517 = vperm.slane %v1515, 0
      %v1519 = vadd.f32 %v1507, %v1517
      %v1520 = vadd.f32 %v1508, %v1517
      %v1521 = vadd.f32 %v1509, %v1517
      %v1522 = vadd.f32 %v1510, %v1517
      %v1523 = vadd.f32 %v1511, %v1517
      %v1524 = vadd.f32 %v1512, %v1517
      %v1525 = vadd.f32 %v1513, %v1517
      %v1526 = vadd.f32 %v1514, %v1517
      %v1527 = vmul.f32 %v1519, 0.5
      %v1528 = vmul.f32 %v1520, 0.5
      %v1529 = vmul.f32 %v1521, 0.5
      %v1530 = vmul.f32 %v1522, 0.5
      %v1531 = vmul.f32 %v1523, 0.5
      %v1532 = vmul.f32 %v1524, 0.5
      %v1533 = vmul.f32 %v1525, 0.5
      %v1534 = vmul.f32 %v1526, 0.5
      %v1535 = vmul.f32 %v1519, 0.70710677
      %v1536 = vmul.f32 %v1520, 0.70710677
      %v1537 = vmul.f32 %v1521, 0.70710677
      %v1538 = vmul.f32 %v1522, 0.70710677
      %v1539 = vmul.f32 %v1523, 0.70710677
      %v1540 = vmul.f32 %v1524, 0.70710677
      %v1541 = vmul.f32 %v1525, 0.70710677
      %v1542 = vmul.f32 %v1526, 0.70710677
      %v1543 = vmul.f32 %v1535, %v1535
      %v1544 = vmin.f32 16.0, %v1543
      %v1545 = vmul.f32 %v1544, 2.1237322e-06
      %v1546 = vadd.f32 %v1545, 0.00028619796
      %v1547 = vmul.f32 %v1544, %v1546
      %v1548 = vadd.f32 %v1547, 0.0036580483
      %v1549 = vmul.f32 %v1544, %v1548
      %v1550 = vadd.f32 %v1549, 0.05243302
      %v1551 = vmul.f32 %v1544, %v1550
      %v1552 = vadd.f32 %v1551, 0.18741608
      %v1553 = vmul.f32 %v1544, %v1552
      %v1554 = vadd.f32 %v1553, 1.1283791
      %v1555 = vmul.f32 %v1535, %v1554
      %v1556 = vmul.f32 %v1544, 3.8918573e-05
      %v1557 = vadd.f32 %v1556, 0.001143296
      %v1558 = vmul.f32 %v1544, %v1557
      %v1559 = vadd.f32 %v1558, 0.014752088
      %v1560 = vmul.f32 %v1544, %v1559
      %v1561 = vadd.f32 %v1560, 0.112945676
      %v1562 = vmul.f32 %v1544, %v1561
      %v1563 = vadd.f32 %v1562, 0.4994258
      %v1564 = vmul.f32 %v1544, %v1563
      %v1565 = vadd.f32 %v1564, 1.0
      %v1566 = vrcp.pop %v1565
      %v1567 = vmul.f32 %v1565, %v1566
      %v1568 = vsub.f32 1.0, %v1567
      %v1569 = vmul.f32 %v1566, %v1568
      %v1570 = vadd.f32 %v1566, %v1569
      %vm1571 = vweird.f32 %v1565
      %vm1572 = vweird.f32 %v1566
      %vm1573 = vmor %vm1571, %vm1572
      %v1574 = vsel %vm1573, %v1566, %v1570
      %v1575 = vand.u32 2147483647, %v1565
      %vm1576 = vcmp.eq.f32.partialorder %v1575, 8.507059e+37
      %v1577 = vand.u32 %v1565, 2147483648
      %v1578 = vor.u32 1.1754944e-38, %v1577
      %v1579 = vsel %vm1576, %v1578, %v1574
      %v1580 = vmul.f32 %v1555, %v1579
      %v1581 = vmin.f32 %v1580, 1.0
      %v1582 = vmax.f32 %v1581, -1.0
      %v1583 = vmul.f32 %v1536, %v1536
      %v1584 = vmin.f32 16.0, %v1583
      %v1585 = vmul.f32 %v1584, 2.1237322e-06
      %v1586 = vadd.f32 %v1585, 0.00028619796
      %v1587 = vmul.f32 %v1584, %v1586
      %v1588 = vadd.f32 %v1587, 0.0036580483
      %v1589 = vmul.f32 %v1584, %v1588
      %v1590 = vadd.f32 %v1589, 0.05243302
      %v1591 = vmul.f32 %v1584, %v1590
      %v1592 = vadd.f32 %v1591, 0.18741608
      %v1593 = vmul.f32 %v1584, %v1592
      %v1594 = vadd.f32 %v1593, 1.1283791
      %v1595 = vmul.f32 %v1536, %v1594
      %v1596 = vmul.f32 %v1584, 3.8918573e-05
      %v1597 = vadd.f32 %v1596, 0.001143296
      %v1598 = vmul.f32 %v1584, %v1597
      %v1599 = vadd.f32 %v1598, 0.014752088
      %v1600 = vmul.f32 %v1584, %v1599
      %v1601 = vadd.f32 %v1600, 0.112945676
      %v1602 = vmul.f32 %v1584, %v1601
      %v1603 = vadd.f32 %v1602, 0.4994258
      %v1604 = vmul.f32 %v1584, %v1603
      %v1605 = vadd.f32 %v1604, 1.0
      %v1606 = vrcp.pop %v1605
      %v1607 = vmul.f32 %v1605, %v1606
      %v1608 = vsub.f32 1.0, %v1607
      %v1609 = vmul.f32 %v1606, %v1608
      %v1610 = vadd.f32 %v1606, %v1609
      %vm1611 = vweird.f32 %v1605
      %vm1612 = vweird.f32 %v1606
      %vm1613 = vmor %vm1611, %vm1612
      %v1614 = vsel %vm1613, %v1606, %v1610
      %v1615 = vand.u32 2147483647, %v1605
      %vm1616 = vcmp.eq.f32.partialorder %v1615, 8.507059e+37
      %v1617 = vand.u32 %v1605, 2147483648
      %v1618 = vor.u32 1.1754944e-38, %v1617
      %v1619 = vsel %vm1616, %v1618, %v1614
      %v1620 = vmul.f32 %v1595, %v1619
      %v1621 = vmin.f32 %v1620, 1.0
      %v1622 = vmax.f32 %v1621, -1.0
      %v1623 = vmul.f32 %v1537, %v1537
      %v1624 = vmin.f32 16.0, %v1623
      %v1625 = vmul.f32 %v1624, 2.1237322e-06
      %v1626 = vadd.f32 %v1625, 0.00028619796
      %v1627 = vmul.f32 %v1624, %v1626
      %v1628 = vadd.f32 %v1627, 0.0036580483
      %v1629 = vmul.f32 %v1624, %v1628
      %v1630 = vadd.f32 %v1629, 0.05243302
      %v1631 = vmul.f32 %v1624, %v1630
      %v1632 = vadd.f32 %v1631, 0.18741608
      %v1633 = vmul.f32 %v1624, %v1632
      %v1634 = vadd.f32 %v1633, 1.1283791
      %v1635 = vmul.f32 %v1537, %v1634
      %v1636 = vmul.f32 %v1624, 3.8918573e-05
      %v1637 = vadd.f32 %v1636, 0.001143296
      %v1638 = vmul.f32 %v1624, %v1637
      %v1639 = vadd.f32 %v1638, 0.014752088
      %v1640 = vmul.f32 %v1624, %v1639
      %v1641 = vadd.f32 %v1640, 0.112945676
      %v1642 = vmul.f32 %v1624, %v1641
      %v1643 = vadd.f32 %v1642, 0.4994258
      %v1644 = vmul.f32 %v1624, %v1643
      %v1645 = vadd.f32 %v1644, 1.0
      %v1646 = vrcp.pop %v1645
      %v1647 = vmul.f32 %v1645, %v1646
      %v1648 = vsub.f32 1.0, %v1647
      %v1649 = vmul.f32 %v1646, %v1648
      %v1650 = vadd.f32 %v1646, %v1649
      %vm1651 = vweird.f32 %v1645
      %vm1652 = vweird.f32 %v1646
      %vm1653 = vmor %vm1651, %vm1652
      %v1654 = vsel %vm1653, %v1646, %v1650
      %v1655 = vand.u32 2147483647, %v1645
      %vm1656 = vcmp.eq.f32.partialorder %v1655, 8.507059e+37
      %v1657 = vand.u32 %v1645, 2147483648
      %v1658 = vor.u32 1.1754944e-38, %v1657
      %v1659 = vsel %vm1656, %v1658, %v1654
      %v1660 = vmul.f32 %v1635, %v1659
      %v1661 = vmin.f32 %v1660, 1.0
      %v1662 = vmax.f32 %v1661, -1.0
      %v1663 = vmul.f32 %v1538, %v1538
      %v1664 = vmin.f32 16.0, %v1663
      %v1665 = vmul.f32 %v1664, 2.1237322e-06
      %v1666 = vadd.f32 %v1665, 0.00028619796
      %v1667 = vmul.f32 %v1664, %v1666
      %v1668 = vadd.f32 %v1667, 0.0036580483
      %v1669 = vmul.f32 %v1664, %v1668
      %v1670 = vadd.f32 %v1669, 0.05243302
      %v1671 = vmul.f32 %v1664, %v1670
      %v1672 = vadd.f32 %v1671, 0.18741608
      %v1673 = vmul.f32 %v1664, %v1672
      %v1674 = vadd.f32 %v1673, 1.1283791
      %v1675 = vmul.f32 %v1538, %v1674
      %v1676 = vmul.f32 %v1664, 3.8918573e-05
      %v1677 = vadd.f32 %v1676, 0.001143296
      %v1678 = vmul.f32 %v1664, %v1677
      %v1679 = vadd.f32 %v1678, 0.014752088
      %v1680 = vmul.f32 %v1664, %v1679
      %v1681 = vadd.f32 %v1680, 0.112945676
      %v1682 = vmul.f32 %v1664, %v1681
      %v1683 = vadd.f32 %v1682, 0.4994258
      %v1684 = vmul.f32 %v1664, %v1683
      %v1685 = vadd.f32 %v1684, 1.0
      %v1686 = vrcp.pop %v1685
      %v1687 = vmul.f32 %v1685, %v1686
      %v1688 = vsub.f32 1.0, %v1687
      %v1689 = vmul.f32 %v1686, %v1688
      %v1690 = vadd.f32 %v1686, %v1689
      %vm1691 = vweird.f32 %v1685
      %vm1692 = vweird.f32 %v1686
      %vm1693 = vmor %vm1691, %vm1692
      %v1694 = vsel %vm1693, %v1686, %v1690
      %v1695 = vand.u32 2147483647, %v1685
      %vm1696 = vcmp.eq.f32.partialorder %v1695, 8.507059e+37
      %v1697 = vand.u32 %v1685, 2147483648
      %v1698 = vor.u32 1.1754944e-38, %v1697
      %v1699 = vsel %vm1696, %v1698, %v1694
      %v1700 = vmul.f32 %v1675, %v1699
      %v1701 = vmin.f32 %v1700, 1.0
      %v1702 = vmax.f32 %v1701, -1.0
      %v1703 = vmul.f32 %v1539, %v1539
      %v1704 = vmin.f32 16.0, %v1703
      %v1705 = vmul.f32 %v1704, 2.1237322e-06
      %v1706 = vadd.f32 %v1705, 0.00028619796
      %v1707 = vmul.f32 %v1704, %v1706
      %v1708 = vadd.f32 %v1707, 0.0036580483
      %v1709 = vmul.f32 %v1704, %v1708
      %v1710 = vadd.f32 %v1709, 0.05243302
      %v1711 = vmul.f32 %v1704, %v1710
      %v1712 = vadd.f32 %v1711, 0.18741608
      %v1713 = vmul.f32 %v1704, %v1712
      %v1714 = vadd.f32 %v1713, 1.1283791
      %v1715 = vmul.f32 %v1539, %v1714
      %v1716 = vmul.f32 %v1704, 3.8918573e-05
      %v1717 = vadd.f32 %v1716, 0.001143296
      %v1718 = vmul.f32 %v1704, %v1717
      %v1719 = vadd.f32 %v1718, 0.014752088
      %v1720 = vmul.f32 %v1704, %v1719
      %v1721 = vadd.f32 %v1720, 0.112945676
      %v1722 = vmul.f32 %v1704, %v1721
      %v1723 = vadd.f32 %v1722, 0.4994258
      %v1724 = vmul.f32 %v1704, %v1723
      %v1725 = vadd.f32 %v1724, 1.0
      %v1726 = vrcp.pop %v1725
      %v1727 = vmul.f32 %v1725, %v1726
      %v1728 = vsub.f32 1.0, %v1727
      %v1729 = vmul.f32 %v1726, %v1728
      %v1730 = vadd.f32 %v1726, %v1729
      %vm1731 = vweird.f32 %v1725
      %vm1732 = vweird.f32 %v1726
      %vm1733 = vmor %vm1731, %vm1732
      %v1734 = vsel %vm1733, %v1726, %v1730
      %v1735 = vand.u32 2147483647, %v1725
      %vm1736 = vcmp.eq.f32.partialorder %v1735, 8.507059e+37
      %v1737 = vand.u32 %v1725, 2147483648
      %v1738 = vor.u32 1.1754944e-38, %v1737
      %v1739 = vsel %vm1736, %v1738, %v1734
      %v1740 = vmul.f32 %v1715, %v1739
      %v1741 = vmin.f32 %v1740, 1.0
      %v1742 = vmax.f32 %v1741, -1.0
      %v1743 = vmul.f32 %v1540, %v1540
      %v1744 = vmin.f32 16.0, %v1743
      %v1745 = vmul.f32 %v1744, 2.1237322e-06
      %v1746 = vadd.f32 %v1745, 0.00028619796
      %v1747 = vmul.f32 %v1744, %v1746
      %v1748 = vadd.f32 %v1747, 0.0036580483
      %v1749 = vmul.f32 %v1744, %v1748
      %v1750 = vadd.f32 %v1749, 0.05243302
      %v1751 = vmul.f32 %v1744, %v1750
      %v1752 = vadd.f32 %v1751, 0.18741608
      %v1753 = vmul.f32 %v1744, %v1752
      %v1754 = vadd.f32 %v1753, 1.1283791
      %v1755 = vmul.f32 %v1540, %v1754
      %v1756 = vmul.f32 %v1744, 3.8918573e-05
      %v1757 = vadd.f32 %v1756, 0.001143296
      %v1758 = vmul.f32 %v1744, %v1757
      %v1759 = vadd.f32 %v1758, 0.014752088
      %v1760 = vmul.f32 %v1744, %v1759
      %v1761 = vadd.f32 %v1760, 0.112945676
      %v1762 = vmul.f32 %v1744, %v1761
      %v1763 = vadd.f32 %v1762, 0.4994258
      %v1764 = vmul.f32 %v1744, %v1763
      %v1765 = vadd.f32 %v1764, 1.0
      %v1766 = vrcp.pop %v1765
      %v1767 = vmul.f32 %v1765, %v1766
      %v1768 = vsub.f32 1.0, %v1767
      %v1769 = vmul.f32 %v1766, %v1768
      %v1770 = vadd.f32 %v1766, %v1769
      %vm1771 = vweird.f32 %v1765
      %vm1772 = vweird.f32 %v1766
      %vm1773 = vmor %vm1771, %vm1772
      %v1774 = vsel %vm1773, %v1766, %v1770
      %v1775 = vand.u32 2147483647, %v1765
      %vm1776 = vcmp.eq.f32.partialorder %v1775, 8.507059e+37
      %v1777 = vand.u32 %v1765, 2147483648
      %v1778 = vor.u32 1.1754944e-38, %v1777
      %v1779 = vsel %vm1776, %v1778, %v1774
      %v1780 = vmul.f32 %v1755, %v1779
      %v1781 = vmin.f32 %v1780, 1.0
      %v1782 = vmax.f32 %v1781, -1.0
      %v1783 = vmul.f32 %v1541, %v1541
      %v1784 = vmin.f32 16.0, %v1783
      %v1785 = vmul.f32 %v1784, 2.1237322e-06
      %v1786 = vadd.f32 %v1785, 0.00028619796
      %v1787 = vmul.f32 %v1784, %v1786
      %v1788 = vadd.f32 %v1787, 0.0036580483
      %v1789 = vmul.f32 %v1784, %v1788
      %v1790 = vadd.f32 %v1789, 0.05243302
      %v1791 = vmul.f32 %v1784, %v1790
      %v1792 = vadd.f32 %v1791, 0.18741608
      %v1793 = vmul.f32 %v1784, %v1792
      %v1794 = vadd.f32 %v1793, 1.1283791
      %v1795 = vmul.f32 %v1541, %v1794
      %v1796 = vmul.f32 %v1784, 3.8918573e-05
      %v1797 = vadd.f32 %v1796, 0.001143296
      %v1798 = vmul.f32 %v1784, %v1797
      %v1799 = vadd.f32 %v1798, 0.014752088
      %v1800 = vmul.f32 %v1784, %v1799
      %v1801 = vadd.f32 %v1800, 0.112945676
      %v1802 = vmul.f32 %v1784, %v1801
      %v1803 = vadd.f32 %v1802, 0.4994258
      %v1804 = vmul.f32 %v1784, %v1803
      %v1805 = vadd.f32 %v1804, 1.0
      %v1806 = vrcp.pop %v1805
      %v1807 = vmul.f32 %v1805, %v1806
      %v1808 = vsub.f32 1.0, %v1807
      %v1809 = vmul.f32 %v1806, %v1808
      %v1810 = vadd.f32 %v1806, %v1809
      %vm1811 = vweird.f32 %v1805
      %vm1812 = vweird.f32 %v1806
      %vm1813 = vmor %vm1811, %vm1812
      %v1814 = vsel %vm1813, %v1806, %v1810
      %v1815 = vand.u32 2147483647, %v1805
      %vm1816 = vcmp.eq.f32.partialorder %v1815, 8.507059e+37
      %v1817 = vand.u32 %v1805, 2147483648
      %v1818 = vor.u32 1.1754944e-38, %v1817
      %v1819 = vsel %vm1816, %v1818, %v1814
      %v1820 = vmul.f32 %v1795, %v1819
      %v1821 = vmin.f32 %v1820, 1.0
      %v1822 = vmax.f32 %v1821, -1.0
      %v1823 = vmul.f32 %v1542, %v1542
      %v1824 = vmin.f32 16.0, %v1823
      %v1825 = vmul.f32 %v1824, 2.1237322e-06
      %v1826 = vadd.f32 %v1825, 0.00028619796
      %v1827 = vmul.f32 %v1824, %v1826
      %v1828 = vadd.f32 %v1827, 0.0036580483
      %v1829 = vmul.f32 %v1824, %v1828
      %v1830 = vadd.f32 %v1829, 0.05243302
      %v1831 = vmul.f32 %v1824, %v1830
      %v1832 = vadd.f32 %v1831, 0.18741608
      %v1833 = vmul.f32 %v1824, %v1832
      %v1834 = vadd.f32 %v1833, 1.1283791
      %v1835 = vmul.f32 %v1542, %v1834
      %v1836 = vmul.f32 %v1824, 3.8918573e-05
      %v1837 = vadd.f32 %v1836, 0.001143296
      %v1838 = vmul.f32 %v1824, %v1837
      %v1839 = vadd.f32 %v1838, 0.014752088
      %v1840 = vmul.f32 %v1824, %v1839
      %v1841 = vadd.f32 %v1840, 0.112945676
      %v1842 = vmul.f32 %v1824, %v1841
      %v1843 = vadd.f32 %v1842, 0.4994258
      %v1844 = vmul.f32 %v1824, %v1843
      %v1845 = vadd.f32 %v1844, 1.0
      %v1846 = vrcp.pop %v1845
      %v1847 = vmul.f32 %v1845, %v1846
      %v1848 = vsub.f32 1.0, %v1847
      %v1849 = vmul.f32 %v1846, %v1848
      %v1850 = vadd.f32 %v1846, %v1849
      %vm1851 = vweird.f32 %v1845
      %vm1852 = vweird.f32 %v1846
      %vm1853 = vmor %vm1851, %vm1852
      %v1854 = vsel %vm1853, %v1846, %v1850
      %v1855 = vand.u32 2147483647, %v1845
      %vm1856 = vcmp.eq.f32.partialorder %v1855, 8.507059e+37
      %v1857 = vand.u32 %v1845, 2147483648
      %v1858 = vor.u32 1.1754944e-38, %v1857
      %v1859 = vsel %vm1856, %v1858, %v1854
      %v1860 = vmul.f32 %v1835, %v1859
      %v1861 = vmin.f32 %v1860, 1.0
      %v1862 = vmax.f32 %v1861, -1.0
      %v1863 = vadd.f32 %v1582, 1.0
      %v1864 = vadd.f32 %v1622, 1.0
      %v1865 = vadd.f32 %v1662, 1.0
      %v1866 = vadd.f32 %v1702, 1.0
      %v1867 = vadd.f32 %v1742, 1.0
      %v1868 = vadd.f32 %v1782, 1.0
      %v1869 = vadd.f32 %v1822, 1.0
      %v1870 = vadd.f32 %v1862, 1.0
      %v1871 = vmul.f32 %v1527, %v1863
      %v1872 = vmul.f32 %v1528, %v1864
      %v1873 = vmul.f32 %v1529, %v1865
      %v1874 = vmul.f32 %v1530, %v1866
      %v1875 = vmul.f32 %v1531, %v1867
      %v1876 = vmul.f32 %v1532, %v1868
      %v1877 = vmul.f32 %v1533, %v1869
      %v1878 = vmul.f32 %v1534, %v1870
      %v1879 = vpack.c.bf16 %v1872, %v1871
      %v1880 = vpack.c.bf16 %v1874, %v1873
      %v1881 = vpack.c.bf16 %v1876, %v1875
      %v1882 = vpack.c.bf16 %v1878, %v1877
      %v1883 = vld [vmem:[%s12] sm:$0xf]
      %v1884 = vld [vmem:[%s12 + $0x4] sm:$0xf]
      %v1885 = vld [vmem:[%s12 + $0x8] sm:$0xf]
      %v1886 = vld [vmem:[%s12 + $0xc] sm:$0xf]
      %v1887 = vld [vmem:[%s13] sm:$0x1]
      %v1889 = vperm.slane %v1887, 0
      %v1895 = vunpack.c.l.b16 %v1883
      %v1896 = vunpack.c.l.b16 %v1884
      %v1897 = vunpack.c.l.b16 %v1885
      %v1898 = vunpack.c.l.b16 %v1886
      %v1899 = vpack.c.b16 %v1896, %v1895
      %v1900 = vpack.c.b16 %v1898, %v1897
      %v1904 = vsel %vm823, %v1879, 0
      %v1907 = vsel %vm823, %v1880, 0
      %v1910 = vsel %vm823, %v1881, 0
      %v1913 = vsel %vm823, %v1882, 0
      %1915 = vmatpush.bf16.msra.mxu0 0
      %1916 = vmatpush.bf16.msra.mxu0 0
      %1917 = vmatpush.bf16.msra.mxu0 0
      %1918 = vmatpush.bf16.msra.mxu0 0
      %1919 = vmatpush.bf16.msra.mxu0 0
      %1920 = vmatpush.bf16.msra.mxu0 0
      %1921 = vmatpush.bf16.msra.mxu0 %v1900
      %1922 = vmatpush.bf16.msra.mxu0 %v1899
      %1923 = vmatmul.bf16.gmra.mxu0 %v1904
      %v1924 = vpop.f32.mrf.mxu0
      %v1925 = vadd.f32 %v1889, %v1924
      %v1926 = vpop.f32.mrf.mxu0
      %v1927 = vadd.f32 %v1889, %v1926
      %1928 = vmatmul.bf16.gmra.mxu0 %v1907
      %v1929 = vpop.f32.mrf.mxu0
      %v1930 = vadd.f32 %v1889, %v1929
      %v1931 = vpop.f32.mrf.mxu0
      %v1932 = vadd.f32 %v1889, %v1931
      %1933 = vmatmul.bf16.gmra.mxu0 %v1910
      %v1934 = vpop.f32.mrf.mxu0
      %v1935 = vadd.f32 %v1889, %v1934
      %v1936 = vpop.f32.mrf.mxu0
      %v1937 = vadd.f32 %v1889, %v1936
      %1938 = vmatmul.bf16.gmra.mxu0 %v1913
      %v1939 = vpop.f32.mrf.mxu0
      %v1940 = vadd.f32 %v1889, %v1939
      %v1941 = vpop.f32.mrf.mxu0
      %v1942 = vadd.f32 %v1889, %v1941
      %1943 = vdwg.mxu0
      %v1944 = vld [vmem:[%s14] sm:$0x1]
      %v1946 = vperm.slane %v1944, 0
      %v1948 = vmul.f32 %v1925, %v1946
      %v1949 = vmul.f32 %v1927, %v1946
      %v1950 = vmul.f32 %v1930, %v1946
      %v1951 = vmul.f32 %v1932, %v1946
      %v1952 = vmul.f32 %v1935, %v1946
      %v1953 = vmul.f32 %v1937, %v1946
      %v1954 = vmul.f32 %v1940, %v1946
      %v1955 = vmul.f32 %v1942, %v1946
      %v1956 = vld [vmem:[%s15] sm:$0x1]
      %v1958 = vperm.slane %v1956, 0
      %v1960 = vadd.f32 %v1948, %v1958
      %v1961 = vadd.f32 %v1949, %v1958
      %v1962 = vadd.f32 %v1950, %v1958
      %v1963 = vadd.f32 %v1951, %v1958
      %v1964 = vadd.f32 %v1952, %v1958
      %v1965 = vadd.f32 %v1953, %v1958
      %v1966 = vadd.f32 %v1954, %v1958
      %v1967 = vadd.f32 %v1955, %v1958
      %v1968 = vmul.f32 %v1960, 0.5
      %v1969 = vmul.f32 %v1961, 0.5
      %v1970 = vmul.f32 %v1962, 0.5
      %v1971 = vmul.f32 %v1963, 0.5
      %v1972 = vmul.f32 %v1964, 0.5
      %v1973 = vmul.f32 %v1965, 0.5
      %v1974 = vmul.f32 %v1966, 0.5
      %v1975 = vmul.f32 %v1967, 0.5
      %v1976 = vmul.f32 %v1960, 0.70710677
      %v1977 = vmul.f32 %v1961, 0.70710677
      %v1978 = vmul.f32 %v1962, 0.70710677
      %v1979 = vmul.f32 %v1963, 0.70710677
      %v1980 = vmul.f32 %v1964, 0.70710677
      %v1981 = vmul.f32 %v1965, 0.70710677
      %v1982 = vmul.f32 %v1966, 0.70710677
      %v1983 = vmul.f32 %v1967, 0.70710677
      %v1984 = vmul.f32 %v1976, %v1976
      %v1985 = vmin.f32 16.0, %v1984
      %v1986 = vmul.f32 %v1985, 2.1237322e-06
      %v1987 = vadd.f32 %v1986, 0.00028619796
      %v1988 = vmul.f32 %v1985, %v1987
      %v1989 = vadd.f32 %v1988, 0.0036580483
      %v1990 = vmul.f32 %v1985, %v1989
      %v1991 = vadd.f32 %v1990, 0.05243302
      %v1992 = vmul.f32 %v1985, %v1991
      %v1993 = vadd.f32 %v1992, 0.18741608
      %v1994 = vmul.f32 %v1985, %v1993
      %v1995 = vadd.f32 %v1994, 1.1283791
      %v1996 = vmul.f32 %v1976, %v1995
      %v1997 = vmul.f32 %v1985, 3.8918573e-05
      %v1998 = vadd.f32 %v1997, 0.001143296
      %v1999 = vmul.f32 %v1985, %v1998
      %v2000 = vadd.f32 %v1999, 0.014752088
      %v2001 = vmul.f32 %v1985, %v2000
      %v2002 = vadd.f32 %v2001, 0.112945676
      %v2003 = vmul.f32 %v1985, %v2002
      %v2004 = vadd.f32 %v2003, 0.4994258
      %v2005 = vmul.f32 %v1985, %v2004
      %v2006 = vadd.f32 %v2005, 1.0
      %v2007 = vrcp.pop %v2006
      %v2008 = vmul.f32 %v2006, %v2007
      %v2009 = vsub.f32 1.0, %v2008
      %v2010 = vmul.f32 %v2007, %v2009
      %v2011 = vadd.f32 %v2007, %v2010
      %vm2012 = vweird.f32 %v2006
      %vm2013 = vweird.f32 %v2007
      %vm2014 = vmor %vm2012, %vm2013
      %v2015 = vsel %vm2014, %v2007, %v2011
      %v2016 = vand.u32 2147483647, %v2006
      %vm2017 = vcmp.eq.f32.partialorder %v2016, 8.507059e+37
      %v2018 = vand.u32 %v2006, 2147483648
      %v2019 = vor.u32 1.1754944e-38, %v2018
      %v2020 = vsel %vm2017, %v2019, %v2015
      %v2021 = vmul.f32 %v1996, %v2020
      %v2022 = vmin.f32 %v2021, 1.0
      %v2023 = vmax.f32 %v2022, -1.0
      %v2024 = vmul.f32 %v1977, %v1977
      %v2025 = vmin.f32 16.0, %v2024
      %v2026 = vmul.f32 %v2025, 2.1237322e-06
      %v2027 = vadd.f32 %v2026, 0.00028619796
      %v2028 = vmul.f32 %v2025, %v2027
      %v2029 = vadd.f32 %v2028, 0.0036580483
      %v2030 = vmul.f32 %v2025, %v2029
      %v2031 = vadd.f32 %v2030, 0.05243302
      %v2032 = vmul.f32 %v2025, %v2031
      %v2033 = vadd.f32 %v2032, 0.18741608
      %v2034 = vmul.f32 %v2025, %v2033
      %v2035 = vadd.f32 %v2034, 1.1283791
      %v2036 = vmul.f32 %v1977, %v2035
      %v2037 = vmul.f32 %v2025, 3.8918573e-05
      %v2038 = vadd.f32 %v2037, 0.001143296
      %v2039 = vmul.f32 %v2025, %v2038
      %v2040 = vadd.f32 %v2039, 0.014752088
      %v2041 = vmul.f32 %v2025, %v2040
      %v2042 = vadd.f32 %v2041, 0.112945676
      %v2043 = vmul.f32 %v2025, %v2042
      %v2044 = vadd.f32 %v2043, 0.4994258
      %v2045 = vmul.f32 %v2025, %v2044
      %v2046 = vadd.f32 %v2045, 1.0
      %v2047 = vrcp.pop %v2046
      %v2048 = vmul.f32 %v2046, %v2047
      %v2049 = vsub.f32 1.0, %v2048
      %v2050 = vmul.f32 %v2047, %v2049
      %v2051 = vadd.f32 %v2047, %v2050
      %vm2052 = vweird.f32 %v2046
      %vm2053 = vweird.f32 %v2047
      %vm2054 = vmor %vm2052, %vm2053
      %v2055 = vsel %vm2054, %v2047, %v2051
      %v2056 = vand.u32 2147483647, %v2046
      %vm2057 = vcmp.eq.f32.partialorder %v2056, 8.507059e+37
      %v2058 = vand.u32 %v2046, 2147483648
      %v2059 = vor.u32 1.1754944e-38, %v2058
      %v2060 = vsel %vm2057, %v2059, %v2055
      %v2061 = vmul.f32 %v2036, %v2060
      %v2062 = vmin.f32 %v2061, 1.0
      %v2063 = vmax.f32 %v2062, -1.0
      %v2064 = vmul.f32 %v1978, %v1978
      %v2065 = vmin.f32 16.0, %v2064
      %v2066 = vmul.f32 %v2065, 2.1237322e-06
      %v2067 = vadd.f32 %v2066, 0.00028619796
      %v2068 = vmul.f32 %v2065, %v2067
      %v2069 = vadd.f32 %v2068, 0.0036580483
      %v2070 = vmul.f32 %v2065, %v2069
      %v2071 = vadd.f32 %v2070, 0.05243302
      %v2072 = vmul.f32 %v2065, %v2071
      %v2073 = vadd.f32 %v2072, 0.18741608
      %v2074 = vmul.f32 %v2065, %v2073
      %v2075 = vadd.f32 %v2074, 1.1283791
      %v2076 = vmul.f32 %v1978, %v2075
      %v2077 = vmul.f32 %v2065, 3.8918573e-05
      %v2078 = vadd.f32 %v2077, 0.001143296
      %v2079 = vmul.f32 %v2065, %v2078
      %v2080 = vadd.f32 %v2079, 0.014752088
      %v2081 = vmul.f32 %v2065, %v2080
      %v2082 = vadd.f32 %v2081, 0.112945676
      %v2083 = vmul.f32 %v2065, %v2082
      %v2084 = vadd.f32 %v2083, 0.4994258
      %v2085 = vmul.f32 %v2065, %v2084
      %v2086 = vadd.f32 %v2085, 1.0
      %v2087 = vrcp.pop %v2086
      %v2088 = vmul.f32 %v2086, %v2087
      %v2089 = vsub.f32 1.0, %v2088
      %v2090 = vmul.f32 %v2087, %v2089
      %v2091 = vadd.f32 %v2087, %v2090
      %vm2092 = vweird.f32 %v2086
      %vm2093 = vweird.f32 %v2087
      %vm2094 = vmor %vm2092, %vm2093
      %v2095 = vsel %vm2094, %v2087, %v2091
      %v2096 = vand.u32 2147483647, %v2086
      %vm2097 = vcmp.eq.f32.partialorder %v2096, 8.507059e+37
      %v2098 = vand.u32 %v2086, 2147483648
      %v2099 = vor.u32 1.1754944e-38, %v2098
      %v2100 = vsel %vm2097, %v2099, %v2095
      %v2101 = vmul.f32 %v2076, %v2100
      %v2102 = vmin.f32 %v2101, 1.0
      %v2103 = vmax.f32 %v2102, -1.0
      %v2104 = vmul.f32 %v1979, %v1979
      %v2105 = vmin.f32 16.0, %v2104
      %v2106 = vmul.f32 %v2105, 2.1237322e-06
      %v2107 = vadd.f32 %v2106, 0.00028619796
      %v2108 = vmul.f32 %v2105, %v2107
      %v2109 = vadd.f32 %v2108, 0.0036580483
      %v2110 = vmul.f32 %v2105, %v2109
      %v2111 = vadd.f32 %v2110, 0.05243302
      %v2112 = vmul.f32 %v2105, %v2111
      %v2113 = vadd.f32 %v2112, 0.18741608
      %v2114 = vmul.f32 %v2105, %v2113
      %v2115 = vadd.f32 %v2114, 1.1283791
      %v2116 = vmul.f32 %v1979, %v2115
      %v2117 = vmul.f32 %v2105, 3.8918573e-05
      %v2118 = vadd.f32 %v2117, 0.001143296
      %v2119 = vmul.f32 %v2105, %v2118
      %v2120 = vadd.f32 %v2119, 0.014752088
      %v2121 = vmul.f32 %v2105, %v2120
      %v2122 = vadd.f32 %v2121, 0.112945676
      %v2123 = vmul.f32 %v2105, %v2122
      %v2124 = vadd.f32 %v2123, 0.4994258
      %v2125 = vmul.f32 %v2105, %v2124
      %v2126 = vadd.f32 %v2125, 1.0
      %v2127 = vrcp.pop %v2126
      %v2128 = vmul.f32 %v2126, %v2127
      %v2129 = vsub.f32 1.0, %v2128
      %v2130 = vmul.f32 %v2127, %v2129
      %v2131 = vadd.f32 %v2127, %v2130
      %vm2132 = vweird.f32 %v2126
      %vm2133 = vweird.f32 %v2127
      %vm2134 = vmor %vm2132, %vm2133
      %v2135 = vsel %vm2134, %v2127, %v2131
      %v2136 = vand.u32 2147483647, %v2126
      %vm2137 = vcmp.eq.f32.partialorder %v2136, 8.507059e+37
      %v2138 = vand.u32 %v2126, 2147483648
      %v2139 = vor.u32 1.1754944e-38, %v2138
      %v2140 = vsel %vm2137, %v2139, %v2135
      %v2141 = vmul.f32 %v2116, %v2140
      %v2142 = vmin.f32 %v2141, 1.0
      %v2143 = vmax.f32 %v2142, -1.0
      %v2144 = vmul.f32 %v1980, %v1980
      %v2145 = vmin.f32 16.0, %v2144
      %v2146 = vmul.f32 %v2145, 2.1237322e-06
      %v2147 = vadd.f32 %v2146, 0.00028619796
      %v2148 = vmul.f32 %v2145, %v2147
      %v2149 = vadd.f32 %v2148, 0.0036580483
      %v2150 = vmul.f32 %v2145, %v2149
      %v2151 = vadd.f32 %v2150, 0.05243302
      %v2152 = vmul.f32 %v2145, %v2151
      %v2153 = vadd.f32 %v2152, 0.18741608
      %v2154 = vmul.f32 %v2145, %v2153
      %v2155 = vadd.f32 %v2154, 1.1283791
      %v2156 = vmul.f32 %v1980, %v2155
      %v2157 = vmul.f32 %v2145, 3.8918573e-05
      %v2158 = vadd.f32 %v2157, 0.001143296
      %v2159 = vmul.f32 %v2145, %v2158
      %v2160 = vadd.f32 %v2159, 0.014752088
      %v2161 = vmul.f32 %v2145, %v2160
      %v2162 = vadd.f32 %v2161, 0.112945676
      %v2163 = vmul.f32 %v2145, %v2162
      %v2164 = vadd.f32 %v2163, 0.4994258
      %v2165 = vmul.f32 %v2145, %v2164
      %v2166 = vadd.f32 %v2165, 1.0
      %v2167 = vrcp.pop %v2166
      %v2168 = vmul.f32 %v2166, %v2167
      %v2169 = vsub.f32 1.0, %v2168
      %v2170 = vmul.f32 %v2167, %v2169
      %v2171 = vadd.f32 %v2167, %v2170
      %vm2172 = vweird.f32 %v2166
      %vm2173 = vweird.f32 %v2167
      %vm2174 = vmor %vm2172, %vm2173
      %v2175 = vsel %vm2174, %v2167, %v2171
      %v2176 = vand.u32 2147483647, %v2166
      %vm2177 = vcmp.eq.f32.partialorder %v2176, 8.507059e+37
      %v2178 = vand.u32 %v2166, 2147483648
      %v2179 = vor.u32 1.1754944e-38, %v2178
      %v2180 = vsel %vm2177, %v2179, %v2175
      %v2181 = vmul.f32 %v2156, %v2180
      %v2182 = vmin.f32 %v2181, 1.0
      %v2183 = vmax.f32 %v2182, -1.0
      %v2184 = vmul.f32 %v1981, %v1981
      %v2185 = vmin.f32 16.0, %v2184
      %v2186 = vmul.f32 %v2185, 2.1237322e-06
      %v2187 = vadd.f32 %v2186, 0.00028619796
      %v2188 = vmul.f32 %v2185, %v2187
      %v2189 = vadd.f32 %v2188, 0.0036580483
      %v2190 = vmul.f32 %v2185, %v2189
      %v2191 = vadd.f32 %v2190, 0.05243302
      %v2192 = vmul.f32 %v2185, %v2191
      %v2193 = vadd.f32 %v2192, 0.18741608
      %v2194 = vmul.f32 %v2185, %v2193
      %v2195 = vadd.f32 %v2194, 1.1283791
      %v2196 = vmul.f32 %v1981, %v2195
      %v2197 = vmul.f32 %v2185, 3.8918573e-05
      %v2198 = vadd.f32 %v2197, 0.001143296
      %v2199 = vmul.f32 %v2185, %v2198
      %v2200 = vadd.f32 %v2199, 0.014752088
      %v2201 = vmul.f32 %v2185, %v2200
      %v2202 = vadd.f32 %v2201, 0.112945676
      %v2203 = vmul.f32 %v2185, %v2202
      %v2204 = vadd.f32 %v2203, 0.4994258
      %v2205 = vmul.f32 %v2185, %v2204
      %v2206 = vadd.f32 %v2205, 1.0
      %v2207 = vrcp.pop %v2206
      %v2208 = vmul.f32 %v2206, %v2207
      %v2209 = vsub.f32 1.0, %v2208
      %v2210 = vmul.f32 %v2207, %v2209
      %v2211 = vadd.f32 %v2207, %v2210
      %vm2212 = vweird.f32 %v2206
      %vm2213 = vweird.f32 %v2207
      %vm2214 = vmor %vm2212, %vm2213
      %v2215 = vsel %vm2214, %v2207, %v2211
      %v2216 = vand.u32 2147483647, %v2206
      %vm2217 = vcmp.eq.f32.partialorder %v2216, 8.507059e+37
      %v2218 = vand.u32 %v2206, 2147483648
      %v2219 = vor.u32 1.1754944e-38, %v2218
      %v2220 = vsel %vm2217, %v2219, %v2215
      %v2221 = vmul.f32 %v2196, %v2220
      %v2222 = vmin.f32 %v2221, 1.0
      %v2223 = vmax.f32 %v2222, -1.0
      %v2224 = vmul.f32 %v1982, %v1982
      %v2225 = vmin.f32 16.0, %v2224
      %v2226 = vmul.f32 %v2225, 2.1237322e-06
      %v2227 = vadd.f32 %v2226, 0.00028619796
      %v2228 = vmul.f32 %v2225, %v2227
      %v2229 = vadd.f32 %v2228, 0.0036580483
      %v2230 = vmul.f32 %v2225, %v2229
      %v2231 = vadd.f32 %v2230, 0.05243302
      %v2232 = vmul.f32 %v2225, %v2231
      %v2233 = vadd.f32 %v2232, 0.18741608
      %v2234 = vmul.f32 %v2225, %v2233
      %v2235 = vadd.f32 %v2234, 1.1283791
      %v2236 = vmul.f32 %v1982, %v2235
      %v2237 = vmul.f32 %v2225, 3.8918573e-05
      %v2238 = vadd.f32 %v2237, 0.001143296
      %v2239 = vmul.f32 %v2225, %v2238
      %v2240 = vadd.f32 %v2239, 0.014752088
      %v2241 = vmul.f32 %v2225, %v2240
      %v2242 = vadd.f32 %v2241, 0.112945676
      %v2243 = vmul.f32 %v2225, %v2242
      %v2244 = vadd.f32 %v2243, 0.4994258
      %v2245 = vmul.f32 %v2225, %v2244
      %v2246 = vadd.f32 %v2245, 1.0
      %v2247 = vrcp.pop %v2246
      %v2248 = vmul.f32 %v2246, %v2247
      %v2249 = vsub.f32 1.0, %v2248
      %v2250 = vmul.f32 %v2247, %v2249
      %v2251 = vadd.f32 %v2247, %v2250
      %vm2252 = vweird.f32 %v2246
      %vm2253 = vweird.f32 %v2247
      %vm2254 = vmor %vm2252, %vm2253
      %v2255 = vsel %vm2254, %v2247, %v2251
      %v2256 = vand.u32 2147483647, %v2246
      %vm2257 = vcmp.eq.f32.partialorder %v2256, 8.507059e+37
      %v2258 = vand.u32 %v2246, 2147483648
      %v2259 = vor.u32 1.1754944e-38, %v2258
      %v2260 = vsel %vm2257, %v2259, %v2255
      %v2261 = vmul.f32 %v2236, %v2260
      %v2262 = vmin.f32 %v2261, 1.0
      %v2263 = vmax.f32 %v2262, -1.0
      %v2264 = vmul.f32 %v1983, %v1983
      %v2265 = vmin.f32 16.0, %v2264
      %v2266 = vmul.f32 %v2265, 2.1237322e-06
      %v2267 = vadd.f32 %v2266, 0.00028619796
      %v2268 = vmul.f32 %v2265, %v2267
      %v2269 = vadd.f32 %v2268, 0.0036580483
      %v2270 = vmul.f32 %v2265, %v2269
      %v2271 = vadd.f32 %v2270, 0.05243302
      %v2272 = vmul.f32 %v2265, %v2271
      %v2273 = vadd.f32 %v2272, 0.18741608
      %v2274 = vmul.f32 %v2265, %v2273
      %v2275 = vadd.f32 %v2274, 1.1283791
      %v2276 = vmul.f32 %v1983, %v2275
      %v2277 = vmul.f32 %v2265, 3.8918573e-05
      %v2278 = vadd.f32 %v2277, 0.001143296
      %v2279 = vmul.f32 %v2265, %v2278
      %v2280 = vadd.f32 %v2279, 0.014752088
      %v2281 = vmul.f32 %v2265, %v2280
      %v2282 = vadd.f32 %v2281, 0.112945676
      %v2283 = vmul.f32 %v2265, %v2282
      %v2284 = vadd.f32 %v2283, 0.4994258
      %v2285 = vmul.f32 %v2265, %v2284
      %v2286 = vadd.f32 %v2285, 1.0
      %v2287 = vrcp.pop %v2286
      %v2288 = vmul.f32 %v2286, %v2287
      %v2289 = vsub.f32 1.0, %v2288
      %v2290 = vmul.f32 %v2287, %v2289
      %v2291 = vadd.f32 %v2287, %v2290
      %vm2292 = vweird.f32 %v2286
      %vm2293 = vweird.f32 %v2287
      %vm2294 = vmor %vm2292, %vm2293
      %v2295 = vsel %vm2294, %v2287, %v2291
      %v2296 = vand.u32 2147483647, %v2286
      %vm2297 = vcmp.eq.f32.partialorder %v2296, 8.507059e+37
      %v2298 = vand.u32 %v2286, 2147483648
      %v2299 = vor.u32 1.1754944e-38, %v2298
      %v2300 = vsel %vm2297, %v2299, %v2295
      %v2301 = vmul.f32 %v2276, %v2300
      %v2302 = vmin.f32 %v2301, 1.0
      %v2303 = vmax.f32 %v2302, -1.0
      %v2304 = vadd.f32 %v2023, 1.0
      %v2305 = vadd.f32 %v2063, 1.0
      %v2306 = vadd.f32 %v2103, 1.0
      %v2307 = vadd.f32 %v2143, 1.0
      %v2308 = vadd.f32 %v2183, 1.0
      %v2309 = vadd.f32 %v2223, 1.0
      %v2310 = vadd.f32 %v2263, 1.0
      %v2311 = vadd.f32 %v2303, 1.0
      %v2312 = vmul.f32 %v1968, %v2304
      %v2313 = vmul.f32 %v1969, %v2305
      %v2314 = vmul.f32 %v1970, %v2306
      %v2315 = vmul.f32 %v1971, %v2307
      %v2316 = vmul.f32 %v1972, %v2308
      %v2317 = vmul.f32 %v1973, %v2309
      %v2318 = vmul.f32 %v1974, %v2310
      %v2319 = vmul.f32 %v1975, %v2311
      %v2320 = vld [vmem:[%s16] sm:$0x1]
      %v2322 = vperm.slane %v2320, 0
      %v2324 = vmul.f32 %v2312, %v2322
      %v2325 = vmul.f32 %v2313, %v2322
      %v2326 = vmul.f32 %v2314, %v2322
      %v2327 = vmul.f32 %v2315, %v2322
      %v2328 = vmul.f32 %v2316, %v2322
      %v2329 = vmul.f32 %v2317, %v2322
      %v2330 = vmul.f32 %v2318, %v2322
      %v2331 = vmul.f32 %v2319, %v2322
      %vm2332 = vcmask 15360
      %v2333 = vsel %vm2332, %v2324, 0.0
      %2334 = vadd.xlane.f32.xlu0 %v2333
      %v2335 = vpop.xlane.xlu0 %2334
      %v2336 = vsel %vm2332, %v2325, 0.0
      %2337 = vadd.xlane.f32.xlu0 %v2336
      %v2338 = vpop.xlane.xlu0 %2337
      %v2339 = vsel %vm2332, %v2326, 0.0
      %2340 = vadd.xlane.f32.xlu0 %v2339
      %v2341 = vpop.xlane.xlu0 %2340
      %v2342 = vsel %vm2332, %v2327, 0.0
      %2343 = vadd.xlane.f32.xlu0 %v2342
      %v2344 = vpop.xlane.xlu0 %2343
      %v2345 = vsel %vm2332, %v2328, 0.0
      %2346 = vadd.xlane.f32.xlu0 %v2345
      %v2347 = vpop.xlane.xlu0 %2346
      %v2348 = vsel %vm2332, %v2329, 0.0
      %2349 = vadd.xlane.f32.xlu0 %v2348
      %v2350 = vpop.xlane.xlu0 %2349
      %v2351 = vsel %vm2332, %v2330, 0.0
      %2352 = vadd.xlane.f32.xlu0 %v2351
      %v2353 = vpop.xlane.xlu0 %2352
      %v2354 = vsel %vm2332, %v2331, 0.0
      %2355 = vadd.xlane.f32.xlu0 %v2354
      %v2356 = vpop.xlane.xlu0 %2355
      %v2357 = vld [vmem:[#allocation2] sm:$0x1]
      %v2359 = vperm.slane %v2357, 0
      %v2361 = vadd.f32 %v2335, %v2359
      %v2362 = vadd.f32 %v2338, %v2359
      %v2363 = vadd.f32 %v2341, %v2359
      %v2364 = vadd.f32 %v2344, %v2359
      %v2365 = vadd.f32 %v2347, %v2359
      %v2366 = vadd.f32 %v2350, %v2359
      %v2367 = vadd.f32 %v2353, %v2359
      %v2368 = vadd.f32 %v2356, %v2359
      %v2369 = vsel %vm823, %v1186, 0.0
      %v2370 = vsel %vm823, %v1188, 0.0
      %v2371 = vadd.f32 %v2369, %v2370
      %v2372 = vsel %vm823, %v1191, 0.0
      %v2373 = vadd.f32 %v2371, %v2372
      %v2374 = vsel %vm823, %v1193, 0.0
      %v2375 = vadd.f32 %v2373, %v2374
      %v2376 = vsel %vm823, %v1196, 0.0
      %v2377 = vadd.f32 %v2375, %v2376
      %v2378 = vsel %vm823, %v1198, 0.0
      %v2379 = vadd.f32 %v2377, %v2378
      %v2380 = vsel %vm823, %v1201, 0.0
      %v2381 = vadd.f32 %v2379, %v2380
      %v2382 = vsel %vm823, %v1203, 0.0
      %v2383 = vadd.f32 %v2381, %v2382
      %v2384 = vrot.slane %v2383, 4
      %v2385 = vadd.f32 %v2383, %v2384
      %v2386 = vrot.slane %v2385, 2
      %v2387 = vadd.f32 %v2385, %v2386
      %v2388 = vrot.slane %v2387, 1
      %v2389 = vadd.f32 %v2387, %v2388
      %v2390 = vrcp.pop 64.0
      %v2391 = vmul.f32 64.0, %v2390
      %v2392 = vsub.f32 1.0, %v2391
      %v2393 = vmul.f32 %v2390, %v2392
      %v2394 = vadd.f32 %v2390, %v2393
      %vm2395 = vweird.f32 %v2390
      %v2396 = vsel %vm2395, %v2390, %v2394
      %v2397 = vmul.f32 %v2389, %v2396
      %v2398 = vld [vmem:[%s18] sm:$0xff]
      %v2399 = vld [vmem:[%s18 + $0x8] sm:$0xff]
      %v2400 = vld [vmem:[%s18 + $0x10] sm:$0xff]
      %v2401 = vld [vmem:[%s18 + $0x18] sm:$0xff]
      %v2402 = vld [vmem:[%s19] sm:$0x1]
      %v2404 = vsel %vm823, %v2397, 0
      %2406 = vmatpush.msra.mxu0 0.0
      %2407 = vmatpush.msra.mxu0 0.0
      %2408 = vmatpush.msra.mxu0 0.0
      %2409 = vmatpush.msra.mxu0 0.0
      %2410 = vmatpush.msra.mxu0 0.0
      %2411 = vmatpush.msra.mxu0 0.0
      %2412 = vmatpush.msra.mxu0 0.0
      %2413 = vmatpush.msra.mxu0 0.0
      %2414 = vmatpush.msra.mxu0 0.0
      %2415 = vmatpush.msra.mxu0 0.0
      %2416 = vmatpush.msra.mxu0 0.0
      %2417 = vmatpush.msra.mxu0 0.0
      %2418 = vmatpush.msra.mxu0 %v2401
      %2419 = vmatpush.msra.mxu0 %v2400
      %2420 = vmatpush.msra.mxu0 %v2399
      %2421 = vmatpush.msra.mxu0 %v2398
      %2422 = vmatmul.f32.gmra.mxu0 %v2404
      %v2423 = vpop.f32.mrf.mxu0
      %v2424 = vadd.f32 %v2402, %v2423
      %2425 = vdwg.mxu0
      %v2426 = vld [vmem:[%s20] sm:$0x1]
      %v2427 = vmul.f32 %v2424, %v2426
      %v2428 = vld [vmem:[%s21] sm:$0x1]
      %v2429 = vadd.f32 %v2427, %v2428
      %v2430 = vmul.f32 %v2429, 0.5
      %v2431 = vmul.f32 %v2429, 0.70710677
      %v2432 = vmul.f32 %v2431, %v2431
      %v2433 = vmin.f32 16.0, %v2432
      %v2434 = vmul.f32 %v2433, 2.1237322e-06
      %v2435 = vadd.f32 %v2434, 0.00028619796
      %v2436 = vmul.f32 %v2433, %v2435
      %v2437 = vadd.f32 %v2436, 0.0036580483
      %v2438 = vmul.f32 %v2433, %v2437
      %v2439 = vadd.f32 %v2438, 0.05243302
      %v2440 = vmul.f32 %v2433, %v2439
      %v2441 = vadd.f32 %v2440, 0.18741608
      %v2442 = vmul.f32 %v2433, %v2441
      %v2443 = vadd.f32 %v2442, 1.1283791
      %v2444 = vmul.f32 %v2431, %v2443
      %v2445 = vmul.f32 %v2433, 3.8918573e-05
      %v2446 = vadd.f32 %v2445, 0.001143296
      %v2447 = vmul.f32 %v2433, %v2446
      %v2448 = vadd.f32 %v2447, 0.014752088
      %v2449 = vmul.f32 %v2433, %v2448
      %v2450 = vadd.f32 %v2449, 0.112945676
      %v2451 = vmul.f32 %v2433, %v2450
      %v2452 = vadd.f32 %v2451, 0.4994258
      %v2453 = vmul.f32 %v2433, %v2452
      %v2454 = vadd.f32 %v2453, 1.0
      %v2455 = vrcp.pop %v2454
      %v2456 = vmul.f32 %v2454, %v2455
      %v2457 = vsub.f32 1.0, %v2456
      %v2458 = vmul.f32 %v2455, %v2457
      %v2459 = vadd.f32 %v2455, %v2458
      %vm2460 = vweird.f32 %v2454
      %vm2461 = vweird.f32 %v2455
      %vm2462 = vmor %vm2460, %vm2461
      %v2463 = vsel %vm2462, %v2455, %v2459
      %v2464 = vand.u32 2147483647, %v2454
      %vm2465 = vcmp.eq.f32.partialorder %v2464, 8.507059e+37
      %v2466 = vand.u32 %v2454, 2147483648
      %v2467 = vor.u32 1.1754944e-38, %v2466
      %v2468 = vsel %vm2465, %v2467, %v2463
      %v2469 = vmul.f32 %v2444, %v2468
      %v2470 = vmin.f32 %v2469, 1.0
      %v2471 = vmax.f32 %v2470, -1.0
      %v2472 = vadd.f32 %v2471, 1.0
      %v2473 = vmul.f32 %v2430, %v2472
      %v2474 = vld [vmem:[%s22] sm:$0xf]
      %v2475 = vld [vmem:[%s23] sm:$0x1]
      %vm2476 = vcmask 31744
      %v2478 = vsel %vm2476, %v2473, 0
      %vm2480 = vcmask 1043456
      %v2482 = vsel %vm2480, %v2474, 0
      %2484 = vmatpush.msra.mxu0 0.0
      %2485 = vmatpush.msra.mxu0 0.0
      %2486 = vmatpush.msra.mxu0 0.0
      %2487 = vmatpush.msra.mxu0 0.0
      %2488 = vmatpush.msra.mxu0 0.0
      %2489 = vmatpush.msra.mxu0 0.0
      %2490 = vmatpush.msra.mxu0 0.0
      %2491 = vmatpush.msra.mxu0 0.0
      %2492 = vmatpush.msra.mxu0 0.0
      %2493 = vmatpush.msra.mxu0 0.0
      %2494 = vmatpush.msra.mxu0 0.0
      %2495 = vmatpush.msra.mxu0 0.0
      %2496 = vmatpush.msra.mxu0 0.0
      %2497 = vmatpush.msra.mxu0 0.0
      %2498 = vmatpush.msra.mxu0 0.0
      %2499 = vmatpush.msra.mxu0 %v2482
      %2500 = vmatmul.f32.gmra.mxu0 %v2478
      %v2501 = vpop.f32.mrf.mxu0
      %v2502 = vadd.f32 %v2475, %v2501
      %2503 = vdwg.mxu0
      %v2504 = vxor.u32 %v2361, 2147483648
      %v2505 = vxor.u32 %v2362, 2147483648
      %v2506 = vxor.u32 %v2363, 2147483648
      %v2507 = vxor.u32 %v2364, 2147483648
      %v2508 = vxor.u32 %v2365, 2147483648
      %v2509 = vxor.u32 %v2366, 2147483648
      %v2510 = vxor.u32 %v2367, 2147483648
      %v2511 = vxor.u32 %v2368, 2147483648
      %v2512 = vmul.f32 %v2504, 1.442695
      %v2513 = vpow.pop %v2512
      %v2514 = vmul.f32 %v2505, 1.442695
      %v2515 = vpow.pop %v2514
      %v2516 = vmul.f32 %v2506, 1.442695
      %v2517 = vpow.pop %v2516
      %v2518 = vmul.f32 %v2507, 1.442695
      %v2519 = vpow.pop %v2518
      %v2520 = vmul.f32 %v2508, 1.442695
      %v2521 = vpow.pop %v2520
      %v2522 = vmul.f32 %v2509, 1.442695
      %v2523 = vpow.pop %v2522
      %v2524 = vmul.f32 %v2510, 1.442695
      %v2525 = vpow.pop %v2524
      %v2526 = vmul.f32 %v2511, 1.442695
      %v2527 = vpow.pop %v2526
      %v2528 = vadd.f32 %v2513, 1.0
      %v2529 = vadd.f32 %v2515, 1.0
      %v2530 = vadd.f32 %v2517, 1.0
      %v2531 = vadd.f32 %v2519, 1.0
      %v2532 = vadd.f32 %v2521, 1.0
      %v2533 = vadd.f32 %v2523, 1.0
      %v2534 = vadd.f32 %v2525, 1.0
      %v2535 = vadd.f32 %v2527, 1.0
      %v2536 = vrcp.pop %v2528
      %v2537 = vmul.f32 %v2528, %v2536
      %v2538 = vsub.f32 1.0, %v2537
      %v2539 = vmul.f32 %v2536, %v2538
      %v2540 = vadd.f32 %v2536, %v2539
      %vm2541 = vweird.f32 %v2528
      %vm2542 = vweird.f32 %v2536
      %vm2543 = vmor %vm2541, %vm2542
      %v2544 = vsel %vm2543, %v2536, %v2540
      %v2545 = vand.u32 2147483647, %v2528
      %vm2546 = vcmp.eq.f32.partialorder %v2545, 8.507059e+37
      %v2547 = vand.u32 %v2528, 2147483648
      %v2548 = vor.u32 1.1754944e-38, %v2547
      %v2549 = vsel %vm2546, %v2548, %v2544
      %v2550 = vmul.f32 1.0, %v2549
      %v2551 = vrcp.pop %v2529
      %v2552 = vmul.f32 %v2529, %v2551
      %v2553 = vsub.f32 1.0, %v2552
      %v2554 = vmul.f32 %v2551, %v2553
      %v2555 = vadd.f32 %v2551, %v2554
      %vm2556 = vweird.f32 %v2529
      %vm2557 = vweird.f32 %v2551
      %vm2558 = vmor %vm2556, %vm2557
      %v2559 = vsel %vm2558, %v2551, %v2555
      %v2560 = vand.u32 2147483647, %v2529
      %vm2561 = vcmp.eq.f32.partialorder %v2560, 8.507059e+37
      %v2562 = vand.u32 %v2529, 2147483648
      %v2563 = vor.u32 1.1754944e-38, %v2562
      %v2564 = vsel %vm2561, %v2563, %v2559
      %v2565 = vmul.f32 1.0, %v2564
      %v2566 = vrcp.pop %v2530
      %v2567 = vmul.f32 %v2530, %v2566
      %v2568 = vsub.f32 1.0, %v2567
      %v2569 = vmul.f32 %v2566, %v2568
      %v2570 = vadd.f32 %v2566, %v2569
      %vm2571 = vweird.f32 %v2530
      %vm2572 = vweird.f32 %v2566
      %vm2573 = vmor %vm2571, %vm2572
      %v2574 = vsel %vm2573, %v2566, %v2570
      %v2575 = vand.u32 2147483647, %v2530
      %vm2576 = vcmp.eq.f32.partialorder %v2575, 8.507059e+37
      %v2577 = vand.u32 %v2530, 2147483648
      %v2578 = vor.u32 1.1754944e-38, %v2577
      %v2579 = vsel %vm2576, %v2578, %v2574
      %v2580 = vmul.f32 1.0, %v2579
      %v2581 = vrcp.pop %v2531
      %v2582 = vmul.f32 %v2531, %v2581
      %v2583 = vsub.f32 1.0, %v2582
      %v2584 = vmul.f32 %v2581, %v2583
      %v2585 = vadd.f32 %v2581, %v2584
      %vm2586 = vweird.f32 %v2531
      %vm2587 = vweird.f32 %v2581
      %vm2588 = vmor %vm2586, %vm2587
      %v2589 = vsel %vm2588, %v2581, %v2585
      %v2590 = vand.u32 2147483647, %v2531
      %vm2591 = vcmp.eq.f32.partialorder %v2590, 8.507059e+37
      %v2592 = vand.u32 %v2531, 2147483648
      %v2593 = vor.u32 1.1754944e-38, %v2592
      %v2594 = vsel %vm2591, %v2593, %v2589
      %v2595 = vmul.f32 1.0, %v2594
      %v2596 = vrcp.pop %v2532
      %v2597 = vmul.f32 %v2532, %v2596
      %v2598 = vsub.f32 1.0, %v2597
      %v2599 = vmul.f32 %v2596, %v2598
      %v2600 = vadd.f32 %v2596, %v2599
      %vm2601 = vweird.f32 %v2532
      %vm2602 = vweird.f32 %v2596
      %vm2603 = vmor %vm2601, %vm2602
      %v2604 = vsel %vm2603, %v2596, %v2600
      %v2605 = vand.u32 2147483647, %v2532
      %vm2606 = vcmp.eq.f32.partialorder %v2605, 8.507059e+37
      %v2607 = vand.u32 %v2532, 2147483648
      %v2608 = vor.u32 1.1754944e-38, %v2607
      %v2609 = vsel %vm2606, %v2608, %v2604
      %v2610 = vmul.f32 1.0, %v2609
      %v2611 = vrcp.pop %v2533
      %v2612 = vmul.f32 %v2533, %v2611
      %v2613 = vsub.f32 1.0, %v2612
      %v2614 = vmul.f32 %v2611, %v2613
      %v2615 = vadd.f32 %v2611, %v2614
      %vm2616 = vweird.f32 %v2533
      %vm2617 = vweird.f32 %v2611
      %vm2618 = vmor %vm2616, %vm2617
      %v2619 = vsel %vm2618, %v2611, %v2615
      %v2620 = vand.u32 2147483647, %v2533
      %vm2621 = vcmp.eq.f32.partialorder %v2620, 8.507059e+37
      %v2622 = vand.u32 %v2533, 2147483648
      %v2623 = vor.u32 1.1754944e-38, %v2622
      %v2624 = vsel %vm2621, %v2623, %v2619
      %v2625 = vmul.f32 1.0, %v2624
      %v2626 = vrcp.pop %v2534
      %v2627 = vmul.f32 %v2534, %v2626
      %v2628 = vsub.f32 1.0, %v2627
      %v2629 = vmul.f32 %v2626, %v2628
      %v2630 = vadd.f32 %v2626, %v2629
      %vm2631 = vweird.f32 %v2534
      %vm2632 = vweird.f32 %v2626
      %vm2633 = vmor %vm2631, %vm2632
      %v2634 = vsel %vm2633, %v2626, %v2630
      %v2635 = vand.u32 2147483647, %v2534
      %vm2636 = vcmp.eq.f32.partialorder %v2635, 8.507059e+37
      %v2637 = vand.u32 %v2534, 2147483648
      %v2638 = vor.u32 1.1754944e-38, %v2637
      %v2639 = vsel %vm2636, %v2638, %v2634
      %v2640 = vmul.f32 1.0, %v2639
      %v2641 = vrcp.pop %v2535
      %v2642 = vmul.f32 %v2535, %v2641
      %v2643 = vsub.f32 1.0, %v2642
      %v2644 = vmul.f32 %v2641, %v2643
      %v2645 = vadd.f32 %v2641, %v2644
      %vm2646 = vweird.f32 %v2535
      %vm2647 = vweird.f32 %v2641
      %vm2648 = vmor %vm2646, %vm2647
      %v2649 = vsel %vm2648, %v2641, %v2645
      %v2650 = vand.u32 2147483647, %v2535
      %vm2651 = vcmp.eq.f32.partialorder %v2650, 8.507059e+37
      %v2652 = vand.u32 %v2535, 2147483648
      %v2653 = vor.u32 1.1754944e-38, %v2652
      %v2654 = vsel %vm2651, %v2653, %v2649
      %v2655 = vmul.f32 1.0, %v2654
      %2657 = vset.pattern.permute.xlu0 0
      %2658 = vperm.xlu0 %2657, %v2550
      %v2659 = vpop.permute.xlu0 %2658
      %2662 = vset.pattern.permute.xlu0 0
      %2663 = vperm.xlu0 %2662, %v2565
      %v2664 = vpop.permute.xlu0 %2663
      %2667 = vset.pattern.permute.xlu0 0
      %2668 = vperm.xlu0 %2667, %v2580
      %v2669 = vpop.permute.xlu0 %2668
      %2672 = vset.pattern.permute.xlu0 0
      %2673 = vperm.xlu0 %2672, %v2595
      %v2674 = vpop.permute.xlu0 %2673
      %2677 = vset.pattern.permute.xlu0 0
      %2678 = vperm.xlu0 %2677, %v2610
      %v2679 = vpop.permute.xlu0 %2678
      %2682 = vset.pattern.permute.xlu0 0
      %2683 = vperm.xlu0 %2682, %v2625
      %v2684 = vpop.permute.xlu0 %2683
      %2687 = vset.pattern.permute.xlu0 0
      %2688 = vperm.xlu0 %2687, %v2640
      %v2689 = vpop.permute.xlu0 %2688
      %2692 = vset.pattern.permute.xlu0 0
      %2693 = vperm.xlu0 %2692, %v2655
      %v2694 = vpop.permute.xlu0 %2693
      %v2696 = vmul.f32 %v1186, %v2659
      %v2697 = vmul.f32 %v1188, %v2664
      %v2698 = vmul.f32 %v1191, %v2669
      %v2699 = vmul.f32 %v1193, %v2674
      %v2700 = vmul.f32 %v1196, %v2679
      %v2701 = vmul.f32 %v1198, %v2684
      %v2702 = vmul.f32 %v1201, %v2689
      %v2703 = vmul.f32 %v1203, %v2694
      %v2704 = vxor.u32 %v2502, 2147483648
      %v2705 = vmul.f32 %v2704, 1.442695
      %v2706 = vpow.pop %v2705
      %v2707 = vadd.f32 %v2706, 1.0
      %v2708 = vrcp.pop %v2707
      %v2709 = vmul.f32 %v2707, %v2708
      %v2710 = vsub.f32 1.0, %v2709
      %v2711 = vmul.f32 %v2708, %v2710
      %v2712 = vadd.f32 %v2708, %v2711
      %vm2713 = vweird.f32 %v2707
      %vm2714 = vweird.f32 %v2708
      %vm2715 = vmor %vm2713, %vm2714
      %v2716 = vsel %vm2715, %v2708, %v2712
      %v2717 = vand.u32 2147483647, %v2707
      %vm2718 = vcmp.eq.f32.partialorder %v2717, 8.507059e+37
      %v2719 = vand.u32 %v2707, 2147483648
      %v2720 = vor.u32 1.1754944e-38, %v2719
      %v2721 = vsel %vm2718, %v2720, %v2716
      %v2722 = vmul.f32 1.0, %v2721
      %v2723 = vperm.slane %v2722, 0
      %v2724 = vmul.f32 %v1871, %v2723
      %v2725 = vmul.f32 %v1872, %v2723
      %v2726 = vmul.f32 %v1873, %v2723
      %v2727 = vmul.f32 %v1874, %v2723
      %v2728 = vmul.f32 %v1875, %v2723
      %v2729 = vmul.f32 %v1876, %v2723
      %v2730 = vmul.f32 %v1877, %v2723
      %v2731 = vmul.f32 %v1878, %v2723
      %v2732 = vadd.f32 %v2696, %v2724
      %v2733 = vadd.f32 %v2697, %v2725
      %v2734 = vadd.f32 %v2698, %v2726
      %v2735 = vadd.f32 %v2699, %v2727
      %v2736 = vadd.f32 %v2700, %v2728
      %v2737 = vadd.f32 %v2701, %v2729
      %v2738 = vadd.f32 %v2702, %v2730
      %v2739 = vadd.f32 %v2703, %v2731
      %v2740 = vpack.c.bf16 %v2733, %v2732
      %v2741 = vpack.c.bf16 %v2735, %v2734
      %v2742 = vpack.c.bf16 %v2737, %v2736
      %v2743 = vpack.c.bf16 %v2739, %v2738
      %v2744 = vld [vmem:[%s24] sm:$0xf]
      %v2745 = vld [vmem:[%s24 + $0x4] sm:$0xf]
      %v2746 = vld [vmem:[%s24 + $0x8] sm:$0xf]
      %v2747 = vld [vmem:[%s24 + $0xc] sm:$0xf]
      %v2748 = vld [vmem:[%s25] sm:$0x1]
      %v2750 = vperm.slane %v2748, 0
      %v2756 = vunpack.c.l.b16 %v2744
      %v2757 = vunpack.c.l.b16 %v2745
      %v2758 = vunpack.c.l.b16 %v2746
      %v2759 = vunpack.c.l.b16 %v2747
      %v2760 = vpack.c.b16 %v2757, %v2756
      %v2761 = vpack.c.b16 %v2759, %v2758
      %v2765 = vsel %vm823, %v2740, 0
      %v2768 = vsel %vm823, %v2741, 0
      %v2771 = vsel %vm823, %v2742, 0
      %v2774 = vsel %vm823, %v2743, 0
      %2776 = vmatpush.bf16.msra.mxu0 0
      %2777 = vmatpush.bf16.msra.mxu0 0
      %2778 = vmatpush.bf16.msra.mxu0 0
      %2779 = vmatpush.bf16.msra.mxu0 0
      %2780 = vmatpush.bf16.msra.mxu0 0
      %2781 = vmatpush.bf16.msra.mxu0 0
      %2782 = vmatpush.bf16.msra.mxu0 %v2761
      %2783 = vmatpush.bf16.msra.mxu0 %v2760
      %2784 = vmatmul.bf16.gmra.mxu0 %v2765
      %v2785 = vpop.f32.mrf.mxu0
      %v2786 = vadd.f32 %v2750, %v2785
      %v2787 = vpop.f32.mrf.mxu0
      %v2788 = vadd.f32 %v2750, %v2787
      %2789 = vmatmul.bf16.gmra.mxu0 %v2768
      %v2790 = vpop.f32.mrf.mxu0
      %v2791 = vadd.f32 %v2750, %v2790
      %v2792 = vpop.f32.mrf.mxu0
      %v2793 = vadd.f32 %v2750, %v2792
      %2794 = vmatmul.bf16.gmra.mxu0 %v2771
      %v2795 = vpop.f32.mrf.mxu0
      %v2796 = vadd.f32 %v2750, %v2795
      %v2797 = vpop.f32.mrf.mxu0
      %v2798 = vadd.f32 %v2750, %v2797
      %2799 = vmatmul.bf16.gmra.mxu0 %v2774
      %v2800 = vpop.f32.mrf.mxu0
      %v2801 = vadd.f32 %v2750, %v2800
      %v2802 = vpop.f32.mrf.mxu0
      %v2803 = vadd.f32 %v2750, %v2802
      %2804 = vdwg.mxu0
      %2805 = vst.msk [vmem:[%s793] sm:$0xff] %vm823, %v2786
      %2806 = vst.msk [vmem:[%s793 + $0x8] sm:$0xff] %vm823, %v2788
      %2807 = vst.msk [vmem:[%s793 + $0x10] sm:$0xff] %vm823, %v2791
      %2808 = vst.msk [vmem:[%s793 + $0x18] sm:$0xff] %vm823, %v2793
      %2809 = vst.msk [vmem:[%s793 + $0x20] sm:$0xff] %vm823, %v2796
      %2810 = vst.msk [vmem:[%s793 + $0x28] sm:$0xff] %vm823, %v2798
      %2811 = vst.msk [vmem:[%s793 + $0x30] sm:$0xff] %vm823, %v2801
      %2812 = vst.msk [vmem:[%s793 + $0x38] sm:$0xff] %vm823, %v2803
      %p2813 = scmp.lt.s32.totalorder %s39, 1
      %s2814 = scalar_select %p2813, %s39, 1
      %s2815 = smul.addr %s2814, 8
      %s2816 = smul.addr %s2815, 8
      %s2817 = scalar_lea.vmem %s26, %s2816
      // Predicated region
      $region125: #{adaptive_channel_attention.1} parent=123 // pred_check
        %p2818 = pneg %p608
      $region126: #{adaptive_channel_attention.1} parent=123 // pred_check_branch
        %2820 = sbr.rel (%p2818) target = $region128
      $region127: #{adaptive_channel_attention.1} parent=123 // pred_region
        _
      $region128: #{adaptive_channel_attention.1} parent=123 // pred_fallthru
        _
    $region124: #{adaptive_channel_attention.1} parent=5 // pred_fallthru
      _
    %p2821 = scmp.le.s32.totalorder 2, %s34
    // Predicated region
    $region129: #{adaptive_channel_attention.1} parent=5 // pred_check
      %p2822 = pneg %p2821
    $region130: #{adaptive_channel_attention.1} parent=5 // pred_check_branch
      %2824 = sbr.rel (%p2822) target = $region132
    $region131: #{adaptive_channel_attention.1} parent=5 // pred_region
      %s2825 = ssub.s32 %s34, 2
      // Predicated region
      $region133: #{adaptive_channel_attention.1} parent=131 // pred_check
        %p2826 = pneg %p614
      $region134: #{adaptive_channel_attention.1} parent=131 // pred_check_branch
        %2828 = sbr.rel (%p2826) target = $region136
      $region135: #{adaptive_channel_attention.1} parent=131 // pred_region
        %p2829 = scmp.lt.s32.totalorder %s40, 1
        %s2830 = scalar_select %p2829, %s40, 1
        %s2831 = smul.addr %s2830, 8
        %s2832 = smul.addr %s2831, 8
        %s2833 = scalar_lea.vmem %s26, %s2832
      $region136: #{adaptive_channel_attention.1} parent=131 // pred_fallthru
        _
    $region132: #{adaptive_channel_attention.1} parent=5 // pred_fallthru
      _
  $region6: #{adaptive_channel_attention.1} parent=0 // loop_footer
    %s38 = sadd.s32 1, %s34
  $region7: #{adaptive_channel_attention.1} parent=0 // loop_footer_branch
    %33 = sbr.rel target = $region3
  $region8: #{adaptive_channel_attention.1} parent=0 // loop_exit
    _

</llo_original>
